<compile_context>
chip_gen: v7x
topology: tpu7x:2x2x1
jax: 0.10.0
libtpu: 0.0.40
codegen_flags: <defaults>
</compile_context>

<pallas_src>
import functools

import jax
import jax.numpy as jnp
from jax.experimental import pallas as pl
from jax.experimental.pallas import tpu as pltpu


def _hidden_kernel(z_ref, w1_ref, b1_ref, w2_ref, b2_ref, h_ref):
    """h = relu(relu(z @ W1 + b1) @ W2 + b2), written once as bf16."""
    h = jnp.dot(z_ref[...], w1_ref[...], preferred_element_type=jnp.float32)
    h = jnp.maximum(h + b1_ref[...], 0.0)
    h = jnp.dot(h.astype(jnp.bfloat16), w2_ref[...],
                preferred_element_type=jnp.float32)
    h = jnp.maximum(h + b2_ref[...], 0.0)
    h_ref[...] = h.astype(h_ref.dtype)


def _fc4_kernel(h_ref, w4_ref, b4_ref, out_ref):
    """One grid step: sigmoid(h @ W4[:, tile] + b4[tile]) for a column tile."""
    logits = jnp.dot(h_ref[...], w4_ref[...],
                     preferred_element_type=jnp.float32)
    out_ref[...] = jax.nn.sigmoid(logits + b4_ref[...]).astype(out_ref.dtype)


def _pick_col_tile(output_dim):
    # Prefer lane-dense tiles (multiple of 128) that leave >= 8 grid steps so
    # the v7x 2-TC megacore split still sees >= 4 steps/core; otherwise the
    # largest divisor tile. (Sweep 1024-2048 on v5e/v6e for very large outputs.)
    for t in (2048, 1024, 512, 256, 128):
        if output_dim % t == 0 and output_dim // t >= 8:
            return t
    for t in (2048, 1024, 512, 256, 128):
        if output_dim % t == 0:
            return t
    return output_dim


@functools.partial(jax.jit, static_argnames=("input_dim", "col_tile"))
def mlp_decoder_forward(z, params, input_dim, col_tile=None):
    """z: (B, latent_dim) float32 -> reconstruction (B, C, H, W) float32."""
    w1, b1, w2, b2, w4, b4 = params
    B, latent_dim = z.shape
    hidden = w1.shape[1]          # 1024
    output_dim = w4.shape[1]      # C*H*W

    if col_tile is None:
        col_tile = _pick_col_tile(output_dim)
    assert output_dim % col_tile == 0
    n_tiles = output_dim // col_tile

    # Pad batch to full sublanes (>=8 rows) so vector stores are unmasked.
    B_pad = max(8, ((B + 7) // 8) * 8)
    z_pad = jnp.pad(z, ((0, B_pad - B), (0, 0)))

    # --- Stage 1: hidden state, computed exactly once (no grid). ---
    h_bf16 = pl.pallas_call(
        _hidden_kernel,
        out_shape=jax.ShapeDtypeStruct((B_pad, hidden), jnp.bfloat16),
    )(z_pad, w1, b1, w2, b2)

    # --- Stage 2: stream W4 column tiles; memory-bound bf16 matmul + sigmoid. ---
    bytes_accessed = (
        w4.size * w4.dtype.itemsize            # streamed W4 (bf16)
        + b4.size * b4.dtype.itemsize
        + h_bf16.size * h_bf16.dtype.itemsize  # resident h
        + B_pad * output_dim * 4               # f32 output
    )
    flat = pl.pallas_call(
        _fc4_kernel,
        out_shape=jax.ShapeDtypeStruct((B_pad, output_dim), jnp.float32),
        grid_spec=pltpu.PrefetchScalarGridSpec(
            num_scalar_prefetch=0,
            grid=(n_tiles,),
            in_specs=[
                pl.BlockSpec((B_pad, hidden), lambda j: (0, 0)),     # h (resident)
                pl.BlockSpec((hidden, col_tile), lambda j: (0, j)),  # W4 tile
                pl.BlockSpec((1, col_tile), lambda j: (0, j)),       # b4 tile
            ],
            out_specs=pl.BlockSpec((B_pad, col_tile), lambda j: (0, j)),
        ),
        compiler_params=pltpu.CompilerParams(
            dimension_semantics=("parallel",),
            vmem_limit_bytes=32 * 1024 * 1024,
        ),
        cost_estimate=pl.CostEstimate(
            flops=2 * B_pad * hidden * output_dim,
            transcendentals=B_pad * output_dim,   # sigmoid
            bytes_accessed=int(bytes_accessed),
        ),
    )(h_bf16, w4, b4)

    C, H, W = input_dim
    return flat[:B].reshape(B, C, H, W)


def init_params(key, latent_dim, output_dim, hidden=1024):
    """Deterministic synthetic parameters (Linear weights stored as (in, out)).

    W2 / W4 are stored in bfloat16 (bandwidth); W1 and all biases stay f32.
    """
    k1, k2, k3 = jax.random.split(key, 3)

    def lin(k, fan_in, fan_out, w_dtype):
        bound = 1.0 / jnp.sqrt(fan_in)
        kw, kb = jax.random.split(k)
        w = jax.random.uniform(kw, (fan_in, fan_out), jnp.float32, -bound, bound)
        b = jax.random.uniform(kb, (1, fan_out), jnp.float32, -bound, bound)
        return w.astype(w_dtype), b

    w1, b1 = lin(k1, latent_dim, hidden, jnp.float32)
    w2, b2 = lin(k2, hidden, hidden, jnp.bfloat16)
    w4, b4 = lin(k3, hidden, output_dim, jnp.bfloat16)
    return (w1, b1, w2, b2, w4, b4)


def reference_forward(z, params, input_dim):
    """Pure-JAX reference mirroring the kernel's numerics (bf16 weights/h,
    f32 accumulation) of the PyTorch forward pass."""
    w1, b1, w2, b2, w4, b4 = params
    h = z.reshape(z.shape[0], -1)
    h = jnp.maximum(jnp.dot(h, w1, preferred_element_type=jnp.float32) + b1, 0.0)
    h = jnp.maximum(
        jnp.dot(h.astype(jnp.bfloat16), w2, preferred_element_type=jnp.float32)
        + b2, 0.0)
    logits = (jnp.dot(h.astype(jnp.bfloat16), w4,
                      preferred_element_type=jnp.float32) + b4)
    return jax.nn.sigmoid(logits.reshape(z.shape[0], *input_dim))


if __name__ == "__main__":
    # Small, consistent shapes: latent_dim=10, output image 4x32x32 = 4096.
    B = 2
    latent_dim = 10
    input_dim = (4, 32, 32)
    output_dim = input_dim[0] * input_dim[1] * input_dim[2]  # 4096

    key = jax.random.PRNGKey(0)
    kz, kp = jax.random.split(key)
    z = jax.random.normal(kz, (B, latent_dim), dtype=jnp.float32)
    params = init_params(kp, latent_dim, output_dim)

    out = mlp_decoder_forward(z, params, input_dim)
    out = jax.block_until_ready(out)

    ref = reference_forward(z, params, input_dim)
    assert out.shape == (B, *input_dim), out.shape
    assert jnp.allclose(out, ref, atol=1e-4, rtol=1e-4), (
        "mismatch vs reference: max abs diff = %g"
        % float(jnp.max(jnp.abs(out - ref))))

    print("KERNEL_OK")
</pallas_src>

<mosaic_0001>
module attributes {stable_mosaic.version = 11 : i64} {
  func.func @_fc4_kernel(%arg0: i32, %arg1: memref<8x1024xbf16, #tpu.memory_space<vmem>>, %arg2: memref<1024x512xbf16, #tpu.memory_space<vmem>>, %arg3: memref<1x512xf32, #tpu.memory_space<vmem>>, %arg4: memref<8x512xf32, #tpu.memory_space<vmem>>) attributes {dimension_semantics = [#tpu.dimension_semantics<parallel>], iteration_bounds = array<i64: 8>, scalar_prefetch = 0 : i64, scratch_operands = 0 : i64, tpu.core_type = #tpu.core_type<tc>, window_params = [{pipeline_mode = #tpu.pipeline_mode<synchronous>, transform_indices = @transform_0, window_bounds = array<i64: 8, 1024>}, {transform_indices = @transform_1, window_bounds = array<i64: 1024, 512>}, {transform_indices = @transform_2, window_bounds = array<i64: 1, 512>}, {transform_indices = @transform_3, window_bounds = array<i64: 8, 512>}]} {
    %c0 = arith.constant 0 : index
    %c0_0 = arith.constant 0 : index
    %0 = vector.load %arg1[%c0, %c0_0] : memref<8x1024xbf16, #tpu.memory_space<vmem>>, vector<8x1024xbf16>
    %c0_1 = arith.constant 0 : index
    %c0_2 = arith.constant 0 : index
    %1 = vector.load %arg2[%c0_1, %c0_2] : memref<1024x512xbf16, #tpu.memory_space<vmem>>, vector<1024x512xbf16>
    %cst = arith.constant dense<0.000000e+00> : vector<8x512xf32>
    %2 = tpu.matmul %0, %1, %cst {dimension_numbers = #tpu.dot_dimension_numbers<[1], [0], [0], [1], [0, 0, 1, 1], [], []>} : vector<8x1024xbf16>, vector<1024x512xbf16>, vector<8x512xf32> -> vector<8x512xf32>
    %c0_3 = arith.constant 0 : index
    %c0_4 = arith.constant 0 : index
    %3 = vector.load %arg3[%c0_3, %c0_4] : memref<1x512xf32, #tpu.memory_space<vmem>>, vector<1x512xf32>
    %4 = vector.broadcast %3 : vector<1x512xf32> to vector<8x512xf32>
    %5 = arith.addf %2, %4 : vector<8x512xf32>
    %6 = arith.negf %5 : vector<8x512xf32>
    %7 = math.exp %6 : vector<8x512xf32>
    %cst_5 = arith.constant 1.000000e+00 : f32
    %8 = vector.broadcast %cst_5 : f32 to vector<8x512xf32>
    %9 = arith.addf %8, %7 : vector<8x512xf32>
    %10 = arith.divf %8, %9 : vector<8x512xf32>
    %c0_6 = arith.constant 0 : index
    %c0_7 = arith.constant 0 : index
    %11 = vector.load %arg4[%c0_6, %c0_7] : memref<8x512xf32, #tpu.memory_space<vmem>>, vector<8x512xf32>
    tpu.vector_store %arg4[%c0_6, %c0_7], %10 {strides = array<i32>} : memref<8x512xf32, #tpu.memory_space<vmem>>, vector<8x512xf32>,
    return
  }
  func.func @transform_0(%arg0: i32) -> (i32, i32) {
    %c0_i32 = arith.constant 0 : i32
    %c0_i32_0 = arith.constant 0 : i32
    %c0_i32_1 = arith.constant 0 : i32
    return %c0_i32, %c0_i32_0 : i32, i32
  }
  func.func @transform_1(%arg0: i32) -> (i32, i32) {
    %c0_i32 = arith.constant 0 : i32
    %c0_i32_0 = arith.constant 0 : i32
    return %c0_i32, %arg0 : i32, i32
  }
  func.func @transform_2(%arg0: i32) -> (i32, i32) {
    %c0_i32 = arith.constant 0 : i32
    %c0_i32_0 = arith.constant 0 : i32
    return %c0_i32, %arg0 : i32, i32
  }
  func.func @transform_3(%arg0: i32) -> (i32, i32) {
    %c0_i32 = arith.constant 0 : i32
    %c0_i32_0 = arith.constant 0 : i32
    return %c0_i32, %arg0 : i32, i32
  }
}

module attributes {stable_mosaic.version = 11 : i64} {
  func.func @_hidden_kernel(%arg0: memref<8x10xf32, #tpu.memory_space<vmem>>, %arg1: memref<10x1024xf32, #tpu.memory_space<vmem>>, %arg2: memref<1x1024xf32, #tpu.memory_space<vmem>>, %arg3: memref<1024x1024xbf16, #tpu.memory_space<vmem>>, %arg4: memref<1x1024xf32, #tpu.memory_space<vmem>>, %arg5: memref<8x1024xbf16, #tpu.memory_space<vmem>>) attributes {dimension_semantics = [], scalar_prefetch = 0 : i64, scratch_operands = 0 : i64, tpu.core_type = #tpu.core_type<tc>} {
    %c0 = arith.constant 0 : index
    %c0_0 = arith.constant 0 : index
    %0 = vector.load %arg0[%c0, %c0_0] : memref<8x10xf32, #tpu.memory_space<vmem>>, vector<8x10xf32>
    %c0_1 = arith.constant 0 : index
    %c0_2 = arith.constant 0 : index
    %1 = vector.load %arg1[%c0_1, %c0_2] : memref<10x1024xf32, #tpu.memory_space<vmem>>, vector<10x1024xf32>
    %cst = arith.constant dense<0.000000e+00> : vector<8x1024xf32>
    %2 = tpu.matmul %0, %1, %cst {dimension_numbers = #tpu.dot_dimension_numbers<[1], [0], [0], [1], [0, 0, 1, 1], [], []>} : vector<8x10xf32>, vector<10x1024xf32>, vector<8x1024xf32> -> vector<8x1024xf32>
    %c0_3 = arith.constant 0 : index
    %c0_4 = arith.constant 0 : index
    %3 = vector.load %arg2[%c0_3, %c0_4] : memref<1x1024xf32, #tpu.memory_space<vmem>>, vector<1x1024xf32>
    %4 = vector.broadcast %3 : vector<1x1024xf32> to vector<8x1024xf32>
    %5 = arith.addf %2, %4 : vector<8x1024xf32>
    %cst_5 = arith.constant 0.000000e+00 : f32
    %6 = vector.broadcast %cst_5 : f32 to vector<8x1024xf32>
    %7 = arith.maximumf %5, %6 : vector<8x1024xf32>
    %8 = arith.truncf %7 : vector<8x1024xf32> to vector<8x1024xbf16>
    %c0_6 = arith.constant 0 : index
    %c0_7 = arith.constant 0 : index
    %9 = vector.load %arg3[%c0_6, %c0_7] : memref<1024x1024xbf16, #tpu.memory_space<vmem>>, vector<1024x1024xbf16>
    %cst_8 = arith.constant dense<0.000000e+00> : vector<8x1024xf32>
    %10 = tpu.matmul %8, %9, %cst_8 {dimension_numbers = #tpu.dot_dimension_numbers<[1], [0], [0], [1], [0, 0, 1, 1], [], []>} : vector<8x1024xbf16>, vector<1024x1024xbf16>, vector<8x1024xf32> -> vector<8x1024xf32>
    %c0_9 = arith.constant 0 : index
    %c0_10 = arith.constant 0 : index
    %11 = vector.load %arg4[%c0_9, %c0_10] : memref<1x1024xf32, #tpu.memory_space<vmem>>, vector<1x1024xf32>
    %12 = vector.broadcast %11 : vector<1x1024xf32> to vector<8x1024xf32>
    %13 = arith.addf %10, %12 : vector<8x1024xf32>
    %cst_11 = arith.constant 0.000000e+00 : f32
    %14 = vector.broadcast %cst_11 : f32 to vector<8x1024xf32>
    %15 = arith.maximumf %13, %14 : vector<8x1024xf32>
    %16 = arith.truncf %15 : vector<8x1024xf32> to vector<8x1024xbf16>
    %c0_12 = arith.constant 0 : index
    %c0_13 = arith.constant 0 : index
    %17 = vector.load %arg5[%c0_12, %c0_13] : memref<8x1024xbf16, #tpu.memory_space<vmem>>, vector<8x1024xbf16>
    tpu.vector_store %arg5[%c0_12, %c0_13], %16 {strides = array<i32>} : memref<8x1024xbf16, #tpu.memory_space<vmem>>, vector<8x1024xbf16>,
    return
  }
}

</mosaic_0001>

<llo_original>
// kernel: mlp_decoder_forward.3
$region0: #{mlp_decoder_forward.3}
  #allocation0 [shape = 'u32[]', space=smem, size = 0x4, offset = 0x4, fixed_abs, tag = 'smem constant byte address 0x4 - core index']
  #allocation1 [shape = 'u32[144,128]{1,0:T(1,128)}', space=vmem, size = 0x12000, scoped, tag = 'internal scratch']
  %s0 = inlined_call_operand.vmem [shape: bf16[8,1024], index: 0, kind: input, shape index: {}]
  %s1 = inlined_call_operand.hbm [shape: bf16[1024,4096], index: 1, kind: input, shape index: {}]
  %s2 = inlined_call_operand.hbm [shape: f32[1,4096], index: 2, kind: input, shape index: {}]
  %s3 = inlined_call_operand.vmem [shape: f32[8,4096], index: 3, kind: output, shape index: {}]
  %s4 = sld [smem:[#allocation0]]
  $region53: #{mlp_decoder_forward.3} parent=0
    _
  %s6 = ssub.s32 1, %s4
  %s7 = scalar_select 0, %s6, %s4
  $region1: #{mlp_decoder_forward.3} parent=0
    #allocation2 [shape = 'u8[2097152]{0}', space=vmem, size = 0x200000, scoped, tag = 'input window, operand 1']
    #allocation3 [shape = 's32[2]{0}', space=sflag, size = 0x8, scoped, tag = 'scoped memory for mlp_decoder_forward.3']
    #allocation4 [shape = 'u8[4096]{0}', space=vmem, size = 0x1000, scoped, tag = 'input window, operand 2']
    #allocation5 [shape = 's32[2]{0}', space=sflag, size = 0x8, scoped, tag = 'scoped memory for mlp_decoder_forward.3']
    %8 = vsyncpa [#allocation3], 0
    %s9 = scalar_lea.sflag [#allocation3], 1
    %10 = vsyncpa %s9, 0
    %11 = vsyncpa [#allocation5], 0
    %s12 = scalar_lea.sflag [#allocation5], 1
    %13 = vsyncpa %s12, 0
    loop: start=0, step=1, limit=10
    $region2: #{mlp_decoder_forward.3} parent=1 // loop_pre_header
      _
    $region3: #{mlp_decoder_forward.3} parent=1 // loop_header
      %s15 = sphi 0, %s19
      %p16 = scmp.ge.s32.totalorder %s15, 10
      %s23 = sphi 0, %s23
      %s25 = sphi 0, %s23
      %s26 = sphi 0, %s25
      %s40 = sphi 0, %s26
      %s46 = sphi 0, %s48
      %s49 = sphi 0, %s46
      %s50 = sphi 0, %s49
      %s66 = sphi 0, %s50
      %s72 = sphi 0, %s74
      %s75 = sphi 0, %s72
      %s76 = sphi 0, %s75
      %s92 = sphi 0, %s76
      %s98 = sphi 0, %s100
      %s101 = sphi 0, %s98
      %s102 = sphi 0, %s101
      %s118 = sphi 0, %s102
    $region4: #{mlp_decoder_forward.3} parent=1 // loop_header_branch
      %18 = sbr.rel (%p16) target = $region8
    $region5: #{mlp_decoder_forward.3} parent=1 // loop_body
      %s20 = ssub.s32 %s15, 1
      %s21 = ssub.s32 %s15, 2
      %s22 = sadd.s32 %s15, 1
      %s24 = sadd.s32 %s23, 1
      %p27 = scmp.eq.s32.totalorder %s15, 7
      %p28 = scmp.ne.s32.totalorder %s23, %s25
      %p29 = scmp.eq.s32.totalorder %s15, 0
      %p30 = por %p28, %p29
      %p31 = scmp.ne.s32.totalorder %s23, %s25
      %p32 = scmp.eq.s32.totalorder %s20, 7
      %p33 = por %p31, %p32
      %p34 = scmp.ne.s32.totalorder %s25, %s26
      %p35 = scmp.eq.s32.totalorder %s20, 0
      %p36 = por %p34, %p35
      %p37 = scmp.ne.s32.totalorder %s25, %s26
      %p38 = scmp.eq.s32.totalorder %s21, 7
      %p39 = por %p37, %p38
      %p41 = scmp.ne.s32.totalorder %s26, %s40
      %p42 = scmp.eq.s32.totalorder %s21, 0
      %p43 = por %p41, %p42
      %s44 = ssub.s32 %s15, %s22
      %p45 = scmp.eq.s32.totalorder %s44, 0
      %s47 = sadd.s32 %s46, 1
      %s48 = scalar_select %p45, %s46, %s47
      %p51 = pneg %p45
      %p52 = scmp.eq.s32.totalorder %s15, 7
      %p53 = por %p51, %p52
      %p54 = scmp.ne.s32.totalorder %s46, %s49
      %p55 = scmp.eq.s32.totalorder %s15, 0
      %p56 = por %p54, %p55
      %p57 = scmp.ne.s32.totalorder %s46, %s49
      %p58 = scmp.eq.s32.totalorder %s20, 7
      %p59 = por %p57, %p58
      %p60 = scmp.ne.s32.totalorder %s49, %s50
      %p61 = scmp.eq.s32.totalorder %s20, 0
      %p62 = por %p60, %p61
      %p63 = scmp.ne.s32.totalorder %s49, %s50
      %p64 = scmp.eq.s32.totalorder %s21, 7
      %p65 = por %p63, %p64
      %p67 = scmp.ne.s32.totalorder %s50, %s66
      %p68 = scmp.eq.s32.totalorder %s21, 0
      %p69 = por %p67, %p68
      %s70 = ssub.s32 %s15, %s22
      %p71 = scmp.eq.s32.totalorder %s70, 0
      %s73 = sadd.s32 %s72, 1
      %s74 = scalar_select %p71, %s72, %s73
      %p77 = pneg %p71
      %p78 = scmp.eq.s32.totalorder %s15, 7
      %p79 = por %p77, %p78
      %p80 = scmp.ne.s32.totalorder %s72, %s75
      %p81 = scmp.eq.s32.totalorder %s15, 0
      %p82 = por %p80, %p81
      %p83 = scmp.ne.s32.totalorder %s72, %s75
      %p84 = scmp.eq.s32.totalorder %s20, 7
      %p85 = por %p83, %p84
      %p86 = scmp.ne.s32.totalorder %s75, %s76
      %p87 = scmp.eq.s32.totalorder %s20, 0
      %p88 = por %p86, %p87
      %p89 = scmp.ne.s32.totalorder %s75, %s76
      %p90 = scmp.eq.s32.totalorder %s21, 7
      %p91 = por %p89, %p90
      %p93 = scmp.ne.s32.totalorder %s76, %s92
      %p94 = scmp.eq.s32.totalorder %s21, 0
      %p95 = por %p93, %p94
      %s96 = ssub.s32 %s15, %s22
      %p97 = scmp.eq.s32.totalorder %s96, 0
      %s99 = sadd.s32 %s98, 1
      %s100 = scalar_select %p97, %s98, %s99
      %p103 = pneg %p97
      %p104 = scmp.eq.s32.totalorder %s15, 7
      %p105 = por %p103, %p104
      %p106 = scmp.ne.s32.totalorder %s98, %s101
      %p107 = scmp.eq.s32.totalorder %s15, 0
      %p108 = por %p106, %p107
      %p109 = scmp.ne.s32.totalorder %s98, %s101
      %p110 = scmp.eq.s32.totalorder %s20, 7
      %p111 = por %p109, %p110
      %p112 = scmp.ne.s32.totalorder %s101, %s102
      %p113 = scmp.eq.s32.totalorder %s20, 0
      %p114 = por %p112, %p113
      %p115 = scmp.ne.s32.totalorder %s101, %s102
      %p116 = scmp.eq.s32.totalorder %s21, 7
      %p117 = por %p115, %p116
      %p119 = scmp.ne.s32.totalorder %s102, %s118
      %p120 = scmp.eq.s32.totalorder %s21, 0
      %p121 = por %p119, %p120
      %p122 = scmp.le.s32.totalorder 1, %s15
      %p123 = scmp.lt.s32.totalorder %s15, 9
      %p124 = pnand %p122, %p123
      %p125 = pneg %p124
      // Predicated region
      $region9: #{mlp_decoder_forward.3} parent=5 // pred_check
        _
      $region10: #{mlp_decoder_forward.3} parent=5 // pred_check_branch
        %127 = sbr.rel (%p124) target = $region12
      $region11: #{mlp_decoder_forward.3} parent=5 // pred_region
        %s128 = ssub.s32 %s15, 1
        // Predicated region
        $region13: #{mlp_decoder_forward.3} parent=11 // pred_check
          %p129 = pneg %p36
        $region14: #{mlp_decoder_forward.3} parent=11 // pred_check_branch
          %131 = sbr.rel (%p129) target = $region16
        $region15: #{mlp_decoder_forward.3} parent=11 // pred_region
          _
        $region16: #{mlp_decoder_forward.3} parent=11 // pred_fallthru
          _
      $region12: #{mlp_decoder_forward.3} parent=5 // pred_fallthru
        _
      %p132 = scmp.lt.s32.totalorder %s15, 8
      // Predicated region
      $region17: #{mlp_decoder_forward.3} parent=5 // pred_check
        %p133 = pneg %p132
      $region18: #{mlp_decoder_forward.3} parent=5 // pred_check_branch
        %135 = sbr.rel (%p133) target = $region20
      $region19: #{mlp_decoder_forward.3} parent=5 // pred_region
        // Predicated region
        $region21: #{mlp_decoder_forward.3} parent=19 // pred_check
          %p136 = pneg %p56
        $region22: #{mlp_decoder_forward.3} parent=19 // pred_check_branch
          %138 = sbr.rel (%p136) target = $region24
        $region23: #{mlp_decoder_forward.3} parent=19 // pred_region
          %s139 = sand.u32 %s46, 1
          %s140 = scalar_lea.sflag [#allocation3], %s139
          %s141 = sand.u32 %s46, 1
          %s142 = smul.addr %s141, 2048
          %s143 = scalar_lea.vmem [#allocation2], %s142
          %s144 = smul.u32 4, %s15
          %s146 = ssub.s32 32768, 32768
          %147 = vsyncadd %s140, %s146
          %s148 = smul.addr %s144, 64
          %s149 = scalar_lea.hbm %s1, %s148
          %s150 = sshll.u32 %s143, 4
          %s151 = int_to_ptr.vmem [resolvable:$true] %s150
          %156 = dma.hbm_to_vmem [thread:$0]  %s149, 32768, %s151, %s140, 2048, 256, 16
        $region24: #{mlp_decoder_forward.3} parent=19 // pred_fallthru
          _
        // Predicated region
        $region25: #{mlp_decoder_forward.3} parent=19 // pred_check
          %p157 = pneg %p82
        $region26: #{mlp_decoder_forward.3} parent=19 // pred_check_branch
          %159 = sbr.rel (%p157) target = $region28
        $region27: #{mlp_decoder_forward.3} parent=19 // pred_region
          %s160 = sand.u32 %s72, 1
          %s161 = scalar_lea.sflag [#allocation5], %s160
          %s162 = sand.u32 %s72, 1
          %s163 = smul.addr %s162, 4
          %s164 = scalar_lea.vmem [#allocation4], %s163
          %s165 = smul.u32 4, %s15
          %s167 = ssub.s32 64, 64
          %168 = vsyncadd %s161, %s167
          %s169 = smul.addr %s165, 16
          %s170 = scalar_lea.hbm %s2, %s169
          %s172 = sshll.u32 %s164, 4
          %s173 = int_to_ptr.vmem [resolvable:$true] %s172
          %175 = dma.hbm_to_vmem [thread:$0]  %s170, 64, %s173, %s161
        $region28: #{mlp_decoder_forward.3} parent=19 // pred_fallthru
          _
      $region20: #{mlp_decoder_forward.3} parent=5 // pred_fallthru
        _
      %p176 = scmp.le.s32.totalorder 1, %s15
      %p177 = scmp.lt.s32.totalorder %s15, 9
      %p178 = pnand %p176, %p177
      %p179 = pneg %p178
      // Predicated region
      $region29: #{mlp_decoder_forward.3} parent=5 // pred_check
        _
      $region30: #{mlp_decoder_forward.3} parent=5 // pred_check_branch
        %181 = sbr.rel (%p178) target = $region32
      $region31: #{mlp_decoder_forward.3} parent=5 // pred_region
        %s182 = ssub.s32 %s15, 1
        %s183 = sand.u32 %s49, 1
        %s184 = scalar_lea.sflag [#allocation3], %s183
        %s185 = sand.u32 %s49, 1
        %s186 = smul.addr %s185, 2048
        %s187 = scalar_lea.vmem [#allocation2], %s186
        // Predicated region
        $region33: #{mlp_decoder_forward.3} parent=31 // pred_check
          %p188 = pneg %p62
        $region34: #{mlp_decoder_forward.3} parent=31 // pred_check_branch
          %190 = sbr.rel (%p188) target = $region36
        $region35: #{mlp_decoder_forward.3} parent=31 // pred_region
          %191 = dma.done %s184, 32768
        $region36: #{mlp_decoder_forward.3} parent=31 // pred_fallthru
          _
        %s192 = sand.u32 %s75, 1
        %s193 = scalar_lea.sflag [#allocation5], %s192
        %s194 = sand.u32 %s75, 1
        %s195 = smul.addr %s194, 4
        %s196 = scalar_lea.vmem [#allocation4], %s195
        // Predicated region
        $region37: #{mlp_decoder_forward.3} parent=31 // pred_check
          %p197 = pneg %p88
        $region38: #{mlp_decoder_forward.3} parent=31 // pred_check_branch
          %199 = sbr.rel (%p197) target = $region40
        $region39: #{mlp_decoder_forward.3} parent=31 // pred_region
          %200 = dma.done %s193, 64
        $region40: #{mlp_decoder_forward.3} parent=31 // pred_fallthru
          _
        %p201 = pneg %p36
        %p202 = pneg %p33
        %s203 = sand.u32 %s49, 1
        %s204 = scalar_lea.sflag [#allocation3], %s203
        %s205 = sand.u32 %s49, 1
        %s206 = smul.addr %s205, 2048
        %s207 = scalar_lea.vmem [#allocation2], %s206
        %p208 = pneg %p62
        %p209 = pneg %p59
        %s210 = sand.u32 %s75, 1
        %s211 = scalar_lea.sflag [#allocation5], %s210
        %s212 = sand.u32 %s75, 1
        %s213 = smul.addr %s212, 4
        %s214 = scalar_lea.vmem [#allocation4], %s213
        %p215 = pneg %p88
        %p216 = pneg %p85
        %p217 = pneg %p114
        %p218 = pneg %p111
        %s219 = smul.u32 4, %s20
        %p220 = scmp.lt.s32.totalorder %s219, 31
        %s221 = scalar_select %p220, %s219, 31
        %s222 = smul.addr %s221, 8
        %s223 = scalar_lea.vmem %s3, %s222
        %s224 = smul.u32 4, %s20
        %s225 = smul.u32 4, %s20
        %s226 = smul.u32 4, %s20
        %p227 = scmp.lt.s32.totalorder %s226, 31
        %s228 = scalar_select %p227, %s226, 31
        %s229 = smul.addr %s228, 8
        %s230 = scalar_lea.vmem %s3, %s229
        %s231 = smul.u32 4, %s20
        %v232 = vld [vmem:[%s0] sm:$0xff]
        %v233 = vld [vmem:[%s0 + $0x8] sm:$0xff]
        %v234 = vld [vmem:[%s0 + $0x10] sm:$0xff]
        %v235 = vld [vmem:[%s0 + $0x18] sm:$0xff]
        %v236 = vld [vmem:[%s187] sm:$0xff]
        %v237 = vld [vmem:[%s187 + $0x8] sm:$0xff]
        %v238 = vld [vmem:[%s187 + $0x10] sm:$0xff]
        %v239 = vld [vmem:[%s187 + $0x18] sm:$0xff]
        %v240 = vld [vmem:[%s187 + $0x20] sm:$0xff]
        %v241 = vld [vmem:[%s187 + $0x28] sm:$0xff]
        %v242 = vld [vmem:[%s187 + $0x30] sm:$0xff]
        %v243 = vld [vmem:[%s187 + $0x38] sm:$0xff]
        %v244 = vld [vmem:[%s187 + $0x40] sm:$0xff]
        %v245 = vld [vmem:[%s187 + $0x48] sm:$0xff]
        %v246 = vld [vmem:[%s187 + $0x50] sm:$0xff]
        %v247 = vld [vmem:[%s187 + $0x58] sm:$0xff]
        %v248 = vld [vmem:[%s187 + $0x60] sm:$0xff]
        %v249 = vld [vmem:[%s187 + $0x68] sm:$0xff]
        %v250 = vld [vmem:[%s187 + $0x70] sm:$0xff]
        %v251 = vld [vmem:[%s187 + $0x78] sm:$0xff]
        %v252 = vld [vmem:[%s187 + $0x80] sm:$0xff]
        %v253 = vld [vmem:[%s187 + $0x88] sm:$0xff]
        %v254 = vld [vmem:[%s187 + $0x90] sm:$0xff]
        %v255 = vld [vmem:[%s187 + $0x98] sm:$0xff]
        %v256 = vld [vmem:[%s187 + $0xa0] sm:$0xff]
        %v257 = vld [vmem:[%s187 + $0xa8] sm:$0xff]
        %v258 = vld [vmem:[%s187 + $0xb0] sm:$0xff]
        %v259 = vld [vmem:[%s187 + $0xb8] sm:$0xff]
        %v260 = vld [vmem:[%s187 + $0xc0] sm:$0xff]
        %v261 = vld [vmem:[%s187 + $0xc8] sm:$0xff]
        %v262 = vld [vmem:[%s187 + $0xd0] sm:$0xff]
        %v263 = vld [vmem:[%s187 + $0xd8] sm:$0xff]
        %v264 = vld [vmem:[%s187 + $0xe0] sm:$0xff]
        %v265 = vld [vmem:[%s187 + $0xe8] sm:$0xff]
        %v266 = vld [vmem:[%s187 + $0xf0] sm:$0xff]
        %v267 = vld [vmem:[%s187 + $0xf8] sm:$0xff]
        %v268 = vld [vmem:[%s187 + $0x100] sm:$0xff]
        %v269 = vld [vmem:[%s187 + $0x108] sm:$0xff]
        %v270 = vld [vmem:[%s187 + $0x110] sm:$0xff]
        %v271 = vld [vmem:[%s187 + $0x118] sm:$0xff]
        %v272 = vld [vmem:[%s187 + $0x120] sm:$0xff]
        %v273 = vld [vmem:[%s187 + $0x128] sm:$0xff]
        %v274 = vld [vmem:[%s187 + $0x130] sm:$0xff]
        %v275 = vld [vmem:[%s187 + $0x138] sm:$0xff]
        %v276 = vld [vmem:[%s187 + $0x140] sm:$0xff]
        %v277 = vld [vmem:[%s187 + $0x148] sm:$0xff]
        %v278 = vld [vmem:[%s187 + $0x150] sm:$0xff]
        %v279 = vld [vmem:[%s187 + $0x158] sm:$0xff]
        %v280 = vld [vmem:[%s187 + $0x160] sm:$0xff]
        %v281 = vld [vmem:[%s187 + $0x168] sm:$0xff]
        %v282 = vld [vmem:[%s187 + $0x170] sm:$0xff]
        %v283 = vld [vmem:[%s187 + $0x178] sm:$0xff]
        %v284 = vld [vmem:[%s187 + $0x180] sm:$0xff]
        %v285 = vld [vmem:[%s187 + $0x188] sm:$0xff]
        %v286 = vld [vmem:[%s187 + $0x190] sm:$0xff]
        %v287 = vld [vmem:[%s187 + $0x198] sm:$0xff]
        %v288 = vld [vmem:[%s187 + $0x1a0] sm:$0xff]
        %v289 = vld [vmem:[%s187 + $0x1a8] sm:$0xff]
        %v290 = vld [vmem:[%s187 + $0x1b0] sm:$0xff]
        %v291 = vld [vmem:[%s187 + $0x1b8] sm:$0xff]
        %v292 = vld [vmem:[%s187 + $0x1c0] sm:$0xff]
        %v293 = vld [vmem:[%s187 + $0x1c8] sm:$0xff]
        %v294 = vld [vmem:[%s187 + $0x1d0] sm:$0xff]
        %v295 = vld [vmem:[%s187 + $0x1d8] sm:$0xff]
        %v296 = vld [vmem:[%s187 + $0x1e0] sm:$0xff]
        %v297 = vld [vmem:[%s187 + $0x1e8] sm:$0xff]
        %v298 = vld [vmem:[%s187 + $0x1f0] sm:$0xff]
        %v299 = vld [vmem:[%s187 + $0x1f8] sm:$0xff]
        %v300 = vld [vmem:[%s187 + $0x200] sm:$0xff]
        %v301 = vld [vmem:[%s187 + $0x208] sm:$0xff]
        %v302 = vld [vmem:[%s187 + $0x210] sm:$0xff]
        %v303 = vld [vmem:[%s187 + $0x218] sm:$0xff]
        %v304 = vld [vmem:[%s187 + $0x220] sm:$0xff]
        %v305 = vld [vmem:[%s187 + $0x228] sm:$0xff]
        %v306 = vld [vmem:[%s187 + $0x230] sm:$0xff]
        %v307 = vld [vmem:[%s187 + $0x238] sm:$0xff]
        %v308 = vld [vmem:[%s187 + $0x240] sm:$0xff]
        %v309 = vld [vmem:[%s187 + $0x248] sm:$0xff]
        %v310 = vld [vmem:[%s187 + $0x250] sm:$0xff]
        %v311 = vld [vmem:[%s187 + $0x258] sm:$0xff]
        %v312 = vld [vmem:[%s187 + $0x260] sm:$0xff]
        %v313 = vld [vmem:[%s187 + $0x268] sm:$0xff]
        %v314 = vld [vmem:[%s187 + $0x270] sm:$0xff]
        %v315 = vld [vmem:[%s187 + $0x278] sm:$0xff]
        %v316 = vld [vmem:[%s187 + $0x280] sm:$0xff]
        %v317 = vld [vmem:[%s187 + $0x288] sm:$0xff]
        %v318 = vld [vmem:[%s187 + $0x290] sm:$0xff]
        %v319 = vld [vmem:[%s187 + $0x298] sm:$0xff]
        %v320 = vld [vmem:[%s187 + $0x2a0] sm:$0xff]
        %v321 = vld [vmem:[%s187 + $0x2a8] sm:$0xff]
        %v322 = vld [vmem:[%s187 + $0x2b0] sm:$0xff]
        %v323 = vld [vmem:[%s187 + $0x2b8] sm:$0xff]
        %v324 = vld [vmem:[%s187 + $0x2c0] sm:$0xff]
        %v325 = vld [vmem:[%s187 + $0x2c8] sm:$0xff]
        %v326 = vld [vmem:[%s187 + $0x2d0] sm:$0xff]
        %v327 = vld [vmem:[%s187 + $0x2d8] sm:$0xff]
        %v328 = vld [vmem:[%s187 + $0x2e0] sm:$0xff]
        %v329 = vld [vmem:[%s187 + $0x2e8] sm:$0xff]
        %v330 = vld [vmem:[%s187 + $0x2f0] sm:$0xff]
        %v331 = vld [vmem:[%s187 + $0x2f8] sm:$0xff]
        %v332 = vld [vmem:[%s187 + $0x300] sm:$0xff]
        %v333 = vld [vmem:[%s187 + $0x308] sm:$0xff]
        %v334 = vld [vmem:[%s187 + $0x310] sm:$0xff]
        %v335 = vld [vmem:[%s187 + $0x318] sm:$0xff]
        %v336 = vld [vmem:[%s187 + $0x320] sm:$0xff]
        %v337 = vld [vmem:[%s187 + $0x328] sm:$0xff]
        %v338 = vld [vmem:[%s187 + $0x330] sm:$0xff]
        %v339 = vld [vmem:[%s187 + $0x338] sm:$0xff]
        %v340 = vld [vmem:[%s187 + $0x340] sm:$0xff]
        %v341 = vld [vmem:[%s187 + $0x348] sm:$0xff]
        %v342 = vld [vmem:[%s187 + $0x350] sm:$0xff]
        %v343 = vld [vmem:[%s187 + $0x358] sm:$0xff]
        %v344 = vld [vmem:[%s187 + $0x360] sm:$0xff]
        %v345 = vld [vmem:[%s187 + $0x368] sm:$0xff]
        %v346 = vld [vmem:[%s187 + $0x370] sm:$0xff]
        %v347 = vld [vmem:[%s187 + $0x378] sm:$0xff]
        %v348 = vld [vmem:[%s187 + $0x380] sm:$0xff]
        %v349 = vld [vmem:[%s187 + $0x388] sm:$0xff]
        %v350 = vld [vmem:[%s187 + $0x390] sm:$0xff]
        %v351 = vld [vmem:[%s187 + $0x398] sm:$0xff]
        %v352 = vld [vmem:[%s187 + $0x3a0] sm:$0xff]
        %v353 = vld [vmem:[%s187 + $0x3a8] sm:$0xff]
        %v354 = vld [vmem:[%s187 + $0x3b0] sm:$0xff]
        %v355 = vld [vmem:[%s187 + $0x3b8] sm:$0xff]
        %v356 = vld [vmem:[%s187 + $0x3c0] sm:$0xff]
        %v357 = vld [vmem:[%s187 + $0x3c8] sm:$0xff]
        %v358 = vld [vmem:[%s187 + $0x3d0] sm:$0xff]
        %v359 = vld [vmem:[%s187 + $0x3d8] sm:$0xff]
        %v360 = vld [vmem:[%s187 + $0x3e0] sm:$0xff]
        %v361 = vld [vmem:[%s187 + $0x3e8] sm:$0xff]
        %v362 = vld [vmem:[%s187 + $0x3f0] sm:$0xff]
        %v363 = vld [vmem:[%s187 + $0x3f8] sm:$0xff]
        %v364 = vld [vmem:[%s187 + $0x400] sm:$0xff]
        %v365 = vld [vmem:[%s187 + $0x408] sm:$0xff]
        %v366 = vld [vmem:[%s187 + $0x410] sm:$0xff]
        %v367 = vld [vmem:[%s187 + $0x418] sm:$0xff]
        %v368 = vld [vmem:[%s187 + $0x420] sm:$0xff]
        %v369 = vld [vmem:[%s187 + $0x428] sm:$0xff]
        %v370 = vld [vmem:[%s187 + $0x430] sm:$0xff]
        %v371 = vld [vmem:[%s187 + $0x438] sm:$0xff]
        %v372 = vld [vmem:[%s187 + $0x440] sm:$0xff]
        %v373 = vld [vmem:[%s187 + $0x448] sm:$0xff]
        %v374 = vld [vmem:[%s187 + $0x450] sm:$0xff]
        %v375 = vld [vmem:[%s187 + $0x458] sm:$0xff]
        %v376 = vld [vmem:[%s187 + $0x460] sm:$0xff]
        %v377 = vld [vmem:[%s187 + $0x468] sm:$0xff]
        %v378 = vld [vmem:[%s187 + $0x470] sm:$0xff]
        %v379 = vld [vmem:[%s187 + $0x478] sm:$0xff]
        %v380 = vld [vmem:[%s187 + $0x480] sm:$0xff]
        %v381 = vld [vmem:[%s187 + $0x488] sm:$0xff]
        %v382 = vld [vmem:[%s187 + $0x490] sm:$0xff]
        %v383 = vld [vmem:[%s187 + $0x498] sm:$0xff]
        %v384 = vld [vmem:[%s187 + $0x4a0] sm:$0xff]
        %v385 = vld [vmem:[%s187 + $0x4a8] sm:$0xff]
        %v386 = vld [vmem:[%s187 + $0x4b0] sm:$0xff]
        %v387 = vld [vmem:[%s187 + $0x4b8] sm:$0xff]
        %v388 = vld [vmem:[%s187 + $0x4c0] sm:$0xff]
        %v389 = vld [vmem:[%s187 + $0x4c8] sm:$0xff]
        %v390 = vld [vmem:[%s187 + $0x4d0] sm:$0xff]
        %v391 = vld [vmem:[%s187 + $0x4d8] sm:$0xff]
        %v392 = vld [vmem:[%s187 + $0x4e0] sm:$0xff]
        %v393 = vld [vmem:[%s187 + $0x4e8] sm:$0xff]
        %v394 = vld [vmem:[%s187 + $0x4f0] sm:$0xff]
        %v395 = vld [vmem:[%s187 + $0x4f8] sm:$0xff]
        %v396 = vld [vmem:[%s187 + $0x500] sm:$0xff]
        %v397 = vld [vmem:[%s187 + $0x508] sm:$0xff]
        %v398 = vld [vmem:[%s187 + $0x510] sm:$0xff]
        %v399 = vld [vmem:[%s187 + $0x518] sm:$0xff]
        %v400 = vld [vmem:[%s187 + $0x520] sm:$0xff]
        %v401 = vld [vmem:[%s187 + $0x528] sm:$0xff]
        %v402 = vld [vmem:[%s187 + $0x530] sm:$0xff]
        %v403 = vld [vmem:[%s187 + $0x538] sm:$0xff]
        %v404 = vld [vmem:[%s187 + $0x540] sm:$0xff]
        %v405 = vld [vmem:[%s187 + $0x548] sm:$0xff]
        %v406 = vld [vmem:[%s187 + $0x550] sm:$0xff]
        %v407 = vld [vmem:[%s187 + $0x558] sm:$0xff]
        %v408 = vld [vmem:[%s187 + $0x560] sm:$0xff]
        %v409 = vld [vmem:[%s187 + $0x568] sm:$0xff]
        %v410 = vld [vmem:[%s187 + $0x570] sm:$0xff]
        %v411 = vld [vmem:[%s187 + $0x578] sm:$0xff]
        %v412 = vld [vmem:[%s187 + $0x580] sm:$0xff]
        %v413 = vld [vmem:[%s187 + $0x588] sm:$0xff]
        %v414 = vld [vmem:[%s187 + $0x590] sm:$0xff]
        %v415 = vld [vmem:[%s187 + $0x598] sm:$0xff]
        %v416 = vld [vmem:[%s187 + $0x5a0] sm:$0xff]
        %v417 = vld [vmem:[%s187 + $0x5a8] sm:$0xff]
        %v418 = vld [vmem:[%s187 + $0x5b0] sm:$0xff]
        %v419 = vld [vmem:[%s187 + $0x5b8] sm:$0xff]
        %v420 = vld [vmem:[%s187 + $0x5c0] sm:$0xff]
        %v421 = vld [vmem:[%s187 + $0x5c8] sm:$0xff]
        %v422 = vld [vmem:[%s187 + $0x5d0] sm:$0xff]
        %v423 = vld [vmem:[%s187 + $0x5d8] sm:$0xff]
        %v424 = vld [vmem:[%s187 + $0x5e0] sm:$0xff]
        %v425 = vld [vmem:[%s187 + $0x5e8] sm:$0xff]
        %v426 = vld [vmem:[%s187 + $0x5f0] sm:$0xff]
        %v427 = vld [vmem:[%s187 + $0x5f8] sm:$0xff]
        %v428 = vld [vmem:[%s187 + $0x600] sm:$0xff]
        %v429 = vld [vmem:[%s187 + $0x608] sm:$0xff]
        %v430 = vld [vmem:[%s187 + $0x610] sm:$0xff]
        %v431 = vld [vmem:[%s187 + $0x618] sm:$0xff]
        %v432 = vld [vmem:[%s187 + $0x620] sm:$0xff]
        %v433 = vld [vmem:[%s187 + $0x628] sm:$0xff]
        %v434 = vld [vmem:[%s187 + $0x630] sm:$0xff]
        %v435 = vld [vmem:[%s187 + $0x638] sm:$0xff]
        %v436 = vld [vmem:[%s187 + $0x640] sm:$0xff]
        %v437 = vld [vmem:[%s187 + $0x648] sm:$0xff]
        %v438 = vld [vmem:[%s187 + $0x650] sm:$0xff]
        %v439 = vld [vmem:[%s187 + $0x658] sm:$0xff]
        %v440 = vld [vmem:[%s187 + $0x660] sm:$0xff]
        %v441 = vld [vmem:[%s187 + $0x668] sm:$0xff]
        %v442 = vld [vmem:[%s187 + $0x670] sm:$0xff]
        %v443 = vld [vmem:[%s187 + $0x678] sm:$0xff]
        %v444 = vld [vmem:[%s187 + $0x680] sm:$0xff]
        %v445 = vld [vmem:[%s187 + $0x688] sm:$0xff]
        %v446 = vld [vmem:[%s187 + $0x690] sm:$0xff]
        %v447 = vld [vmem:[%s187 + $0x698] sm:$0xff]
        %v448 = vld [vmem:[%s187 + $0x6a0] sm:$0xff]
        %v449 = vld [vmem:[%s187 + $0x6a8] sm:$0xff]
        %v450 = vld [vmem:[%s187 + $0x6b0] sm:$0xff]
        %v451 = vld [vmem:[%s187 + $0x6b8] sm:$0xff]
        %v452 = vld [vmem:[%s187 + $0x6c0] sm:$0xff]
        %v453 = vld [vmem:[%s187 + $0x6c8] sm:$0xff]
        %v454 = vld [vmem:[%s187 + $0x6d0] sm:$0xff]
        %v455 = vld [vmem:[%s187 + $0x6d8] sm:$0xff]
        %v456 = vld [vmem:[%s187 + $0x6e0] sm:$0xff]
        %v457 = vld [vmem:[%s187 + $0x6e8] sm:$0xff]
        %v458 = vld [vmem:[%s187 + $0x6f0] sm:$0xff]
        %v459 = vld [vmem:[%s187 + $0x6f8] sm:$0xff]
        %v460 = vld [vmem:[%s187 + $0x700] sm:$0xff]
        %v461 = vld [vmem:[%s187 + $0x708] sm:$0xff]
        %v462 = vld [vmem:[%s187 + $0x710] sm:$0xff]
        %v463 = vld [vmem:[%s187 + $0x718] sm:$0xff]
        %v464 = vld [vmem:[%s187 + $0x720] sm:$0xff]
        %v465 = vld [vmem:[%s187 + $0x728] sm:$0xff]
        %v466 = vld [vmem:[%s187 + $0x730] sm:$0xff]
        %v467 = vld [vmem:[%s187 + $0x738] sm:$0xff]
        %v468 = vld [vmem:[%s187 + $0x740] sm:$0xff]
        %v469 = vld [vmem:[%s187 + $0x748] sm:$0xff]
        %v470 = vld [vmem:[%s187 + $0x750] sm:$0xff]
        %v471 = vld [vmem:[%s187 + $0x758] sm:$0xff]
        %v472 = vld [vmem:[%s187 + $0x760] sm:$0xff]
        %v473 = vld [vmem:[%s187 + $0x768] sm:$0xff]
        %v474 = vld [vmem:[%s187 + $0x770] sm:$0xff]
        %v475 = vld [vmem:[%s187 + $0x778] sm:$0xff]
        %v476 = vld [vmem:[%s187 + $0x780] sm:$0xff]
        %v477 = vld [vmem:[%s187 + $0x788] sm:$0xff]
        %v478 = vld [vmem:[%s187 + $0x790] sm:$0xff]
        %v479 = vld [vmem:[%s187 + $0x798] sm:$0xff]
        %v480 = vld [vmem:[%s187 + $0x7a0] sm:$0xff]
        %v481 = vld [vmem:[%s187 + $0x7a8] sm:$0xff]
        %v482 = vld [vmem:[%s187 + $0x7b0] sm:$0xff]
        %v483 = vld [vmem:[%s187 + $0x7b8] sm:$0xff]
        %v484 = vld [vmem:[%s187 + $0x7c0] sm:$0xff]
        %v485 = vld [vmem:[%s187 + $0x7c8] sm:$0xff]
        %v486 = vld [vmem:[%s187 + $0x7d0] sm:$0xff]
        %v487 = vld [vmem:[%s187 + $0x7d8] sm:$0xff]
        %v488 = vld [vmem:[%s187 + $0x7e0] sm:$0xff]
        %v489 = vld [vmem:[%s187 + $0x7e8] sm:$0xff]
        %v490 = vld [vmem:[%s187 + $0x7f0] sm:$0xff]
        %v491 = vld [vmem:[%s187 + $0x7f8] sm:$0xff]
        %v492 = vld [vmem:[%s196] sm:$0xf]
        %v494 = vlaneseq
        %v495 = vshrl.u32 %v494, 7
        %v496 = vsub.s32 0, %v495
        %v497 = vrot.slane %v492, %v496
        %v498 = vlaneseq
        %v499 = vshrl.u32 %v498, 7
        %v500 = vsub.s32 1, %v499
        %v501 = vrot.slane %v492, %v500
        %v502 = vlaneseq
        %v503 = vshrl.u32 %v502, 7
        %v504 = vsub.s32 2, %v503
        %v505 = vrot.slane %v492, %v504
        %v506 = vlaneseq
        %v507 = vshrl.u32 %v506, 7
        %v508 = vsub.s32 3, %v507
        %v509 = vrot.slane %v492, %v508
        %v518 = vunpack.c.l.b16 %v232
        %v519 = vunpack.c.h.b16 %v232
        %v520 = vunpack.c.l.b16 %v233
        %v521 = vunpack.c.h.b16 %v233
        %v522 = vunpack.c.l.b16 %v234
        %v523 = vunpack.c.h.b16 %v234
        %v524 = vunpack.c.l.b16 %v235
        %v525 = vunpack.c.h.b16 %v235
        %v526 = vpack.c.b16 %v518, %v518
        %v527 = vpack.c.b16 %v519, %v519
        %v528 = vpack.c.b16 %v520, %v520
        %v529 = vpack.c.b16 %v521, %v521
        %v530 = vpack.c.b16 %v522, %v522
        %v531 = vpack.c.b16 %v523, %v523
        %v532 = vpack.c.b16 %v524, %v524
        %v533 = vpack.c.b16 %v525, %v525
        %v798 = vunpack.c.l.b16 %v236
        %v799 = vunpack.c.h.b16 %v236
        %v800 = vunpack.c.l.b16 %v237
        %v801 = vunpack.c.h.b16 %v237
        %v802 = vunpack.c.l.b16 %v238
        %v803 = vunpack.c.h.b16 %v238
        %v804 = vunpack.c.l.b16 %v239
        %v805 = vunpack.c.h.b16 %v239
        %v806 = vunpack.c.l.b16 %v240
        %v807 = vunpack.c.h.b16 %v240
        %v808 = vunpack.c.l.b16 %v241
        %v809 = vunpack.c.h.b16 %v241
        %v810 = vunpack.c.l.b16 %v242
        %v811 = vunpack.c.h.b16 %v242
        %v812 = vunpack.c.l.b16 %v243
        %v813 = vunpack.c.h.b16 %v243
        %v814 = vunpack.c.l.b16 %v244
        %v815 = vunpack.c.h.b16 %v244
        %v816 = vunpack.c.l.b16 %v245
        %v817 = vunpack.c.h.b16 %v245
        %v818 = vunpack.c.l.b16 %v246
        %v819 = vunpack.c.h.b16 %v246
        %v820 = vunpack.c.l.b16 %v247
        %v821 = vunpack.c.h.b16 %v247
        %v822 = vunpack.c.l.b16 %v248
        %v823 = vunpack.c.h.b16 %v248
        %v824 = vunpack.c.l.b16 %v249
        %v825 = vunpack.c.h.b16 %v249
        %v826 = vunpack.c.l.b16 %v250
        %v827 = vunpack.c.h.b16 %v250
        %v828 = vunpack.c.l.b16 %v251
        %v829 = vunpack.c.h.b16 %v251
        %v830 = vunpack.c.l.b16 %v252
        %v831 = vunpack.c.h.b16 %v252
        %v832 = vunpack.c.l.b16 %v253
        %v833 = vunpack.c.h.b16 %v253
        %v834 = vunpack.c.l.b16 %v254
        %v835 = vunpack.c.h.b16 %v254
        %v836 = vunpack.c.l.b16 %v255
        %v837 = vunpack.c.h.b16 %v255
        %v838 = vunpack.c.l.b16 %v256
        %v839 = vunpack.c.h.b16 %v256
        %v840 = vunpack.c.l.b16 %v257
        %v841 = vunpack.c.h.b16 %v257
        %v842 = vunpack.c.l.b16 %v258
        %v843 = vunpack.c.h.b16 %v258
        %v844 = vunpack.c.l.b16 %v259
        %v845 = vunpack.c.h.b16 %v259
        %v846 = vunpack.c.l.b16 %v260
        %v847 = vunpack.c.h.b16 %v260
        %v848 = vunpack.c.l.b16 %v261
        %v849 = vunpack.c.h.b16 %v261
        %v850 = vunpack.c.l.b16 %v262
        %v851 = vunpack.c.h.b16 %v262
        %v852 = vunpack.c.l.b16 %v263
        %v853 = vunpack.c.h.b16 %v263
        %v854 = vunpack.c.l.b16 %v264
        %v855 = vunpack.c.h.b16 %v264
        %v856 = vunpack.c.l.b16 %v265
        %v857 = vunpack.c.h.b16 %v265
        %v858 = vunpack.c.l.b16 %v266
        %v859 = vunpack.c.h.b16 %v266
        %v860 = vunpack.c.l.b16 %v267
        %v861 = vunpack.c.h.b16 %v267
        %v862 = vunpack.c.l.b16 %v268
        %v863 = vunpack.c.h.b16 %v268
        %v864 = vunpack.c.l.b16 %v269
        %v865 = vunpack.c.h.b16 %v269
        %v866 = vunpack.c.l.b16 %v270
        %v867 = vunpack.c.h.b16 %v270
        %v868 = vunpack.c.l.b16 %v271
        %v869 = vunpack.c.h.b16 %v271
        %v870 = vunpack.c.l.b16 %v272
        %v871 = vunpack.c.h.b16 %v272
        %v872 = vunpack.c.l.b16 %v273
        %v873 = vunpack.c.h.b16 %v273
        %v874 = vunpack.c.l.b16 %v274
        %v875 = vunpack.c.h.b16 %v274
        %v876 = vunpack.c.l.b16 %v275
        %v877 = vunpack.c.h.b16 %v275
        %v878 = vunpack.c.l.b16 %v276
        %v879 = vunpack.c.h.b16 %v276
        %v880 = vunpack.c.l.b16 %v277
        %v881 = vunpack.c.h.b16 %v277
        %v882 = vunpack.c.l.b16 %v278
        %v883 = vunpack.c.h.b16 %v278
        %v884 = vunpack.c.l.b16 %v279
        %v885 = vunpack.c.h.b16 %v279
        %v886 = vunpack.c.l.b16 %v280
        %v887 = vunpack.c.h.b16 %v280
        %v888 = vunpack.c.l.b16 %v281
        %v889 = vunpack.c.h.b16 %v281
        %v890 = vunpack.c.l.b16 %v282
        %v891 = vunpack.c.h.b16 %v282
        %v892 = vunpack.c.l.b16 %v283
        %v893 = vunpack.c.h.b16 %v283
        %v894 = vunpack.c.l.b16 %v284
        %v895 = vunpack.c.h.b16 %v284
        %v896 = vunpack.c.l.b16 %v285
        %v897 = vunpack.c.h.b16 %v285
        %v898 = vunpack.c.l.b16 %v286
        %v899 = vunpack.c.h.b16 %v286
        %v900 = vunpack.c.l.b16 %v287
        %v901 = vunpack.c.h.b16 %v287
        %v902 = vunpack.c.l.b16 %v288
        %v903 = vunpack.c.h.b16 %v288
        %v904 = vunpack.c.l.b16 %v289
        %v905 = vunpack.c.h.b16 %v289
        %v906 = vunpack.c.l.b16 %v290
        %v907 = vunpack.c.h.b16 %v290
        %v908 = vunpack.c.l.b16 %v291
        %v909 = vunpack.c.h.b16 %v291
        %v910 = vunpack.c.l.b16 %v292
        %v911 = vunpack.c.h.b16 %v292
        %v912 = vunpack.c.l.b16 %v293
        %v913 = vunpack.c.h.b16 %v293
        %v914 = vunpack.c.l.b16 %v294
        %v915 = vunpack.c.h.b16 %v294
        %v916 = vunpack.c.l.b16 %v295
        %v917 = vunpack.c.h.b16 %v295
        %v918 = vunpack.c.l.b16 %v296
        %v919 = vunpack.c.h.b16 %v296
        %v920 = vunpack.c.l.b16 %v297
        %v921 = vunpack.c.h.b16 %v297
        %v922 = vunpack.c.l.b16 %v298
        %v923 = vunpack.c.h.b16 %v298
        %v924 = vunpack.c.l.b16 %v299
        %v925 = vunpack.c.h.b16 %v299
        %v926 = vunpack.c.l.b16 %v300
        %v927 = vunpack.c.h.b16 %v300
        %v928 = vunpack.c.l.b16 %v301
        %v929 = vunpack.c.h.b16 %v301
        %v930 = vunpack.c.l.b16 %v302
        %v931 = vunpack.c.h.b16 %v302
        %v932 = vunpack.c.l.b16 %v303
        %v933 = vunpack.c.h.b16 %v303
        %v934 = vunpack.c.l.b16 %v304
        %v935 = vunpack.c.h.b16 %v304
        %v936 = vunpack.c.l.b16 %v305
        %v937 = vunpack.c.h.b16 %v305
        %v938 = vunpack.c.l.b16 %v306
        %v939 = vunpack.c.h.b16 %v306
        %v940 = vunpack.c.l.b16 %v307
        %v941 = vunpack.c.h.b16 %v307
        %v942 = vunpack.c.l.b16 %v308
        %v943 = vunpack.c.h.b16 %v308
        %v944 = vunpack.c.l.b16 %v309
        %v945 = vunpack.c.h.b16 %v309
        %v946 = vunpack.c.l.b16 %v310
        %v947 = vunpack.c.h.b16 %v310
        %v948 = vunpack.c.l.b16 %v311
        %v949 = vunpack.c.h.b16 %v311
        %v950 = vunpack.c.l.b16 %v312
        %v951 = vunpack.c.h.b16 %v312
        %v952 = vunpack.c.l.b16 %v313
        %v953 = vunpack.c.h.b16 %v313
        %v954 = vunpack.c.l.b16 %v314
        %v955 = vunpack.c.h.b16 %v314
        %v956 = vunpack.c.l.b16 %v315
        %v957 = vunpack.c.h.b16 %v315
        %v958 = vunpack.c.l.b16 %v316
        %v959 = vunpack.c.h.b16 %v316
        %v960 = vunpack.c.l.b16 %v317
        %v961 = vunpack.c.h.b16 %v317
        %v962 = vunpack.c.l.b16 %v318
        %v963 = vunpack.c.h.b16 %v318
        %v964 = vunpack.c.l.b16 %v319
        %v965 = vunpack.c.h.b16 %v319
        %v966 = vunpack.c.l.b16 %v320
        %v967 = vunpack.c.h.b16 %v320
        %v968 = vunpack.c.l.b16 %v321
        %v969 = vunpack.c.h.b16 %v321
        %v970 = vunpack.c.l.b16 %v322
        %v971 = vunpack.c.h.b16 %v322
        %v972 = vunpack.c.l.b16 %v323
        %v973 = vunpack.c.h.b16 %v323
        %v974 = vunpack.c.l.b16 %v324
        %v975 = vunpack.c.h.b16 %v324
        %v976 = vunpack.c.l.b16 %v325
        %v977 = vunpack.c.h.b16 %v325
        %v978 = vunpack.c.l.b16 %v326
        %v979 = vunpack.c.h.b16 %v326
        %v980 = vunpack.c.l.b16 %v327
        %v981 = vunpack.c.h.b16 %v327
        %v982 = vunpack.c.l.b16 %v328
        %v983 = vunpack.c.h.b16 %v328
        %v984 = vunpack.c.l.b16 %v329
        %v985 = vunpack.c.h.b16 %v329
        %v986 = vunpack.c.l.b16 %v330
        %v987 = vunpack.c.h.b16 %v330
        %v988 = vunpack.c.l.b16 %v331
        %v989 = vunpack.c.h.b16 %v331
        %v990 = vunpack.c.l.b16 %v332
        %v991 = vunpack.c.h.b16 %v332
        %v992 = vunpack.c.l.b16 %v333
        %v993 = vunpack.c.h.b16 %v333
        %v994 = vunpack.c.l.b16 %v334
        %v995 = vunpack.c.h.b16 %v334
        %v996 = vunpack.c.l.b16 %v335
        %v997 = vunpack.c.h.b16 %v335
        %v998 = vunpack.c.l.b16 %v336
        %v999 = vunpack.c.h.b16 %v336
        %v1000 = vunpack.c.l.b16 %v337
        %v1001 = vunpack.c.h.b16 %v337
        %v1002 = vunpack.c.l.b16 %v338
        %v1003 = vunpack.c.h.b16 %v338
        %v1004 = vunpack.c.l.b16 %v339
        %v1005 = vunpack.c.h.b16 %v339
        %v1006 = vunpack.c.l.b16 %v340
        %v1007 = vunpack.c.h.b16 %v340
        %v1008 = vunpack.c.l.b16 %v341
        %v1009 = vunpack.c.h.b16 %v341
        %v1010 = vunpack.c.l.b16 %v342
        %v1011 = vunpack.c.h.b16 %v342
        %v1012 = vunpack.c.l.b16 %v343
        %v1013 = vunpack.c.h.b16 %v343
        %v1014 = vunpack.c.l.b16 %v344
        %v1015 = vunpack.c.h.b16 %v344
        %v1016 = vunpack.c.l.b16 %v345
        %v1017 = vunpack.c.h.b16 %v345
        %v1018 = vunpack.c.l.b16 %v346
        %v1019 = vunpack.c.h.b16 %v346
        %v1020 = vunpack.c.l.b16 %v347
        %v1021 = vunpack.c.h.b16 %v347
        %v1022 = vunpack.c.l.b16 %v348
        %v1023 = vunpack.c.h.b16 %v348
        %v1024 = vunpack.c.l.b16 %v349
        %v1025 = vunpack.c.h.b16 %v349
        %v1026 = vunpack.c.l.b16 %v350
        %v1027 = vunpack.c.h.b16 %v350
        %v1028 = vunpack.c.l.b16 %v351
        %v1029 = vunpack.c.h.b16 %v351
        %v1030 = vunpack.c.l.b16 %v352
        %v1031 = vunpack.c.h.b16 %v352
        %v1032 = vunpack.c.l.b16 %v353
        %v1033 = vunpack.c.h.b16 %v353
        %v1034 = vunpack.c.l.b16 %v354
        %v1035 = vunpack.c.h.b16 %v354
        %v1036 = vunpack.c.l.b16 %v355
        %v1037 = vunpack.c.h.b16 %v355
        %v1038 = vunpack.c.l.b16 %v356
        %v1039 = vunpack.c.h.b16 %v356
        %v1040 = vunpack.c.l.b16 %v357
        %v1041 = vunpack.c.h.b16 %v357
        %v1042 = vunpack.c.l.b16 %v358
        %v1043 = vunpack.c.h.b16 %v358
        %v1044 = vunpack.c.l.b16 %v359
        %v1045 = vunpack.c.h.b16 %v359
        %v1046 = vunpack.c.l.b16 %v360
        %v1047 = vunpack.c.h.b16 %v360
        %v1048 = vunpack.c.l.b16 %v361
        %v1049 = vunpack.c.h.b16 %v361
        %v1050 = vunpack.c.l.b16 %v362
        %v1051 = vunpack.c.h.b16 %v362
        %v1052 = vunpack.c.l.b16 %v363
        %v1053 = vunpack.c.h.b16 %v363
        %v1054 = vunpack.c.l.b16 %v364
        %v1055 = vunpack.c.h.b16 %v364
        %v1056 = vunpack.c.l.b16 %v365
        %v1057 = vunpack.c.h.b16 %v365
        %v1058 = vunpack.c.l.b16 %v366
        %v1059 = vunpack.c.h.b16 %v366
        %v1060 = vunpack.c.l.b16 %v367
        %v1061 = vunpack.c.h.b16 %v367
        %v1062 = vunpack.c.l.b16 %v368
        %v1063 = vunpack.c.h.b16 %v368
        %v1064 = vunpack.c.l.b16 %v369
        %v1065 = vunpack.c.h.b16 %v369
        %v1066 = vunpack.c.l.b16 %v370
        %v1067 = vunpack.c.h.b16 %v370
        %v1068 = vunpack.c.l.b16 %v371
        %v1069 = vunpack.c.h.b16 %v371
        %v1070 = vunpack.c.l.b16 %v372
        %v1071 = vunpack.c.h.b16 %v372
        %v1072 = vunpack.c.l.b16 %v373
        %v1073 = vunpack.c.h.b16 %v373
        %v1074 = vunpack.c.l.b16 %v374
        %v1075 = vunpack.c.h.b16 %v374
        %v1076 = vunpack.c.l.b16 %v375
        %v1077 = vunpack.c.h.b16 %v375
        %v1078 = vunpack.c.l.b16 %v376
        %v1079 = vunpack.c.h.b16 %v376
        %v1080 = vunpack.c.l.b16 %v377
        %v1081 = vunpack.c.h.b16 %v377
        %v1082 = vunpack.c.l.b16 %v378
        %v1083 = vunpack.c.h.b16 %v378
        %v1084 = vunpack.c.l.b16 %v379
        %v1085 = vunpack.c.h.b16 %v379
        %v1086 = vunpack.c.l.b16 %v380
        %v1087 = vunpack.c.h.b16 %v380
        %v1088 = vunpack.c.l.b16 %v381
        %v1089 = vunpack.c.h.b16 %v381
        %v1090 = vunpack.c.l.b16 %v382
        %v1091 = vunpack.c.h.b16 %v382
        %v1092 = vunpack.c.l.b16 %v383
        %v1093 = vunpack.c.h.b16 %v383
        %v1094 = vunpack.c.l.b16 %v384
        %v1095 = vunpack.c.h.b16 %v384
        %v1096 = vunpack.c.l.b16 %v385
        %v1097 = vunpack.c.h.b16 %v385
        %v1098 = vunpack.c.l.b16 %v386
        %v1099 = vunpack.c.h.b16 %v386
        %v1100 = vunpack.c.l.b16 %v387
        %v1101 = vunpack.c.h.b16 %v387
        %v1102 = vunpack.c.l.b16 %v388
        %v1103 = vunpack.c.h.b16 %v388
        %v1104 = vunpack.c.l.b16 %v389
        %v1105 = vunpack.c.h.b16 %v389
        %v1106 = vunpack.c.l.b16 %v390
        %v1107 = vunpack.c.h.b16 %v390
        %v1108 = vunpack.c.l.b16 %v391
        %v1109 = vunpack.c.h.b16 %v391
        %v1110 = vunpack.c.l.b16 %v392
        %v1111 = vunpack.c.h.b16 %v392
        %v1112 = vunpack.c.l.b16 %v393
        %v1113 = vunpack.c.h.b16 %v393
        %v1114 = vunpack.c.l.b16 %v394
        %v1115 = vunpack.c.h.b16 %v394
        %v1116 = vunpack.c.l.b16 %v395
        %v1117 = vunpack.c.h.b16 %v395
        %v1118 = vunpack.c.l.b16 %v396
        %v1119 = vunpack.c.h.b16 %v396
        %v1120 = vunpack.c.l.b16 %v397
        %v1121 = vunpack.c.h.b16 %v397
        %v1122 = vunpack.c.l.b16 %v398
        %v1123 = vunpack.c.h.b16 %v398
        %v1124 = vunpack.c.l.b16 %v399
        %v1125 = vunpack.c.h.b16 %v399
        %v1126 = vunpack.c.l.b16 %v400
        %v1127 = vunpack.c.h.b16 %v400
        %v1128 = vunpack.c.l.b16 %v401
        %v1129 = vunpack.c.h.b16 %v401
        %v1130 = vunpack.c.l.b16 %v402
        %v1131 = vunpack.c.h.b16 %v402
        %v1132 = vunpack.c.l.b16 %v403
        %v1133 = vunpack.c.h.b16 %v403
        %v1134 = vunpack.c.l.b16 %v404
        %v1135 = vunpack.c.h.b16 %v404
        %v1136 = vunpack.c.l.b16 %v405
        %v1137 = vunpack.c.h.b16 %v405
        %v1138 = vunpack.c.l.b16 %v406
        %v1139 = vunpack.c.h.b16 %v406
        %v1140 = vunpack.c.l.b16 %v407
        %v1141 = vunpack.c.h.b16 %v407
        %v1142 = vunpack.c.l.b16 %v408
        %v1143 = vunpack.c.h.b16 %v408
        %v1144 = vunpack.c.l.b16 %v409
        %v1145 = vunpack.c.h.b16 %v409
        %v1146 = vunpack.c.l.b16 %v410
        %v1147 = vunpack.c.h.b16 %v410
        %v1148 = vunpack.c.l.b16 %v411
        %v1149 = vunpack.c.h.b16 %v411
        %v1150 = vunpack.c.l.b16 %v412
        %v1151 = vunpack.c.h.b16 %v412
        %v1152 = vunpack.c.l.b16 %v413
        %v1153 = vunpack.c.h.b16 %v413
        %v1154 = vunpack.c.l.b16 %v414
        %v1155 = vunpack.c.h.b16 %v414
        %v1156 = vunpack.c.l.b16 %v415
        %v1157 = vunpack.c.h.b16 %v415
        %v1158 = vunpack.c.l.b16 %v416
        %v1159 = vunpack.c.h.b16 %v416
        %v1160 = vunpack.c.l.b16 %v417
        %v1161 = vunpack.c.h.b16 %v417
        %v1162 = vunpack.c.l.b16 %v418
        %v1163 = vunpack.c.h.b16 %v418
        %v1164 = vunpack.c.l.b16 %v419
        %v1165 = vunpack.c.h.b16 %v419
        %v1166 = vunpack.c.l.b16 %v420
        %v1167 = vunpack.c.h.b16 %v420
        %v1168 = vunpack.c.l.b16 %v421
        %v1169 = vunpack.c.h.b16 %v421
        %v1170 = vunpack.c.l.b16 %v422
        %v1171 = vunpack.c.h.b16 %v422
        %v1172 = vunpack.c.l.b16 %v423
        %v1173 = vunpack.c.h.b16 %v423
        %v1174 = vunpack.c.l.b16 %v424
        %v1175 = vunpack.c.h.b16 %v424
        %v1176 = vunpack.c.l.b16 %v425
        %v1177 = vunpack.c.h.b16 %v425
        %v1178 = vunpack.c.l.b16 %v426
        %v1179 = vunpack.c.h.b16 %v426
        %v1180 = vunpack.c.l.b16 %v427
        %v1181 = vunpack.c.h.b16 %v427
        %v1182 = vunpack.c.l.b16 %v428
        %v1183 = vunpack.c.h.b16 %v428
        %v1184 = vunpack.c.l.b16 %v429
        %v1185 = vunpack.c.h.b16 %v429
        %v1186 = vunpack.c.l.b16 %v430
        %v1187 = vunpack.c.h.b16 %v430
        %v1188 = vunpack.c.l.b16 %v431
        %v1189 = vunpack.c.h.b16 %v431
        %v1190 = vunpack.c.l.b16 %v432
        %v1191 = vunpack.c.h.b16 %v432
        %v1192 = vunpack.c.l.b16 %v433
        %v1193 = vunpack.c.h.b16 %v433
        %v1194 = vunpack.c.l.b16 %v434
        %v1195 = vunpack.c.h.b16 %v434
        %v1196 = vunpack.c.l.b16 %v435
        %v1197 = vunpack.c.h.b16 %v435
        %v1198 = vunpack.c.l.b16 %v436
        %v1199 = vunpack.c.h.b16 %v436
        %v1200 = vunpack.c.l.b16 %v437
        %v1201 = vunpack.c.h.b16 %v437
        %v1202 = vunpack.c.l.b16 %v438
        %v1203 = vunpack.c.h.b16 %v438
        %v1204 = vunpack.c.l.b16 %v439
        %v1205 = vunpack.c.h.b16 %v439
        %v1206 = vunpack.c.l.b16 %v440
        %v1207 = vunpack.c.h.b16 %v440
        %v1208 = vunpack.c.l.b16 %v441
        %v1209 = vunpack.c.h.b16 %v441
        %v1210 = vunpack.c.l.b16 %v442
        %v1211 = vunpack.c.h.b16 %v442
        %v1212 = vunpack.c.l.b16 %v443
        %v1213 = vunpack.c.h.b16 %v443
        %v1214 = vunpack.c.l.b16 %v444
        %v1215 = vunpack.c.h.b16 %v444
        %v1216 = vunpack.c.l.b16 %v445
        %v1217 = vunpack.c.h.b16 %v445
        %v1218 = vunpack.c.l.b16 %v446
        %v1219 = vunpack.c.h.b16 %v446
        %v1220 = vunpack.c.l.b16 %v447
        %v1221 = vunpack.c.h.b16 %v447
        %v1222 = vunpack.c.l.b16 %v448
        %v1223 = vunpack.c.h.b16 %v448
        %v1224 = vunpack.c.l.b16 %v449
        %v1225 = vunpack.c.h.b16 %v449
        %v1226 = vunpack.c.l.b16 %v450
        %v1227 = vunpack.c.h.b16 %v450
        %v1228 = vunpack.c.l.b16 %v451
        %v1229 = vunpack.c.h.b16 %v451
        %v1230 = vunpack.c.l.b16 %v452
        %v1231 = vunpack.c.h.b16 %v452
        %v1232 = vunpack.c.l.b16 %v453
        %v1233 = vunpack.c.h.b16 %v453
        %v1234 = vunpack.c.l.b16 %v454
        %v1235 = vunpack.c.h.b16 %v454
        %v1236 = vunpack.c.l.b16 %v455
        %v1237 = vunpack.c.h.b16 %v455
        %v1238 = vunpack.c.l.b16 %v456
        %v1239 = vunpack.c.h.b16 %v456
        %v1240 = vunpack.c.l.b16 %v457
        %v1241 = vunpack.c.h.b16 %v457
        %v1242 = vunpack.c.l.b16 %v458
        %v1243 = vunpack.c.h.b16 %v458
        %v1244 = vunpack.c.l.b16 %v459
        %v1245 = vunpack.c.h.b16 %v459
        %v1246 = vunpack.c.l.b16 %v460
        %v1247 = vunpack.c.h.b16 %v460
        %v1248 = vunpack.c.l.b16 %v461
        %v1249 = vunpack.c.h.b16 %v461
        %v1250 = vunpack.c.l.b16 %v462
        %v1251 = vunpack.c.h.b16 %v462
        %v1252 = vunpack.c.l.b16 %v463
        %v1253 = vunpack.c.h.b16 %v463
        %v1254 = vunpack.c.l.b16 %v464
        %v1255 = vunpack.c.h.b16 %v464
        %v1256 = vunpack.c.l.b16 %v465
        %v1257 = vunpack.c.h.b16 %v465
        %v1258 = vunpack.c.l.b16 %v466
        %v1259 = vunpack.c.h.b16 %v466
        %v1260 = vunpack.c.l.b16 %v467
        %v1261 = vunpack.c.h.b16 %v467
        %v1262 = vunpack.c.l.b16 %v468
        %v1263 = vunpack.c.h.b16 %v468
        %v1264 = vunpack.c.l.b16 %v469
        %v1265 = vunpack.c.h.b16 %v469
        %v1266 = vunpack.c.l.b16 %v470
        %v1267 = vunpack.c.h.b16 %v470
        %v1268 = vunpack.c.l.b16 %v471
        %v1269 = vunpack.c.h.b16 %v471
        %v1270 = vunpack.c.l.b16 %v472
        %v1271 = vunpack.c.h.b16 %v472
        %v1272 = vunpack.c.l.b16 %v473
        %v1273 = vunpack.c.h.b16 %v473
        %v1274 = vunpack.c.l.b16 %v474
        %v1275 = vunpack.c.h.b16 %v474
        %v1276 = vunpack.c.l.b16 %v475
        %v1277 = vunpack.c.h.b16 %v475
        %v1278 = vunpack.c.l.b16 %v476
        %v1279 = vunpack.c.h.b16 %v476
        %v1280 = vunpack.c.l.b16 %v477
        %v1281 = vunpack.c.h.b16 %v477
        %v1282 = vunpack.c.l.b16 %v478
        %v1283 = vunpack.c.h.b16 %v478
        %v1284 = vunpack.c.l.b16 %v479
        %v1285 = vunpack.c.h.b16 %v479
        %v1286 = vunpack.c.l.b16 %v480
        %v1287 = vunpack.c.h.b16 %v480
        %v1288 = vunpack.c.l.b16 %v481
        %v1289 = vunpack.c.h.b16 %v481
        %v1290 = vunpack.c.l.b16 %v482
        %v1291 = vunpack.c.h.b16 %v482
        %v1292 = vunpack.c.l.b16 %v483
        %v1293 = vunpack.c.h.b16 %v483
        %v1294 = vunpack.c.l.b16 %v484
        %v1295 = vunpack.c.h.b16 %v484
        %v1296 = vunpack.c.l.b16 %v485
        %v1297 = vunpack.c.h.b16 %v485
        %v1298 = vunpack.c.l.b16 %v486
        %v1299 = vunpack.c.h.b16 %v486
        %v1300 = vunpack.c.l.b16 %v487
        %v1301 = vunpack.c.h.b16 %v487
        %v1302 = vunpack.c.l.b16 %v488
        %v1303 = vunpack.c.h.b16 %v488
        %v1304 = vunpack.c.l.b16 %v489
        %v1305 = vunpack.c.h.b16 %v489
        %v1306 = vunpack.c.l.b16 %v490
        %v1307 = vunpack.c.h.b16 %v490
        %v1308 = vunpack.c.l.b16 %v491
        %v1309 = vunpack.c.h.b16 %v491
        %v1310 = vpack.c.b16 %v802, %v798
        %v1311 = vpack.c.b16 %v803, %v799
        %v1312 = vpack.c.b16 %v804, %v800
        %v1313 = vpack.c.b16 %v805, %v801
        %v1314 = vpack.c.b16 %v810, %v806
        %v1315 = vpack.c.b16 %v811, %v807
        %v1316 = vpack.c.b16 %v812, %v808
        %v1317 = vpack.c.b16 %v813, %v809
        %v1318 = vpack.c.b16 %v818, %v814
        %v1319 = vpack.c.b16 %v819, %v815
        %v1320 = vpack.c.b16 %v820, %v816
        %v1321 = vpack.c.b16 %v821, %v817
        %v1322 = vpack.c.b16 %v826, %v822
        %v1323 = vpack.c.b16 %v827, %v823
        %v1324 = vpack.c.b16 %v828, %v824
        %v1325 = vpack.c.b16 %v829, %v825
        %v1326 = vpack.c.b16 %v834, %v830
        %v1327 = vpack.c.b16 %v835, %v831
        %v1328 = vpack.c.b16 %v836, %v832
        %v1329 = vpack.c.b16 %v837, %v833
        %v1330 = vpack.c.b16 %v842, %v838
        %v1331 = vpack.c.b16 %v843, %v839
        %v1332 = vpack.c.b16 %v844, %v840
        %v1333 = vpack.c.b16 %v845, %v841
        %v1334 = vpack.c.b16 %v850, %v846
        %v1335 = vpack.c.b16 %v851, %v847
        %v1336 = vpack.c.b16 %v852, %v848
        %v1337 = vpack.c.b16 %v853, %v849
        %v1338 = vpack.c.b16 %v858, %v854
        %v1339 = vpack.c.b16 %v859, %v855
        %v1340 = vpack.c.b16 %v860, %v856
        %v1341 = vpack.c.b16 %v861, %v857
        %v1342 = vpack.c.b16 %v866, %v862
        %v1343 = vpack.c.b16 %v867, %v863
        %v1344 = vpack.c.b16 %v868, %v864
        %v1345 = vpack.c.b16 %v869, %v865
        %v1346 = vpack.c.b16 %v874, %v870
        %v1347 = vpack.c.b16 %v875, %v871
        %v1348 = vpack.c.b16 %v876, %v872
        %v1349 = vpack.c.b16 %v877, %v873
        %v1350 = vpack.c.b16 %v882, %v878
        %v1351 = vpack.c.b16 %v883, %v879
        %v1352 = vpack.c.b16 %v884, %v880
        %v1353 = vpack.c.b16 %v885, %v881
        %v1354 = vpack.c.b16 %v890, %v886
        %v1355 = vpack.c.b16 %v891, %v887
        %v1356 = vpack.c.b16 %v892, %v888
        %v1357 = vpack.c.b16 %v893, %v889
        %v1358 = vpack.c.b16 %v898, %v894
        %v1359 = vpack.c.b16 %v899, %v895
        %v1360 = vpack.c.b16 %v900, %v896
        %v1361 = vpack.c.b16 %v901, %v897
        %v1362 = vpack.c.b16 %v906, %v902
        %v1363 = vpack.c.b16 %v907, %v903
        %v1364 = vpack.c.b16 %v908, %v904
        %v1365 = vpack.c.b16 %v909, %v905
        %v1366 = vpack.c.b16 %v914, %v910
        %v1367 = vpack.c.b16 %v915, %v911
        %v1368 = vpack.c.b16 %v916, %v912
        %v1369 = vpack.c.b16 %v917, %v913
        %v1370 = vpack.c.b16 %v922, %v918
        %v1371 = vpack.c.b16 %v923, %v919
        %v1372 = vpack.c.b16 %v924, %v920
        %v1373 = vpack.c.b16 %v925, %v921
        %v1374 = vpack.c.b16 %v930, %v926
        %v1375 = vpack.c.b16 %v931, %v927
        %v1376 = vpack.c.b16 %v932, %v928
        %v1377 = vpack.c.b16 %v933, %v929
        %v1378 = vpack.c.b16 %v938, %v934
        %v1379 = vpack.c.b16 %v939, %v935
        %v1380 = vpack.c.b16 %v940, %v936
        %v1381 = vpack.c.b16 %v941, %v937
        %v1382 = vpack.c.b16 %v946, %v942
        %v1383 = vpack.c.b16 %v947, %v943
        %v1384 = vpack.c.b16 %v948, %v944
        %v1385 = vpack.c.b16 %v949, %v945
        %v1386 = vpack.c.b16 %v954, %v950
        %v1387 = vpack.c.b16 %v955, %v951
        %v1388 = vpack.c.b16 %v956, %v952
        %v1389 = vpack.c.b16 %v957, %v953
        %v1390 = vpack.c.b16 %v962, %v958
        %v1391 = vpack.c.b16 %v963, %v959
        %v1392 = vpack.c.b16 %v964, %v960
        %v1393 = vpack.c.b16 %v965, %v961
        %v1394 = vpack.c.b16 %v970, %v966
        %v1395 = vpack.c.b16 %v971, %v967
        %v1396 = vpack.c.b16 %v972, %v968
        %v1397 = vpack.c.b16 %v973, %v969
        %v1398 = vpack.c.b16 %v978, %v974
        %v1399 = vpack.c.b16 %v979, %v975
        %v1400 = vpack.c.b16 %v980, %v976
        %v1401 = vpack.c.b16 %v981, %v977
        %v1402 = vpack.c.b16 %v986, %v982
        %v1403 = vpack.c.b16 %v987, %v983
        %v1404 = vpack.c.b16 %v988, %v984
        %v1405 = vpack.c.b16 %v989, %v985
        %v1406 = vpack.c.b16 %v994, %v990
        %v1407 = vpack.c.b16 %v995, %v991
        %v1408 = vpack.c.b16 %v996, %v992
        %v1409 = vpack.c.b16 %v997, %v993
        %v1410 = vpack.c.b16 %v1002, %v998
        %v1411 = vpack.c.b16 %v1003, %v999
        %v1412 = vpack.c.b16 %v1004, %v1000
        %v1413 = vpack.c.b16 %v1005, %v1001
        %v1414 = vpack.c.b16 %v1010, %v1006
        %v1415 = vpack.c.b16 %v1011, %v1007
        %v1416 = vpack.c.b16 %v1012, %v1008
        %v1417 = vpack.c.b16 %v1013, %v1009
        %v1418 = vpack.c.b16 %v1018, %v1014
        %v1419 = vpack.c.b16 %v1019, %v1015
        %v1420 = vpack.c.b16 %v1020, %v1016
        %v1421 = vpack.c.b16 %v1021, %v1017
        %v1422 = vpack.c.b16 %v1026, %v1022
        %v1423 = vpack.c.b16 %v1027, %v1023
        %v1424 = vpack.c.b16 %v1028, %v1024
        %v1425 = vpack.c.b16 %v1029, %v1025
        %v1426 = vpack.c.b16 %v1034, %v1030
        %v1427 = vpack.c.b16 %v1035, %v1031
        %v1428 = vpack.c.b16 %v1036, %v1032
        %v1429 = vpack.c.b16 %v1037, %v1033
        %v1430 = vpack.c.b16 %v1042, %v1038
        %v1431 = vpack.c.b16 %v1043, %v1039
        %v1432 = vpack.c.b16 %v1044, %v1040
        %v1433 = vpack.c.b16 %v1045, %v1041
        %v1434 = vpack.c.b16 %v1050, %v1046
        %v1435 = vpack.c.b16 %v1051, %v1047
        %v1436 = vpack.c.b16 %v1052, %v1048
        %v1437 = vpack.c.b16 %v1053, %v1049
        %v1438 = vpack.c.b16 %v1058, %v1054
        %v1439 = vpack.c.b16 %v1059, %v1055
        %v1440 = vpack.c.b16 %v1060, %v1056
        %v1441 = vpack.c.b16 %v1061, %v1057
        %v1442 = vpack.c.b16 %v1066, %v1062
        %v1443 = vpack.c.b16 %v1067, %v1063
        %v1444 = vpack.c.b16 %v1068, %v1064
        %v1445 = vpack.c.b16 %v1069, %v1065
        %v1446 = vpack.c.b16 %v1074, %v1070
        %v1447 = vpack.c.b16 %v1075, %v1071
        %v1448 = vpack.c.b16 %v1076, %v1072
        %v1449 = vpack.c.b16 %v1077, %v1073
        %v1450 = vpack.c.b16 %v1082, %v1078
        %v1451 = vpack.c.b16 %v1083, %v1079
        %v1452 = vpack.c.b16 %v1084, %v1080
        %v1453 = vpack.c.b16 %v1085, %v1081
        %v1454 = vpack.c.b16 %v1090, %v1086
        %v1455 = vpack.c.b16 %v1091, %v1087
        %v1456 = vpack.c.b16 %v1092, %v1088
        %v1457 = vpack.c.b16 %v1093, %v1089
        %v1458 = vpack.c.b16 %v1098, %v1094
        %v1459 = vpack.c.b16 %v1099, %v1095
        %v1460 = vpack.c.b16 %v1100, %v1096
        %v1461 = vpack.c.b16 %v1101, %v1097
        %v1462 = vpack.c.b16 %v1106, %v1102
        %v1463 = vpack.c.b16 %v1107, %v1103
        %v1464 = vpack.c.b16 %v1108, %v1104
        %v1465 = vpack.c.b16 %v1109, %v1105
        %v1466 = vpack.c.b16 %v1114, %v1110
        %v1467 = vpack.c.b16 %v1115, %v1111
        %v1468 = vpack.c.b16 %v1116, %v1112
        %v1469 = vpack.c.b16 %v1117, %v1113
        %v1470 = vpack.c.b16 %v1122, %v1118
        %v1471 = vpack.c.b16 %v1123, %v1119
        %v1472 = vpack.c.b16 %v1124, %v1120
        %v1473 = vpack.c.b16 %v1125, %v1121
        %v1474 = vpack.c.b16 %v1130, %v1126
        %v1475 = vpack.c.b16 %v1131, %v1127
        %v1476 = vpack.c.b16 %v1132, %v1128
        %v1477 = vpack.c.b16 %v1133, %v1129
        %v1478 = vpack.c.b16 %v1138, %v1134
        %v1479 = vpack.c.b16 %v1139, %v1135
        %v1480 = vpack.c.b16 %v1140, %v1136
        %v1481 = vpack.c.b16 %v1141, %v1137
        %v1482 = vpack.c.b16 %v1146, %v1142
        %v1483 = vpack.c.b16 %v1147, %v1143
        %v1484 = vpack.c.b16 %v1148, %v1144
        %v1485 = vpack.c.b16 %v1149, %v1145
        %v1486 = vpack.c.b16 %v1154, %v1150
        %v1487 = vpack.c.b16 %v1155, %v1151
        %v1488 = vpack.c.b16 %v1156, %v1152
        %v1489 = vpack.c.b16 %v1157, %v1153
        %v1490 = vpack.c.b16 %v1162, %v1158
        %v1491 = vpack.c.b16 %v1163, %v1159
        %v1492 = vpack.c.b16 %v1164, %v1160
        %v1493 = vpack.c.b16 %v1165, %v1161
        %v1494 = vpack.c.b16 %v1170, %v1166
        %v1495 = vpack.c.b16 %v1171, %v1167
        %v1496 = vpack.c.b16 %v1172, %v1168
        %v1497 = vpack.c.b16 %v1173, %v1169
        %v1498 = vpack.c.b16 %v1178, %v1174
        %v1499 = vpack.c.b16 %v1179, %v1175
        %v1500 = vpack.c.b16 %v1180, %v1176
        %v1501 = vpack.c.b16 %v1181, %v1177
        %v1502 = vpack.c.b16 %v1186, %v1182
        %v1503 = vpack.c.b16 %v1187, %v1183
        %v1504 = vpack.c.b16 %v1188, %v1184
        %v1505 = vpack.c.b16 %v1189, %v1185
        %v1506 = vpack.c.b16 %v1194, %v1190
        %v1507 = vpack.c.b16 %v1195, %v1191
        %v1508 = vpack.c.b16 %v1196, %v1192
        %v1509 = vpack.c.b16 %v1197, %v1193
        %v1510 = vpack.c.b16 %v1202, %v1198
        %v1511 = vpack.c.b16 %v1203, %v1199
        %v1512 = vpack.c.b16 %v1204, %v1200
        %v1513 = vpack.c.b16 %v1205, %v1201
        %v1514 = vpack.c.b16 %v1210, %v1206
        %v1515 = vpack.c.b16 %v1211, %v1207
        %v1516 = vpack.c.b16 %v1212, %v1208
        %v1517 = vpack.c.b16 %v1213, %v1209
        %v1518 = vpack.c.b16 %v1218, %v1214
        %v1519 = vpack.c.b16 %v1219, %v1215
        %v1520 = vpack.c.b16 %v1220, %v1216
        %v1521 = vpack.c.b16 %v1221, %v1217
        %v1522 = vpack.c.b16 %v1226, %v1222
        %v1523 = vpack.c.b16 %v1227, %v1223
        %v1524 = vpack.c.b16 %v1228, %v1224
        %v1525 = vpack.c.b16 %v1229, %v1225
        %v1526 = vpack.c.b16 %v1234, %v1230
        %v1527 = vpack.c.b16 %v1235, %v1231
        %v1528 = vpack.c.b16 %v1236, %v1232
        %v1529 = vpack.c.b16 %v1237, %v1233
        %v1530 = vpack.c.b16 %v1242, %v1238
        %v1531 = vpack.c.b16 %v1243, %v1239
        %v1532 = vpack.c.b16 %v1244, %v1240
        %v1533 = vpack.c.b16 %v1245, %v1241
        %v1534 = vpack.c.b16 %v1250, %v1246
        %v1535 = vpack.c.b16 %v1251, %v1247
        %v1536 = vpack.c.b16 %v1252, %v1248
        %v1537 = vpack.c.b16 %v1253, %v1249
        %v1538 = vpack.c.b16 %v1258, %v1254
        %v1539 = vpack.c.b16 %v1259, %v1255
        %v1540 = vpack.c.b16 %v1260, %v1256
        %v1541 = vpack.c.b16 %v1261, %v1257
        %v1542 = vpack.c.b16 %v1266, %v1262
        %v1543 = vpack.c.b16 %v1267, %v1263
        %v1544 = vpack.c.b16 %v1268, %v1264
        %v1545 = vpack.c.b16 %v1269, %v1265
        %v1546 = vpack.c.b16 %v1274, %v1270
        %v1547 = vpack.c.b16 %v1275, %v1271
        %v1548 = vpack.c.b16 %v1276, %v1272
        %v1549 = vpack.c.b16 %v1277, %v1273
        %v1550 = vpack.c.b16 %v1282, %v1278
        %v1551 = vpack.c.b16 %v1283, %v1279
        %v1552 = vpack.c.b16 %v1284, %v1280
        %v1553 = vpack.c.b16 %v1285, %v1281
        %v1554 = vpack.c.b16 %v1290, %v1286
        %v1555 = vpack.c.b16 %v1291, %v1287
        %v1556 = vpack.c.b16 %v1292, %v1288
        %v1557 = vpack.c.b16 %v1293, %v1289
        %v1558 = vpack.c.b16 %v1298, %v1294
        %v1559 = vpack.c.b16 %v1299, %v1295
        %v1560 = vpack.c.b16 %v1300, %v1296
        %v1561 = vpack.c.b16 %v1301, %v1297
        %v1562 = vpack.c.b16 %v1306, %v1302
        %v1563 = vpack.c.b16 %v1307, %v1303
        %v1564 = vpack.c.b16 %v1308, %v1304
        %v1565 = vpack.c.b16 %v1309, %v1305
        %1822 = vmatprep.subr.bf16.mxu0 %v1311
        %1823 = vmatpush1.bf16.msra.mxu0 %v1310
        %1824 = vmatprep.subr.bf16.mxu0 %v1315
        %1825 = vmatpush1.bf16.msra.mxu0 %v1314
        %1826 = vmatprep.subr.bf16.mxu0 %v1319
        %1827 = vmatpush1.bf16.msra.mxu0 %v1318
        %1828 = vmatprep.subr.bf16.mxu0 %v1323
        %1829 = vmatpush1.bf16.msra.mxu0 %v1322
        %1830 = vmatprep.subr.bf16.mxu0 %v1327
        %1831 = vmatpush1.bf16.msra.mxu0 %v1326
        %1832 = vmatprep.subr.bf16.mxu0 %v1331
        %1833 = vmatpush1.bf16.msra.mxu0 %v1330
        %1834 = vmatprep.subr.bf16.mxu0 %v1335
        %1835 = vmatpush1.bf16.msra.mxu0 %v1334
        %1836 = vmatprep.subr.bf16.mxu0 %v1339
        %1837 = vmatpush1.bf16.msra.mxu0 %v1338
        %1838 = vmatprep.subr.bf16.mxu0 %v1343
        %1839 = vmatpush1.bf16.msra.mxu0 %v1342
        %1840 = vmatprep.subr.bf16.mxu0 %v1347
        %1841 = vmatpush1.bf16.msra.mxu0 %v1346
        %1842 = vmatprep.subr.bf16.mxu0 %v1351
        %1843 = vmatpush1.bf16.msra.mxu0 %v1350
        %1844 = vmatprep.subr.bf16.mxu0 %v1355
        %1845 = vmatpush1.bf16.msra.mxu0 %v1354
        %1846 = vmatprep.subr.bf16.mxu0 %v1359
        %1847 = vmatpush1.bf16.msra.mxu0 %v1358
        %1848 = vmatprep.subr.bf16.mxu0 %v1363
        %1849 = vmatpush1.bf16.msra.mxu0 %v1362
        %1850 = vmatprep.subr.bf16.mxu0 %v1367
        %1851 = vmatpush1.bf16.msra.mxu0 %v1366
        %1852 = vmatprep.subr.bf16.mxu0 %v1371
        %1853 = vmatpush1.bf16.msra.mxu0 %v1370
        %1854 = vmatprep.mubr.bf16.mxu0 %v527
        %1855 = vmatmul.mubr.bf16.gmra.mrb[0].mxu0 %v526
        %v1856 = vpop.f32.mrb[0].mxu0
        %v1857 = vadd.f32 %v497, %v1856
        %v1858 = vpop.f32.mrb[0].mxu0
        %v1859 = vadd.f32 %v501, %v1858
        %v1860 = vpop.f32.mrb[0].mxu0
        %v1861 = vpop.f32.mrb[0].mxu0
        %1862 = vdwg.mxu0
        %1863 = vmatprep.subr.bf16.mxu0 %v1375
        %1864 = vmatpush1.bf16.msra.mxu0 %v1374
        %1865 = vmatprep.subr.bf16.mxu0 %v1379
        %1866 = vmatpush1.bf16.msra.mxu0 %v1378
        %1867 = vmatprep.subr.bf16.mxu0 %v1383
        %1868 = vmatpush1.bf16.msra.mxu0 %v1382
        %1869 = vmatprep.subr.bf16.mxu0 %v1387
        %1870 = vmatpush1.bf16.msra.mxu0 %v1386
        %1871 = vmatprep.subr.bf16.mxu0 %v1391
        %1872 = vmatpush1.bf16.msra.mxu0 %v1390
        %1873 = vmatprep.subr.bf16.mxu0 %v1395
        %1874 = vmatpush1.bf16.msra.mxu0 %v1394
        %1875 = vmatprep.subr.bf16.mxu0 %v1399
        %1876 = vmatpush1.bf16.msra.mxu0 %v1398
        %1877 = vmatprep.subr.bf16.mxu0 %v1403
        %1878 = vmatpush1.bf16.msra.mxu0 %v1402
        %1879 = vmatprep.subr.bf16.mxu0 %v1407
        %1880 = vmatpush1.bf16.msra.mxu0 %v1406
        %1881 = vmatprep.subr.bf16.mxu0 %v1411
        %1882 = vmatpush1.bf16.msra.mxu0 %v1410
        %1883 = vmatprep.subr.bf16.mxu0 %v1415
        %1884 = vmatpush1.bf16.msra.mxu0 %v1414
        %1885 = vmatprep.subr.bf16.mxu0 %v1419
        %1886 = vmatpush1.bf16.msra.mxu0 %v1418
        %1887 = vmatprep.subr.bf16.mxu0 %v1423
        %1888 = vmatpush1.bf16.msra.mxu0 %v1422
        %1889 = vmatprep.subr.bf16.mxu0 %v1427
        %1890 = vmatpush1.bf16.msra.mxu0 %v1426
        %1891 = vmatprep.subr.bf16.mxu0 %v1431
        %1892 = vmatpush1.bf16.msra.mxu0 %v1430
        %1893 = vmatprep.subr.bf16.mxu0 %v1435
        %1894 = vmatpush1.bf16.msra.mxu0 %v1434
        %1895 = vmatprep.mubr.bf16.mxu0 %v529
        %1896 = vmatmul.mubr.bf16.gmra.mrb[0].mxu0 %v528
        %v1897 = vpop.f32.mrb[0].mxu0
        %v1898 = vadd.f32 %v1857, %v1897
        %v1899 = vpop.f32.mrb[0].mxu0
        %v1900 = vadd.f32 %v1859, %v1899
        %v1901 = vpop.f32.mrb[0].mxu0
        %v1902 = vpop.f32.mrb[0].mxu0
        %1903 = vdwg.mxu0
        %1904 = vmatprep.subr.bf16.mxu0 %v1439
        %1905 = vmatpush1.bf16.msra.mxu0 %v1438
        %1906 = vmatprep.subr.bf16.mxu0 %v1443
        %1907 = vmatpush1.bf16.msra.mxu0 %v1442
        %1908 = vmatprep.subr.bf16.mxu0 %v1447
        %1909 = vmatpush1.bf16.msra.mxu0 %v1446
        %1910 = vmatprep.subr.bf16.mxu0 %v1451
        %1911 = vmatpush1.bf16.msra.mxu0 %v1450
        %1912 = vmatprep.subr.bf16.mxu0 %v1455
        %1913 = vmatpush1.bf16.msra.mxu0 %v1454
        %1914 = vmatprep.subr.bf16.mxu0 %v1459
        %1915 = vmatpush1.bf16.msra.mxu0 %v1458
        %1916 = vmatprep.subr.bf16.mxu0 %v1463
        %1917 = vmatpush1.bf16.msra.mxu0 %v1462
        %1918 = vmatprep.subr.bf16.mxu0 %v1467
        %1919 = vmatpush1.bf16.msra.mxu0 %v1466
        %1920 = vmatprep.subr.bf16.mxu0 %v1471
        %1921 = vmatpush1.bf16.msra.mxu0 %v1470
        %1922 = vmatprep.subr.bf16.mxu0 %v1475
        %1923 = vmatpush1.bf16.msra.mxu0 %v1474
        %1924 = vmatprep.subr.bf16.mxu0 %v1479
        %1925 = vmatpush1.bf16.msra.mxu0 %v1478
        %1926 = vmatprep.subr.bf16.mxu0 %v1483
        %1927 = vmatpush1.bf16.msra.mxu0 %v1482
        %1928 = vmatprep.subr.bf16.mxu0 %v1487
        %1929 = vmatpush1.bf16.msra.mxu0 %v1486
        %1930 = vmatprep.subr.bf16.mxu0 %v1491
        %1931 = vmatpush1.bf16.msra.mxu0 %v1490
        %1932 = vmatprep.subr.bf16.mxu0 %v1495
        %1933 = vmatpush1.bf16.msra.mxu0 %v1494
        %1934 = vmatprep.subr.bf16.mxu0 %v1499
        %1935 = vmatpush1.bf16.msra.mxu0 %v1498
        %1936 = vmatprep.mubr.bf16.mxu0 %v531
        %1937 = vmatmul.mubr.bf16.gmra.mrb[0].mxu0 %v530
        %v1938 = vpop.f32.mrb[0].mxu0
        %v1939 = vadd.f32 %v1898, %v1938
        %v1940 = vpop.f32.mrb[0].mxu0
        %v1941 = vadd.f32 %v1900, %v1940
        %v1942 = vpop.f32.mrb[0].mxu0
        %v1943 = vpop.f32.mrb[0].mxu0
        %1944 = vdwg.mxu0
        %1945 = vmatprep.subr.bf16.mxu0 %v1503
        %1946 = vmatpush1.bf16.msra.mxu0 %v1502
        %1947 = vmatprep.subr.bf16.mxu0 %v1507
        %1948 = vmatpush1.bf16.msra.mxu0 %v1506
        %1949 = vmatprep.subr.bf16.mxu0 %v1511
        %1950 = vmatpush1.bf16.msra.mxu0 %v1510
        %1951 = vmatprep.subr.bf16.mxu0 %v1515
        %1952 = vmatpush1.bf16.msra.mxu0 %v1514
        %1953 = vmatprep.subr.bf16.mxu0 %v1519
        %1954 = vmatpush1.bf16.msra.mxu0 %v1518
        %1955 = vmatprep.subr.bf16.mxu0 %v1523
        %1956 = vmatpush1.bf16.msra.mxu0 %v1522
        %1957 = vmatprep.subr.bf16.mxu0 %v1527
        %1958 = vmatpush1.bf16.msra.mxu0 %v1526
        %1959 = vmatprep.subr.bf16.mxu0 %v1531
        %1960 = vmatpush1.bf16.msra.mxu0 %v1530
        %1961 = vmatprep.subr.bf16.mxu0 %v1535
        %1962 = vmatpush1.bf16.msra.mxu0 %v1534
        %1963 = vmatprep.subr.bf16.mxu0 %v1539
        %1964 = vmatpush1.bf16.msra.mxu0 %v1538
        %1965 = vmatprep.subr.bf16.mxu0 %v1543
        %1966 = vmatpush1.bf16.msra.mxu0 %v1542
        %1967 = vmatprep.subr.bf16.mxu0 %v1547
        %1968 = vmatpush1.bf16.msra.mxu0 %v1546
        %1969 = vmatprep.subr.bf16.mxu0 %v1551
        %1970 = vmatpush1.bf16.msra.mxu0 %v1550
        %1971 = vmatprep.subr.bf16.mxu0 %v1555
        %1972 = vmatpush1.bf16.msra.mxu0 %v1554
        %1973 = vmatprep.subr.bf16.mxu0 %v1559
        %1974 = vmatpush1.bf16.msra.mxu0 %v1558
        %1975 = vmatprep.subr.bf16.mxu0 %v1563
        %1976 = vmatpush1.bf16.msra.mxu0 %v1562
        %1977 = vmatprep.mubr.bf16.mxu0 %v533
        %1978 = vmatmul.mubr.bf16.gmra.mrb[0].mxu0 %v532
        %v1979 = vpop.f32.mrb[0].mxu0
        %v1980 = vadd.f32 %v1939, %v1979
        %v1981 = vpop.f32.mrb[0].mxu0
        %v1982 = vadd.f32 %v1941, %v1981
        %v1983 = vpop.f32.mrb[0].mxu0
        %v1984 = vpop.f32.mrb[0].mxu0
        %1985 = vdwg.mxu0
        %1986 = vmatprep.subr.bf16.mxu0 %v1313
        %1987 = vmatpush1.bf16.msra.mxu0 %v1312
        %1988 = vmatprep.subr.bf16.mxu0 %v1317
        %1989 = vmatpush1.bf16.msra.mxu0 %v1316
        %1990 = vmatprep.subr.bf16.mxu0 %v1321
        %1991 = vmatpush1.bf16.msra.mxu0 %v1320
        %1992 = vmatprep.subr.bf16.mxu0 %v1325
        %1993 = vmatpush1.bf16.msra.mxu0 %v1324
        %1994 = vmatprep.subr.bf16.mxu0 %v1329
        %1995 = vmatpush1.bf16.msra.mxu0 %v1328
        %1996 = vmatprep.subr.bf16.mxu0 %v1333
        %1997 = vmatpush1.bf16.msra.mxu0 %v1332
        %1998 = vmatprep.subr.bf16.mxu0 %v1337
        %1999 = vmatpush1.bf16.msra.mxu0 %v1336
        %2000 = vmatprep.subr.bf16.mxu0 %v1341
        %2001 = vmatpush1.bf16.msra.mxu0 %v1340
        %2002 = vmatprep.subr.bf16.mxu0 %v1345
        %2003 = vmatpush1.bf16.msra.mxu0 %v1344
        %2004 = vmatprep.subr.bf16.mxu0 %v1349
        %2005 = vmatpush1.bf16.msra.mxu0 %v1348
        %2006 = vmatprep.subr.bf16.mxu0 %v1353
        %2007 = vmatpush1.bf16.msra.mxu0 %v1352
        %2008 = vmatprep.subr.bf16.mxu0 %v1357
        %2009 = vmatpush1.bf16.msra.mxu0 %v1356
        %2010 = vmatprep.subr.bf16.mxu0 %v1361
        %2011 = vmatpush1.bf16.msra.mxu0 %v1360
        %2012 = vmatprep.subr.bf16.mxu0 %v1365
        %2013 = vmatpush1.bf16.msra.mxu0 %v1364
        %2014 = vmatprep.subr.bf16.mxu0 %v1369
        %2015 = vmatpush1.bf16.msra.mxu0 %v1368
        %2016 = vmatprep.subr.bf16.mxu0 %v1373
        %2017 = vmatpush1.bf16.msra.mxu0 %v1372
        %2018 = vmatprep.mubr.bf16.mxu0 %v527
        %2019 = vmatmul.mubr.bf16.gmra.mrb[0].mxu0 %v526
        %v2020 = vpop.f32.mrb[0].mxu0
        %v2021 = vadd.f32 %v505, %v2020
        %v2022 = vpop.f32.mrb[0].mxu0
        %v2023 = vadd.f32 %v509, %v2022
        %v2024 = vpop.f32.mrb[0].mxu0
        %v2025 = vpop.f32.mrb[0].mxu0
        %2026 = vdwg.mxu0
        %2027 = vmatprep.subr.bf16.mxu0 %v1377
        %2028 = vmatpush1.bf16.msra.mxu0 %v1376
        %2029 = vmatprep.subr.bf16.mxu0 %v1381
        %2030 = vmatpush1.bf16.msra.mxu0 %v1380
        %2031 = vmatprep.subr.bf16.mxu0 %v1385
        %2032 = vmatpush1.bf16.msra.mxu0 %v1384
        %2033 = vmatprep.subr.bf16.mxu0 %v1389
        %2034 = vmatpush1.bf16.msra.mxu0 %v1388
        %2035 = vmatprep.subr.bf16.mxu0 %v1393
        %2036 = vmatpush1.bf16.msra.mxu0 %v1392
        %2037 = vmatprep.subr.bf16.mxu0 %v1397
        %2038 = vmatpush1.bf16.msra.mxu0 %v1396
        %2039 = vmatprep.subr.bf16.mxu0 %v1401
        %2040 = vmatpush1.bf16.msra.mxu0 %v1400
        %2041 = vmatprep.subr.bf16.mxu0 %v1405
        %2042 = vmatpush1.bf16.msra.mxu0 %v1404
        %2043 = vmatprep.subr.bf16.mxu0 %v1409
        %2044 = vmatpush1.bf16.msra.mxu0 %v1408
        %2045 = vmatprep.subr.bf16.mxu0 %v1413
        %2046 = vmatpush1.bf16.msra.mxu0 %v1412
        %2047 = vmatprep.subr.bf16.mxu0 %v1417
        %2048 = vmatpush1.bf16.msra.mxu0 %v1416
        %2049 = vmatprep.subr.bf16.mxu0 %v1421
        %2050 = vmatpush1.bf16.msra.mxu0 %v1420
        %2051 = vmatprep.subr.bf16.mxu0 %v1425
        %2052 = vmatpush1.bf16.msra.mxu0 %v1424
        %2053 = vmatprep.subr.bf16.mxu0 %v1429
        %2054 = vmatpush1.bf16.msra.mxu0 %v1428
        %2055 = vmatprep.subr.bf16.mxu0 %v1433
        %2056 = vmatpush1.bf16.msra.mxu0 %v1432
        %2057 = vmatprep.subr.bf16.mxu0 %v1437
        %2058 = vmatpush1.bf16.msra.mxu0 %v1436
        %2059 = vmatprep.mubr.bf16.mxu0 %v529
        %2060 = vmatmul.mubr.bf16.gmra.mrb[0].mxu0 %v528
        %v2061 = vpop.f32.mrb[0].mxu0
        %v2062 = vadd.f32 %v2021, %v2061
        %v2063 = vpop.f32.mrb[0].mxu0
        %v2064 = vadd.f32 %v2023, %v2063
        %v2065 = vpop.f32.mrb[0].mxu0
        %v2066 = vpop.f32.mrb[0].mxu0
        %2067 = vdwg.mxu0
        %2068 = vmatprep.subr.bf16.mxu0 %v1441
        %2069 = vmatpush1.bf16.msra.mxu0 %v1440
        %2070 = vmatprep.subr.bf16.mxu0 %v1445
        %2071 = vmatpush1.bf16.msra.mxu0 %v1444
        %2072 = vmatprep.subr.bf16.mxu0 %v1449
        %2073 = vmatpush1.bf16.msra.mxu0 %v1448
        %2074 = vmatprep.subr.bf16.mxu0 %v1453
        %2075 = vmatpush1.bf16.msra.mxu0 %v1452
        %2076 = vmatprep.subr.bf16.mxu0 %v1457
        %2077 = vmatpush1.bf16.msra.mxu0 %v1456
        %2078 = vmatprep.subr.bf16.mxu0 %v1461
        %2079 = vmatpush1.bf16.msra.mxu0 %v1460
        %2080 = vmatprep.subr.bf16.mxu0 %v1465
        %2081 = vmatpush1.bf16.msra.mxu0 %v1464
        %2082 = vmatprep.subr.bf16.mxu0 %v1469
        %2083 = vmatpush1.bf16.msra.mxu0 %v1468
        %2084 = vmatprep.subr.bf16.mxu0 %v1473
        %2085 = vmatpush1.bf16.msra.mxu0 %v1472
        %2086 = vmatprep.subr.bf16.mxu0 %v1477
        %2087 = vmatpush1.bf16.msra.mxu0 %v1476
        %2088 = vmatprep.subr.bf16.mxu0 %v1481
        %2089 = vmatpush1.bf16.msra.mxu0 %v1480
        %2090 = vmatprep.subr.bf16.mxu0 %v1485
        %2091 = vmatpush1.bf16.msra.mxu0 %v1484
        %2092 = vmatprep.subr.bf16.mxu0 %v1489
        %2093 = vmatpush1.bf16.msra.mxu0 %v1488
        %2094 = vmatprep.subr.bf16.mxu0 %v1493
        %2095 = vmatpush1.bf16.msra.mxu0 %v1492
        %2096 = vmatprep.subr.bf16.mxu0 %v1497
        %2097 = vmatpush1.bf16.msra.mxu0 %v1496
        %2098 = vmatprep.subr.bf16.mxu0 %v1501
        %2099 = vmatpush1.bf16.msra.mxu0 %v1500
        %2100 = vmatprep.mubr.bf16.mxu0 %v531
        %2101 = vmatmul.mubr.bf16.gmra.mrb[0].mxu0 %v530
        %v2102 = vpop.f32.mrb[0].mxu0
        %v2103 = vadd.f32 %v2062, %v2102
        %v2104 = vpop.f32.mrb[0].mxu0
        %v2105 = vadd.f32 %v2064, %v2104
        %v2106 = vpop.f32.mrb[0].mxu0
        %v2107 = vpop.f32.mrb[0].mxu0
        %2108 = vdwg.mxu0
        %2109 = vmatprep.subr.bf16.mxu0 %v1505
        %2110 = vmatpush1.bf16.msra.mxu0 %v1504
        %2111 = vmatprep.subr.bf16.mxu0 %v1509
        %2112 = vmatpush1.bf16.msra.mxu0 %v1508
        %2113 = vmatprep.subr.bf16.mxu0 %v1513
        %2114 = vmatpush1.bf16.msra.mxu0 %v1512
        %2115 = vmatprep.subr.bf16.mxu0 %v1517
        %2116 = vmatpush1.bf16.msra.mxu0 %v1516
        %2117 = vmatprep.subr.bf16.mxu0 %v1521
        %2118 = vmatpush1.bf16.msra.mxu0 %v1520
        %2119 = vmatprep.subr.bf16.mxu0 %v1525
        %2120 = vmatpush1.bf16.msra.mxu0 %v1524
        %2121 = vmatprep.subr.bf16.mxu0 %v1529
        %2122 = vmatpush1.bf16.msra.mxu0 %v1528
        %2123 = vmatprep.subr.bf16.mxu0 %v1533
        %2124 = vmatpush1.bf16.msra.mxu0 %v1532
        %2125 = vmatprep.subr.bf16.mxu0 %v1537
        %2126 = vmatpush1.bf16.msra.mxu0 %v1536
        %2127 = vmatprep.subr.bf16.mxu0 %v1541
        %2128 = vmatpush1.bf16.msra.mxu0 %v1540
        %2129 = vmatprep.subr.bf16.mxu0 %v1545
        %2130 = vmatpush1.bf16.msra.mxu0 %v1544
        %2131 = vmatprep.subr.bf16.mxu0 %v1549
        %2132 = vmatpush1.bf16.msra.mxu0 %v1548
        %2133 = vmatprep.subr.bf16.mxu0 %v1553
        %2134 = vmatpush1.bf16.msra.mxu0 %v1552
        %2135 = vmatprep.subr.bf16.mxu0 %v1557
        %2136 = vmatpush1.bf16.msra.mxu0 %v1556
        %2137 = vmatprep.subr.bf16.mxu0 %v1561
        %2138 = vmatpush1.bf16.msra.mxu0 %v1560
        %2139 = vmatprep.subr.bf16.mxu0 %v1565
        %2140 = vmatpush1.bf16.msra.mxu0 %v1564
        %2141 = vmatprep.mubr.bf16.mxu0 %v533
        %2142 = vmatmul.mubr.bf16.gmra.mrb[0].mxu0 %v532
        %v2143 = vpop.f32.mrb[0].mxu0
        %v2144 = vadd.f32 %v2103, %v2143
        %v2145 = vpop.f32.mrb[0].mxu0
        %v2146 = vadd.f32 %v2105, %v2145
        %v2147 = vpop.f32.mrb[0].mxu0
        %v2148 = vpop.f32.mrb[0].mxu0
        %2149 = vdwg.mxu0
        %v2150 = vxor.u32 %v1980, 2147483648
        %v2151 = vxor.u32 %v1982, 2147483648
        %v2152 = vxor.u32 %v2144, 2147483648
        %v2153 = vxor.u32 %v2146, 2147483648
        %v2154 = vmul.f32 %v2150, 1.442695
        %v2155 = vpow.pop %v2154
        %v2156 = vmul.f32 %v2151, 1.442695
        %v2157 = vpow.pop %v2156
        %v2158 = vmul.f32 %v2152, 1.442695
        %v2159 = vpow.pop %v2158
        %v2160 = vmul.f32 %v2153, 1.442695
        %v2161 = vpow.pop %v2160
        %v2162 = vadd.f32 %v2155, 1.0
        %v2163 = vadd.f32 %v2157, 1.0
        %v2164 = vadd.f32 %v2159, 1.0
        %v2165 = vadd.f32 %v2161, 1.0
        %v2166 = vrcp.pop %v2162
        %v2167 = vmul.f32 1.0, %v2166
        %v2168 = vrcp.pop %v2163
        %v2169 = vmul.f32 1.0, %v2168
        %v2170 = vrcp.pop %v2164
        %v2171 = vmul.f32 1.0, %v2170
        %v2172 = vrcp.pop %v2165
        %v2173 = vmul.f32 1.0, %v2172
        %2174 = vst [vmem:[%s230] sm:$0xff] %v2167
        %2175 = vst [vmem:[%s230 + $0x8] sm:$0xff] %v2169
        %2176 = vst [vmem:[%s230 + $0x10] sm:$0xff] %v2171
        %2177 = vst [vmem:[%s230 + $0x18] sm:$0xff] %v2173
        %s2178 = smul.u32 4, %s20
        %p2179 = scmp.lt.s32.totalorder %s2178, 31
        %s2180 = scalar_select %p2179, %s2178, 31
        %s2181 = smul.addr %s2180, 8
        %s2182 = scalar_lea.vmem %s3, %s2181
        // Predicated region
        $region41: #{mlp_decoder_forward.3} parent=31 // pred_check
          %p2183 = pneg %p111
        $region42: #{mlp_decoder_forward.3} parent=31 // pred_check_branch
          %2185 = sbr.rel (%p2183) target = $region44
        $region43: #{mlp_decoder_forward.3} parent=31 // pred_region
          %s2186 = smul.u32 4, %s20
        $region44: #{mlp_decoder_forward.3} parent=31 // pred_fallthru
          _
      $region32: #{mlp_decoder_forward.3} parent=5 // pred_fallthru
        _
      %p2187 = scmp.le.s32.totalorder 2, %s15
      // Predicated region
      $region45: #{mlp_decoder_forward.3} parent=5 // pred_check
        %p2188 = pneg %p2187
      $region46: #{mlp_decoder_forward.3} parent=5 // pred_check_branch
        %2190 = sbr.rel (%p2188) target = $region48
      $region47: #{mlp_decoder_forward.3} parent=5 // pred_region
        %s2191 = ssub.s32 %s15, 2
        // Predicated region
        $region49: #{mlp_decoder_forward.3} parent=47 // pred_check
          %p2192 = pneg %p117
        $region50: #{mlp_decoder_forward.3} parent=47 // pred_check_branch
          %2194 = sbr.rel (%p2192) target = $region52
        $region51: #{mlp_decoder_forward.3} parent=47 // pred_region
          %s2195 = smul.u32 4, %s21
          %p2196 = scmp.lt.s32.totalorder %s2195, 31
          %s2197 = scalar_select %p2196, %s2195, 31
          %s2198 = smul.addr %s2197, 8
          %s2199 = scalar_lea.vmem %s3, %s2198
        $region52: #{mlp_decoder_forward.3} parent=47 // pred_fallthru
          _
      $region48: #{mlp_decoder_forward.3} parent=5 // pred_fallthru
        _
    $region6: #{mlp_decoder_forward.3} parent=1 // loop_footer
      %s19 = sadd.s32 1, %s15
    $region7: #{mlp_decoder_forward.3} parent=1 // loop_footer_branch
      %14 = sbr.rel target = $region3
    $region8: #{mlp_decoder_forward.3} parent=1 // loop_exit
      _
    %2200 = vsyncpa [#allocation3], 1
    %s2201 = scalar_lea.sflag [#allocation3], 1
    %2202 = vsyncpa %s2201, 1
    %2203 = vsyncpa [#allocation5], 1
    %s2204 = scalar_lea.sflag [#allocation5], 1
    %2205 = vsyncpa %s2204, 1

// kernel: mlp_decoder_forward.2
$region0: #{mlp_decoder_forward.2}
  #allocation0 [shape = 'u32[]', space=smem, size = 0x4, offset = 0x4, fixed_abs, tag = 'smem constant byte address 0x4 - core index']
  #allocation1 [shape = 'u32[144,128]{1,0:T(1,128)}', space=vmem, size = 0x12000, scoped, tag = 'internal scratch']
  %s0 = inlined_call_operand.vmem [shape: f32[8,10], index: 0, kind: input, shape index: {}]
  %s1 = inlined_call_operand.hbm [shape: f32[10,1024], index: 1, kind: input, shape index: {}]
  %s2 = inlined_call_operand.hbm [shape: f32[1,1024], index: 2, kind: input, shape index: {}]
  %s3 = inlined_call_operand.hbm [shape: bf16[1024,1024], index: 3, kind: input, shape index: {}]
  %s4 = inlined_call_operand.hbm [shape: f32[1,1024], index: 4, kind: input, shape index: {}]
  %s5 = inlined_call_operand.vmem [shape: bf16[8,1024], index: 5, kind: output, shape index: {}]
  %s6 = sld [smem:[#allocation0]]
  $region46: #{mlp_decoder_forward.2} parent=0
    _
  %s8 = ssub.s32 1, %s6
  %s9 = scalar_select 0, %s8, %s6
  $region1: #{mlp_decoder_forward.2} parent=0
    #allocation2 [shape = 'u8[65536]{0}', space=vmem, size = 0x10000, scoped, tag = 'input window, operand 1, single buffered']
    #allocation3 [shape = 's32[1]{0}', space=sflag, size = 0x4, scoped, tag = 'scoped memory for mlp_decoder_forward.2']
    #allocation4 [shape = 'u8[4096]{0}', space=vmem, size = 0x1000, scoped, tag = 'input window, operand 2, single buffered']
    #allocation5 [shape = 's32[1]{0}', space=sflag, size = 0x4, scoped, tag = 'scoped memory for mlp_decoder_forward.2']
    #allocation6 [shape = 'u8[2097152]{0}', space=vmem, size = 0x200000, scoped, tag = 'input window, operand 3, single buffered']
    #allocation7 [shape = 'u8[4096]{0}', space=vmem, size = 0x1000, scoped, tag = 'input window, operand 4, single buffered']
    #allocation8 [shape = 's32[1]{0}', space=sflag, size = 0x4, scoped, tag = 'scoped memory for mlp_decoder_forward.2']
    %10 = vsyncpa [#allocation3], 0
    %11 = vsyncpa [#allocation5], 0
    %12 = vsyncpa [#allocation8], 0
    // Predicated region
    $region2: #{mlp_decoder_forward.2} parent=1 // pred_check
      _
    $region3: #{mlp_decoder_forward.2} parent=1 // pred_check_branch
      %14 = sbr.rel (0) target = $region5
    $region4: #{mlp_decoder_forward.2} parent=1 // pred_region
      _
    $region5: #{mlp_decoder_forward.2} parent=1 // pred_fallthru
      _
    // Predicated region
    $region6: #{mlp_decoder_forward.2} parent=1 // pred_check
      _
    $region7: #{mlp_decoder_forward.2} parent=1 // pred_check_branch
      %16 = sbr.rel (0) target = $region9
    $region8: #{mlp_decoder_forward.2} parent=1 // pred_region
      %s18 = ssub.s32 2048, 2048
      %19 = vsyncadd [#allocation3], %s18
      %s20 = sshll.u32 [#allocation2], 4
      %s21 = int_to_ptr.vmem [resolvable:$true] %s20
      %26 = dma.hbm_to_vmem [thread:$0]  %s1, 2048, %s21, [#allocation3], 1024, 1024, 64
    $region9: #{mlp_decoder_forward.2} parent=1 // pred_fallthru
      _
    // Predicated region
    $region10: #{mlp_decoder_forward.2} parent=1 // pred_check
      _
    $region11: #{mlp_decoder_forward.2} parent=1 // pred_check_branch
      %28 = sbr.rel (0) target = $region13
    $region12: #{mlp_decoder_forward.2} parent=1 // pred_region
      %s30 = ssub.s32 128, 128
      %31 = vsyncadd [#allocation5], %s30
      %s33 = sshll.u32 [#allocation4], 4
      %s34 = int_to_ptr.vmem [resolvable:$true] %s33
      %36 = dma.hbm_to_vmem [thread:$0]  %s2, 128, %s34, [#allocation5]
    $region13: #{mlp_decoder_forward.2} parent=1 // pred_fallthru
      _
    // Predicated region
    $region14: #{mlp_decoder_forward.2} parent=1 // pred_check
      _
    $region15: #{mlp_decoder_forward.2} parent=1 // pred_check_branch
      %38 = sbr.rel (0) target = $region17
    $region16: #{mlp_decoder_forward.2} parent=1 // pred_region
      %s40 = ssub.s32 65536, 65536
      %41 = vsyncadd [#allocation5], %s40
      %s42 = sshll.u32 [#allocation6], 4
      %s43 = int_to_ptr.vmem [resolvable:$true] %s42
      %48 = dma.hbm_to_vmem [thread:$0]  %s3, 65536, %s43, [#allocation5], 512, 512, 32
    $region17: #{mlp_decoder_forward.2} parent=1 // pred_fallthru
      _
    // Predicated region
    $region18: #{mlp_decoder_forward.2} parent=1 // pred_check
      _
    $region19: #{mlp_decoder_forward.2} parent=1 // pred_check_branch
      %50 = sbr.rel (0) target = $region21
    $region20: #{mlp_decoder_forward.2} parent=1 // pred_region
      %s52 = ssub.s32 128, 128
      %53 = vsyncadd [#allocation8], %s52
      %s55 = sshll.u32 [#allocation7], 4
      %s56 = int_to_ptr.vmem [resolvable:$true] %s55
      %58 = dma.hbm_to_vmem [thread:$0]  %s4, 128, %s56, [#allocation8]
    $region21: #{mlp_decoder_forward.2} parent=1 // pred_fallthru
      _
    // Predicated region
    $region22: #{mlp_decoder_forward.2} parent=1 // pred_check
      _
    $region23: #{mlp_decoder_forward.2} parent=1 // pred_check_branch
      %60 = sbr.rel (0) target = $region25
    $region24: #{mlp_decoder_forward.2} parent=1 // pred_region
      %61 = dma.done [#allocation3], 2048
    $region25: #{mlp_decoder_forward.2} parent=1 // pred_fallthru
      _
    // Predicated region
    $region26: #{mlp_decoder_forward.2} parent=1 // pred_check
      _
    $region27: #{mlp_decoder_forward.2} parent=1 // pred_check_branch
      %63 = sbr.rel (0) target = $region29
    $region28: #{mlp_decoder_forward.2} parent=1 // pred_region
      %64 = dma.done [#allocation5], 128
    $region29: #{mlp_decoder_forward.2} parent=1 // pred_fallthru
      _
    // Predicated region
    $region30: #{mlp_decoder_forward.2} parent=1 // pred_check
      _
    $region31: #{mlp_decoder_forward.2} parent=1 // pred_check_branch
      %66 = sbr.rel (0) target = $region33
    $region32: #{mlp_decoder_forward.2} parent=1 // pred_region
      %67 = dma.done [#allocation5], 65536
    $region33: #{mlp_decoder_forward.2} parent=1 // pred_fallthru
      _
    // Predicated region
    $region34: #{mlp_decoder_forward.2} parent=1 // pred_check
      _
    $region35: #{mlp_decoder_forward.2} parent=1 // pred_check_branch
      %69 = sbr.rel (0) target = $region37
    $region36: #{mlp_decoder_forward.2} parent=1 // pred_region
      %70 = dma.done [#allocation8], 128
    $region37: #{mlp_decoder_forward.2} parent=1 // pred_fallthru
      _
    %v71 = vld [vmem:[%s0] sm:$0xff]
    %v72 = vld [vmem:[#allocation2] sm:$0xff]
    %v73 = vld [vmem:[#allocation2 + $0x8] sm:$0xff]
    %v74 = vld [vmem:[#allocation2 + $0x10] sm:$0xff]
    %v75 = vld [vmem:[#allocation2 + $0x18] sm:$0xff]
    %v76 = vld [vmem:[#allocation2 + $0x20] sm:$0xff]
    %v77 = vld [vmem:[#allocation2 + $0x28] sm:$0xff]
    %v78 = vld [vmem:[#allocation2 + $0x30] sm:$0xff]
    %v79 = vld [vmem:[#allocation2 + $0x38] sm:$0xff]
    %v80 = vld [vmem:[#allocation2 + $0x40] sm:$0x3]
    %v81 = vld [vmem:[#allocation2 + $0x48] sm:$0x3]
    %v82 = vld [vmem:[#allocation2 + $0x50] sm:$0x3]
    %v83 = vld [vmem:[#allocation2 + $0x58] sm:$0x3]
    %v84 = vld [vmem:[#allocation2 + $0x60] sm:$0x3]
    %v85 = vld [vmem:[#allocation2 + $0x68] sm:$0x3]
    %v86 = vld [vmem:[#allocation2 + $0x70] sm:$0x3]
    %v87 = vld [vmem:[#allocation2 + $0x78] sm:$0x3]
    %v88 = vld [vmem:[#allocation4] sm:$0xff]
    %v90 = vlaneseq
    %v91 = vshrl.u32 %v90, 7
    %v92 = vsub.s32 0, %v91
    %v93 = vrot.slane %v88, %v92
    %v94 = vlaneseq
    %v95 = vshrl.u32 %v94, 7
    %v96 = vsub.s32 1, %v95
    %v97 = vrot.slane %v88, %v96
    %v98 = vlaneseq
    %v99 = vshrl.u32 %v98, 7
    %v100 = vsub.s32 2, %v99
    %v101 = vrot.slane %v88, %v100
    %v102 = vlaneseq
    %v103 = vshrl.u32 %v102, 7
    %v104 = vsub.s32 3, %v103
    %v105 = vrot.slane %v88, %v104
    %v106 = vlaneseq
    %v107 = vshrl.u32 %v106, 7
    %v108 = vsub.s32 4, %v107
    %v109 = vrot.slane %v88, %v108
    %v110 = vlaneseq
    %v111 = vshrl.u32 %v110, 7
    %v112 = vsub.s32 5, %v111
    %v113 = vrot.slane %v88, %v112
    %v114 = vlaneseq
    %v115 = vshrl.u32 %v114, 7
    %v116 = vsub.s32 6, %v115
    %v117 = vrot.slane %v88, %v116
    %v118 = vlaneseq
    %v119 = vshrl.u32 %v118, 7
    %v120 = vsub.s32 7, %v119
    %v121 = vrot.slane %v88, %v120
    %vm130 = vcmask 80896
    %v132 = vsel %vm130, %v71, 0
    %vm134 = vcmask 1041408
    %v136 = vsel %vm134, %v80, 0
    %v139 = vsel %vm134, %v81, 0
    %v142 = vsel %vm134, %v82, 0
    %v145 = vsel %vm134, %v83, 0
    %v148 = vsel %vm134, %v84, 0
    %v151 = vsel %vm134, %v85, 0
    %v154 = vsel %vm134, %v86, 0
    %v157 = vsel %vm134, %v87, 0
    %159 = vmatprep.subr.mxu0 %v73
    %160 = vmatpush1.msra.mxu0 %v72
    %161 = vmatprep.subr.mxu0 %v139
    %162 = vmatpush1.msra.mxu0 %v136
    %163 = vmatprep.subr.mxu0 0.0
    %164 = vmatpush1.msra.mxu0 0.0
    %165 = vmatprep.subr.mxu0 0.0
    %166 = vmatpush1.msra.mxu0 0.0
    %167 = vmatprep.subr.mxu0 0.0
    %168 = vmatpush1.msra.mxu0 0.0
    %169 = vmatprep.subr.mxu0 0.0
    %170 = vmatpush1.msra.mxu0 0.0
    %171 = vmatprep.subr.mxu0 0.0
    %172 = vmatpush1.msra.mxu0 0.0
    %173 = vmatprep.subr.mxu0 0.0
    %174 = vmatpush1.msra.mxu0 0.0
    %175 = vmatprep.subr.mxu0 0.0
    %176 = vmatpush1.msra.mxu0 0.0
    %177 = vmatprep.subr.mxu0 0.0
    %178 = vmatpush1.msra.mxu0 0.0
    %179 = vmatprep.subr.mxu0 0.0
    %180 = vmatpush1.msra.mxu0 0.0
    %181 = vmatprep.subr.mxu0 0.0
    %182 = vmatpush1.msra.mxu0 0.0
    %183 = vmatprep.subr.mxu0 0.0
    %184 = vmatpush1.msra.mxu0 0.0
    %185 = vmatprep.subr.mxu0 0.0
    %186 = vmatpush1.msra.mxu0 0.0
    %187 = vmatprep.subr.mxu0 0.0
    %188 = vmatpush1.msra.mxu0 0.0
    %189 = vmatprep.subr.mxu0 0.0
    %190 = vmatpush1.msra.mxu0 0.0
    %191 = vmatprep.subr.mxu0 0.0
    %192 = vmatpush1.msra.mxu0 0.0
    %193 = vmatprep.subr.mxu0 0.0
    %194 = vmatpush1.msra.mxu0 0.0
    %195 = vmatprep.subr.mxu0 0.0
    %196 = vmatpush1.msra.mxu0 0.0
    %197 = vmatprep.subr.mxu0 0.0
    %198 = vmatpush1.msra.mxu0 0.0
    %199 = vmatprep.subr.mxu0 0.0
    %200 = vmatpush1.msra.mxu0 0.0
    %201 = vmatprep.subr.mxu0 0.0
    %202 = vmatpush1.msra.mxu0 0.0
    %203 = vmatprep.subr.mxu0 0.0
    %204 = vmatpush1.msra.mxu0 0.0
    %205 = vmatprep.subr.mxu0 0.0
    %206 = vmatpush1.msra.mxu0 0.0
    %207 = vmatprep.subr.mxu0 0.0
    %208 = vmatpush1.msra.mxu0 0.0
    %209 = vmatprep.subr.mxu0 0.0
    %210 = vmatpush1.msra.mxu0 0.0
    %211 = vmatprep.subr.mxu0 0.0
    %212 = vmatpush1.msra.mxu0 0.0
    %213 = vmatprep.subr.mxu0 0.0
    %214 = vmatpush1.msra.mxu0 0.0
    %215 = vmatprep.subr.mxu0 0.0
    %216 = vmatpush1.msra.mxu0 0.0
    %217 = vmatprep.subr.mxu0 0.0
    %218 = vmatpush1.msra.mxu0 0.0
    %219 = vmatprep.subr.mxu0 0.0
    %220 = vmatpush1.msra.mxu0 0.0
    %221 = vmatprep.subr.mxu0 0.0
    %222 = vmatpush1.msra.mxu0 0.0
    %223 = vmatprep.mubr.f32.mxu0 0.0
    %224 = vmatmul.mubr.f32.gmra.mrb[0].mxu0 %v132
    %v225 = vpop.f32.mrb[0].mxu0
    %v226 = vadd.f32 %v93, %v225
    %v227 = vpop.f32.mrb[0].mxu0
    %v228 = vadd.f32 %v97, %v227
    %229 = vdwg.mxu0
    %230 = vmatprep.subr.mxu0 %v75
    %231 = vmatpush1.msra.mxu0 %v74
    %232 = vmatprep.subr.mxu0 %v145
    %233 = vmatpush1.msra.mxu0 %v142
    %234 = vmatprep.subr.mxu0 0.0
    %235 = vmatpush1.msra.mxu0 0.0
    %236 = vmatprep.subr.mxu0 0.0
    %237 = vmatpush1.msra.mxu0 0.0
    %238 = vmatprep.subr.mxu0 0.0
    %239 = vmatpush1.msra.mxu0 0.0
    %240 = vmatprep.subr.mxu0 0.0
    %241 = vmatpush1.msra.mxu0 0.0
    %242 = vmatprep.subr.mxu0 0.0
    %243 = vmatpush1.msra.mxu0 0.0
    %244 = vmatprep.subr.mxu0 0.0
    %245 = vmatpush1.msra.mxu0 0.0
    %246 = vmatprep.subr.mxu0 0.0
    %247 = vmatpush1.msra.mxu0 0.0
    %248 = vmatprep.subr.mxu0 0.0
    %249 = vmatpush1.msra.mxu0 0.0
    %250 = vmatprep.subr.mxu0 0.0
    %251 = vmatpush1.msra.mxu0 0.0
    %252 = vmatprep.subr.mxu0 0.0
    %253 = vmatpush1.msra.mxu0 0.0
    %254 = vmatprep.subr.mxu0 0.0
    %255 = vmatpush1.msra.mxu0 0.0
    %256 = vmatprep.subr.mxu0 0.0
    %257 = vmatpush1.msra.mxu0 0.0
    %258 = vmatprep.subr.mxu0 0.0
    %259 = vmatpush1.msra.mxu0 0.0
    %260 = vmatprep.subr.mxu0 0.0
    %261 = vmatpush1.msra.mxu0 0.0
    %262 = vmatprep.subr.mxu0 0.0
    %263 = vmatpush1.msra.mxu0 0.0
    %264 = vmatprep.subr.mxu0 0.0
    %265 = vmatpush1.msra.mxu0 0.0
    %266 = vmatprep.subr.mxu0 0.0
    %267 = vmatpush1.msra.mxu0 0.0
    %268 = vmatprep.subr.mxu0 0.0
    %269 = vmatpush1.msra.mxu0 0.0
    %270 = vmatprep.subr.mxu0 0.0
    %271 = vmatpush1.msra.mxu0 0.0
    %272 = vmatprep.subr.mxu0 0.0
    %273 = vmatpush1.msra.mxu0 0.0
    %274 = vmatprep.subr.mxu0 0.0
    %275 = vmatpush1.msra.mxu0 0.0
    %276 = vmatprep.subr.mxu0 0.0
    %277 = vmatpush1.msra.mxu0 0.0
    %278 = vmatprep.subr.mxu0 0.0
    %279 = vmatpush1.msra.mxu0 0.0
    %280 = vmatprep.subr.mxu0 0.0
    %281 = vmatpush1.msra.mxu0 0.0
    %282 = vmatprep.subr.mxu0 0.0
    %283 = vmatpush1.msra.mxu0 0.0
    %284 = vmatprep.subr.mxu0 0.0
    %285 = vmatpush1.msra.mxu0 0.0
    %286 = vmatprep.subr.mxu0 0.0
    %287 = vmatpush1.msra.mxu0 0.0
    %288 = vmatprep.subr.mxu0 0.0
    %289 = vmatpush1.msra.mxu0 0.0
    %290 = vmatprep.subr.mxu0 0.0
    %291 = vmatpush1.msra.mxu0 0.0
    %292 = vmatprep.subr.mxu0 0.0
    %293 = vmatpush1.msra.mxu0 0.0
    %294 = vmatprep.mubr.f32.mxu0 0.0
    %295 = vmatmul.mubr.f32.gmra.mrb[0].mxu0 %v132
    %v296 = vpop.f32.mrb[0].mxu0
    %v297 = vadd.f32 %v101, %v296
    %v298 = vpop.f32.mrb[0].mxu0
    %v299 = vadd.f32 %v105, %v298
    %300 = vdwg.mxu0
    %301 = vmatprep.subr.mxu0 %v77
    %302 = vmatpush1.msra.mxu0 %v76
    %303 = vmatprep.subr.mxu0 %v151
    %304 = vmatpush1.msra.mxu0 %v148
    %305 = vmatprep.subr.mxu0 0.0
    %306 = vmatpush1.msra.mxu0 0.0
    %307 = vmatprep.subr.mxu0 0.0
    %308 = vmatpush1.msra.mxu0 0.0
    %309 = vmatprep.subr.mxu0 0.0
    %310 = vmatpush1.msra.mxu0 0.0
    %311 = vmatprep.subr.mxu0 0.0
    %312 = vmatpush1.msra.mxu0 0.0
    %313 = vmatprep.subr.mxu0 0.0
    %314 = vmatpush1.msra.mxu0 0.0
    %315 = vmatprep.subr.mxu0 0.0
    %316 = vmatpush1.msra.mxu0 0.0
    %317 = vmatprep.subr.mxu0 0.0
    %318 = vmatpush1.msra.mxu0 0.0
    %319 = vmatprep.subr.mxu0 0.0
    %320 = vmatpush1.msra.mxu0 0.0
    %321 = vmatprep.subr.mxu0 0.0
    %322 = vmatpush1.msra.mxu0 0.0
    %323 = vmatprep.subr.mxu0 0.0
    %324 = vmatpush1.msra.mxu0 0.0
    %325 = vmatprep.subr.mxu0 0.0
    %326 = vmatpush1.msra.mxu0 0.0
    %327 = vmatprep.subr.mxu0 0.0
    %328 = vmatpush1.msra.mxu0 0.0
    %329 = vmatprep.subr.mxu0 0.0
    %330 = vmatpush1.msra.mxu0 0.0
    %331 = vmatprep.subr.mxu0 0.0
    %332 = vmatpush1.msra.mxu0 0.0
    %333 = vmatprep.subr.mxu0 0.0
    %334 = vmatpush1.msra.mxu0 0.0
    %335 = vmatprep.subr.mxu0 0.0
    %336 = vmatpush1.msra.mxu0 0.0
    %337 = vmatprep.subr.mxu0 0.0
    %338 = vmatpush1.msra.mxu0 0.0
    %339 = vmatprep.subr.mxu0 0.0
    %340 = vmatpush1.msra.mxu0 0.0
    %341 = vmatprep.subr.mxu0 0.0
    %342 = vmatpush1.msra.mxu0 0.0
    %343 = vmatprep.subr.mxu0 0.0
    %344 = vmatpush1.msra.mxu0 0.0
    %345 = vmatprep.subr.mxu0 0.0
    %346 = vmatpush1.msra.mxu0 0.0
    %347 = vmatprep.subr.mxu0 0.0
    %348 = vmatpush1.msra.mxu0 0.0
    %349 = vmatprep.subr.mxu0 0.0
    %350 = vmatpush1.msra.mxu0 0.0
    %351 = vmatprep.subr.mxu0 0.0
    %352 = vmatpush1.msra.mxu0 0.0
    %353 = vmatprep.subr.mxu0 0.0
    %354 = vmatpush1.msra.mxu0 0.0
    %355 = vmatprep.subr.mxu0 0.0
    %356 = vmatpush1.msra.mxu0 0.0
    %357 = vmatprep.subr.mxu0 0.0
    %358 = vmatpush1.msra.mxu0 0.0
    %359 = vmatprep.subr.mxu0 0.0
    %360 = vmatpush1.msra.mxu0 0.0
    %361 = vmatprep.subr.mxu0 0.0
    %362 = vmatpush1.msra.mxu0 0.0
    %363 = vmatprep.subr.mxu0 0.0
    %364 = vmatpush1.msra.mxu0 0.0
    %365 = vmatprep.mubr.f32.mxu0 0.0
    %366 = vmatmul.mubr.f32.gmra.mrb[0].mxu0 %v132
    %v367 = vpop.f32.mrb[0].mxu0
    %v368 = vadd.f32 %v109, %v367
    %v369 = vpop.f32.mrb[0].mxu0
    %v370 = vadd.f32 %v113, %v369
    %371 = vdwg.mxu0
    %372 = vmatprep.subr.mxu0 %v79
    %373 = vmatpush1.msra.mxu0 %v78
    %374 = vmatprep.subr.mxu0 %v157
    %375 = vmatpush1.msra.mxu0 %v154
    %376 = vmatprep.subr.mxu0 0.0
    %377 = vmatpush1.msra.mxu0 0.0
    %378 = vmatprep.subr.mxu0 0.0
    %379 = vmatpush1.msra.mxu0 0.0
    %380 = vmatprep.subr.mxu0 0.0
    %381 = vmatpush1.msra.mxu0 0.0
    %382 = vmatprep.subr.mxu0 0.0
    %383 = vmatpush1.msra.mxu0 0.0
    %384 = vmatprep.subr.mxu0 0.0
    %385 = vmatpush1.msra.mxu0 0.0
    %386 = vmatprep.subr.mxu0 0.0
    %387 = vmatpush1.msra.mxu0 0.0
    %388 = vmatprep.subr.mxu0 0.0
    %389 = vmatpush1.msra.mxu0 0.0
    %390 = vmatprep.subr.mxu0 0.0
    %391 = vmatpush1.msra.mxu0 0.0
    %392 = vmatprep.subr.mxu0 0.0
    %393 = vmatpush1.msra.mxu0 0.0
    %394 = vmatprep.subr.mxu0 0.0
    %395 = vmatpush1.msra.mxu0 0.0
    %396 = vmatprep.subr.mxu0 0.0
    %397 = vmatpush1.msra.mxu0 0.0
    %398 = vmatprep.subr.mxu0 0.0
    %399 = vmatpush1.msra.mxu0 0.0
    %400 = vmatprep.subr.mxu0 0.0
    %401 = vmatpush1.msra.mxu0 0.0
    %402 = vmatprep.subr.mxu0 0.0
    %403 = vmatpush1.msra.mxu0 0.0
    %404 = vmatprep.subr.mxu0 0.0
    %405 = vmatpush1.msra.mxu0 0.0
    %406 = vmatprep.subr.mxu0 0.0
    %407 = vmatpush1.msra.mxu0 0.0
    %408 = vmatprep.subr.mxu0 0.0
    %409 = vmatpush1.msra.mxu0 0.0
    %410 = vmatprep.subr.mxu0 0.0
    %411 = vmatpush1.msra.mxu0 0.0
    %412 = vmatprep.subr.mxu0 0.0
    %413 = vmatpush1.msra.mxu0 0.0
    %414 = vmatprep.subr.mxu0 0.0
    %415 = vmatpush1.msra.mxu0 0.0
    %416 = vmatprep.subr.mxu0 0.0
    %417 = vmatpush1.msra.mxu0 0.0
    %418 = vmatprep.subr.mxu0 0.0
    %419 = vmatpush1.msra.mxu0 0.0
    %420 = vmatprep.subr.mxu0 0.0
    %421 = vmatpush1.msra.mxu0 0.0
    %422 = vmatprep.subr.mxu0 0.0
    %423 = vmatpush1.msra.mxu0 0.0
    %424 = vmatprep.subr.mxu0 0.0
    %425 = vmatpush1.msra.mxu0 0.0
    %426 = vmatprep.subr.mxu0 0.0
    %427 = vmatpush1.msra.mxu0 0.0
    %428 = vmatprep.subr.mxu0 0.0
    %429 = vmatpush1.msra.mxu0 0.0
    %430 = vmatprep.subr.mxu0 0.0
    %431 = vmatpush1.msra.mxu0 0.0
    %432 = vmatprep.subr.mxu0 0.0
    %433 = vmatpush1.msra.mxu0 0.0
    %434 = vmatprep.subr.mxu0 0.0
    %435 = vmatpush1.msra.mxu0 0.0
    %436 = vmatprep.mubr.f32.mxu0 0.0
    %437 = vmatmul.mubr.f32.gmra.mrb[0].mxu0 %v132
    %v438 = vpop.f32.mrb[0].mxu0
    %v439 = vadd.f32 %v117, %v438
    %v440 = vpop.f32.mrb[0].mxu0
    %v441 = vadd.f32 %v121, %v440
    %442 = vdwg.mxu0
    %v443 = vmax.f32 %v226, 0.0
    %v444 = vmax.f32 %v228, 0.0
    %v445 = vmax.f32 %v297, 0.0
    %v446 = vmax.f32 %v299, 0.0
    %v447 = vmax.f32 %v368, 0.0
    %v448 = vmax.f32 %v370, 0.0
    %v449 = vmax.f32 %v439, 0.0
    %v450 = vmax.f32 %v441, 0.0
    %v451 = vpack.c.bf16 %v443, %v443
    %v452 = vpack.c.bf16 %v444, %v444
    %v453 = vpack.c.bf16 %v445, %v445
    %v454 = vpack.c.bf16 %v446, %v446
    %v455 = vpack.c.bf16 %v447, %v447
    %v456 = vpack.c.bf16 %v448, %v448
    %v457 = vpack.c.bf16 %v449, %v449
    %v458 = vpack.c.bf16 %v450, %v450
    %v459 = vld [vmem:[#allocation6] sm:$0xff]
    %v460 = vld [vmem:[#allocation6 + $0x8] sm:$0xff]
    %v461 = vld [vmem:[#allocation6 + $0x10] sm:$0xff]
    %v462 = vld [vmem:[#allocation6 + $0x18] sm:$0xff]
    %v463 = vld [vmem:[#allocation6 + $0x20] sm:$0xff]
    %v464 = vld [vmem:[#allocation6 + $0x28] sm:$0xff]
    %v465 = vld [vmem:[#allocation6 + $0x30] sm:$0xff]
    %v466 = vld [vmem:[#allocation6 + $0x38] sm:$0xff]
    %v467 = vld [vmem:[#allocation6 + $0x40] sm:$0xff]
    %v468 = vld [vmem:[#allocation6 + $0x48] sm:$0xff]
    %v469 = vld [vmem:[#allocation6 + $0x50] sm:$0xff]
    %v470 = vld [vmem:[#allocation6 + $0x58] sm:$0xff]
    %v471 = vld [vmem:[#allocation6 + $0x60] sm:$0xff]
    %v472 = vld [vmem:[#allocation6 + $0x68] sm:$0xff]
    %v473 = vld [vmem:[#allocation6 + $0x70] sm:$0xff]
    %v474 = vld [vmem:[#allocation6 + $0x78] sm:$0xff]
    %v475 = vld [vmem:[#allocation6 + $0x80] sm:$0xff]
    %v476 = vld [vmem:[#allocation6 + $0x88] sm:$0xff]
    %v477 = vld [vmem:[#allocation6 + $0x90] sm:$0xff]
    %v478 = vld [vmem:[#allocation6 + $0x98] sm:$0xff]
    %v479 = vld [vmem:[#allocation6 + $0xa0] sm:$0xff]
    %v480 = vld [vmem:[#allocation6 + $0xa8] sm:$0xff]
    %v481 = vld [vmem:[#allocation6 + $0xb0] sm:$0xff]
    %v482 = vld [vmem:[#allocation6 + $0xb8] sm:$0xff]
    %v483 = vld [vmem:[#allocation6 + $0xc0] sm:$0xff]
    %v484 = vld [vmem:[#allocation6 + $0xc8] sm:$0xff]
    %v485 = vld [vmem:[#allocation6 + $0xd0] sm:$0xff]
    %v486 = vld [vmem:[#allocation6 + $0xd8] sm:$0xff]
    %v487 = vld [vmem:[#allocation6 + $0xe0] sm:$0xff]
    %v488 = vld [vmem:[#allocation6 + $0xe8] sm:$0xff]
    %v489 = vld [vmem:[#allocation6 + $0xf0] sm:$0xff]
    %v490 = vld [vmem:[#allocation6 + $0xf8] sm:$0xff]
    %v491 = vld [vmem:[#allocation6 + $0x100] sm:$0xff]
    %v492 = vld [vmem:[#allocation6 + $0x108] sm:$0xff]
    %v493 = vld [vmem:[#allocation6 + $0x110] sm:$0xff]
    %v494 = vld [vmem:[#allocation6 + $0x118] sm:$0xff]
    %v495 = vld [vmem:[#allocation6 + $0x120] sm:$0xff]
    %v496 = vld [vmem:[#allocation6 + $0x128] sm:$0xff]
    %v497 = vld [vmem:[#allocation6 + $0x130] sm:$0xff]
    %v498 = vld [vmem:[#allocation6 + $0x138] sm:$0xff]
    %v499 = vld [vmem:[#allocation6 + $0x140] sm:$0xff]
    %v500 = vld [vmem:[#allocation6 + $0x148] sm:$0xff]
    %v501 = vld [vmem:[#allocation6 + $0x150] sm:$0xff]
    %v502 = vld [vmem:[#allocation6 + $0x158] sm:$0xff]
    %v503 = vld [vmem:[#allocation6 + $0x160] sm:$0xff]
    %v504 = vld [vmem:[#allocation6 + $0x168] sm:$0xff]
    %v505 = vld [vmem:[#allocation6 + $0x170] sm:$0xff]
    %v506 = vld [vmem:[#allocation6 + $0x178] sm:$0xff]
    %v507 = vld [vmem:[#allocation6 + $0x180] sm:$0xff]
    %v508 = vld [vmem:[#allocation6 + $0x188] sm:$0xff]
    %v509 = vld [vmem:[#allocation6 + $0x190] sm:$0xff]
    %v510 = vld [vmem:[#allocation6 + $0x198] sm:$0xff]
    %v511 = vld [vmem:[#allocation6 + $0x1a0] sm:$0xff]
    %v512 = vld [vmem:[#allocation6 + $0x1a8] sm:$0xff]
    %v513 = vld [vmem:[#allocation6 + $0x1b0] sm:$0xff]
    %v514 = vld [vmem:[#allocation6 + $0x1b8] sm:$0xff]
    %v515 = vld [vmem:[#allocation6 + $0x1c0] sm:$0xff]
    %v516 = vld [vmem:[#allocation6 + $0x1c8] sm:$0xff]
    %v517 = vld [vmem:[#allocation6 + $0x1d0] sm:$0xff]
    %v518 = vld [vmem:[#allocation6 + $0x1d8] sm:$0xff]
    %v519 = vld [vmem:[#allocation6 + $0x1e0] sm:$0xff]
    %v520 = vld [vmem:[#allocation6 + $0x1e8] sm:$0xff]
    %v521 = vld [vmem:[#allocation6 + $0x1f0] sm:$0xff]
    %v522 = vld [vmem:[#allocation6 + $0x1f8] sm:$0xff]
    %v523 = vld [vmem:[#allocation6 + $0x200] sm:$0xff]
    %v524 = vld [vmem:[#allocation6 + $0x208] sm:$0xff]
    %v525 = vld [vmem:[#allocation6 + $0x210] sm:$0xff]
    %v526 = vld [vmem:[#allocation6 + $0x218] sm:$0xff]
    %v527 = vld [vmem:[#allocation6 + $0x220] sm:$0xff]
    %v528 = vld [vmem:[#allocation6 + $0x228] sm:$0xff]
    %v529 = vld [vmem:[#allocation6 + $0x230] sm:$0xff]
    %v530 = vld [vmem:[#allocation6 + $0x238] sm:$0xff]
    %v531 = vld [vmem:[#allocation6 + $0x240] sm:$0xff]
    %v532 = vld [vmem:[#allocation6 + $0x248] sm:$0xff]
    %v533 = vld [vmem:[#allocation6 + $0x250] sm:$0xff]
    %v534 = vld [vmem:[#allocation6 + $0x258] sm:$0xff]
    %v535 = vld [vmem:[#allocation6 + $0x260] sm:$0xff]
    %v536 = vld [vmem:[#allocation6 + $0x268] sm:$0xff]
    %v537 = vld [vmem:[#allocation6 + $0x270] sm:$0xff]
    %v538 = vld [vmem:[#allocation6 + $0x278] sm:$0xff]
    %v539 = vld [vmem:[#allocation6 + $0x280] sm:$0xff]
    %v540 = vld [vmem:[#allocation6 + $0x288] sm:$0xff]
    %v541 = vld [vmem:[#allocation6 + $0x290] sm:$0xff]
    %v542 = vld [vmem:[#allocation6 + $0x298] sm:$0xff]
    %v543 = vld [vmem:[#allocation6 + $0x2a0] sm:$0xff]
    %v544 = vld [vmem:[#allocation6 + $0x2a8] sm:$0xff]
    %v545 = vld [vmem:[#allocation6 + $0x2b0] sm:$0xff]
    %v546 = vld [vmem:[#allocation6 + $0x2b8] sm:$0xff]
    %v547 = vld [vmem:[#allocation6 + $0x2c0] sm:$0xff]
    %v548 = vld [vmem:[#allocation6 + $0x2c8] sm:$0xff]
    %v549 = vld [vmem:[#allocation6 + $0x2d0] sm:$0xff]
    %v550 = vld [vmem:[#allocation6 + $0x2d8] sm:$0xff]
    %v551 = vld [vmem:[#allocation6 + $0x2e0] sm:$0xff]
    %v552 = vld [vmem:[#allocation6 + $0x2e8] sm:$0xff]
    %v553 = vld [vmem:[#allocation6 + $0x2f0] sm:$0xff]
    %v554 = vld [vmem:[#allocation6 + $0x2f8] sm:$0xff]
    %v555 = vld [vmem:[#allocation6 + $0x300] sm:$0xff]
    %v556 = vld [vmem:[#allocation6 + $0x308] sm:$0xff]
    %v557 = vld [vmem:[#allocation6 + $0x310] sm:$0xff]
    %v558 = vld [vmem:[#allocation6 + $0x318] sm:$0xff]
    %v559 = vld [vmem:[#allocation6 + $0x320] sm:$0xff]
    %v560 = vld [vmem:[#allocation6 + $0x328] sm:$0xff]
    %v561 = vld [vmem:[#allocation6 + $0x330] sm:$0xff]
    %v562 = vld [vmem:[#allocation6 + $0x338] sm:$0xff]
    %v563 = vld [vmem:[#allocation6 + $0x340] sm:$0xff]
    %v564 = vld [vmem:[#allocation6 + $0x348] sm:$0xff]
    %v565 = vld [vmem:[#allocation6 + $0x350] sm:$0xff]
    %v566 = vld [vmem:[#allocation6 + $0x358] sm:$0xff]
    %v567 = vld [vmem:[#allocation6 + $0x360] sm:$0xff]
    %v568 = vld [vmem:[#allocation6 + $0x368] sm:$0xff]
    %v569 = vld [vmem:[#allocation6 + $0x370] sm:$0xff]
    %v570 = vld [vmem:[#allocation6 + $0x378] sm:$0xff]
    %v571 = vld [vmem:[#allocation6 + $0x380] sm:$0xff]
    %v572 = vld [vmem:[#allocation6 + $0x388] sm:$0xff]
    %v573 = vld [vmem:[#allocation6 + $0x390] sm:$0xff]
    %v574 = vld [vmem:[#allocation6 + $0x398] sm:$0xff]
    %v575 = vld [vmem:[#allocation6 + $0x3a0] sm:$0xff]
    %v576 = vld [vmem:[#allocation6 + $0x3a8] sm:$0xff]
    %v577 = vld [vmem:[#allocation6 + $0x3b0] sm:$0xff]
    %v578 = vld [vmem:[#allocation6 + $0x3b8] sm:$0xff]
    %v579 = vld [vmem:[#allocation6 + $0x3c0] sm:$0xff]
    %v580 = vld [vmem:[#allocation6 + $0x3c8] sm:$0xff]
    %v581 = vld [vmem:[#allocation6 + $0x3d0] sm:$0xff]
    %v582 = vld [vmem:[#allocation6 + $0x3d8] sm:$0xff]
    %v583 = vld [vmem:[#allocation6 + $0x3e0] sm:$0xff]
    %v584 = vld [vmem:[#allocation6 + $0x3e8] sm:$0xff]
    %v585 = vld [vmem:[#allocation6 + $0x3f0] sm:$0xff]
    %v586 = vld [vmem:[#allocation6 + $0x3f8] sm:$0xff]
    %v587 = vld [vmem:[#allocation6 + $0x400] sm:$0xff]
    %v588 = vld [vmem:[#allocation6 + $0x408] sm:$0xff]
    %v589 = vld [vmem:[#allocation6 + $0x410] sm:$0xff]
    %v590 = vld [vmem:[#allocation6 + $0x418] sm:$0xff]
    %v591 = vld [vmem:[#allocation6 + $0x420] sm:$0xff]
    %v592 = vld [vmem:[#allocation6 + $0x428] sm:$0xff]
    %v593 = vld [vmem:[#allocation6 + $0x430] sm:$0xff]
    %v594 = vld [vmem:[#allocation6 + $0x438] sm:$0xff]
    %v595 = vld [vmem:[#allocation6 + $0x440] sm:$0xff]
    %v596 = vld [vmem:[#allocation6 + $0x448] sm:$0xff]
    %v597 = vld [vmem:[#allocation6 + $0x450] sm:$0xff]
    %v598 = vld [vmem:[#allocation6 + $0x458] sm:$0xff]
    %v599 = vld [vmem:[#allocation6 + $0x460] sm:$0xff]
    %v600 = vld [vmem:[#allocation6 + $0x468] sm:$0xff]
    %v601 = vld [vmem:[#allocation6 + $0x470] sm:$0xff]
    %v602 = vld [vmem:[#allocation6 + $0x478] sm:$0xff]
    %v603 = vld [vmem:[#allocation6 + $0x480] sm:$0xff]
    %v604 = vld [vmem:[#allocation6 + $0x488] sm:$0xff]
    %v605 = vld [vmem:[#allocation6 + $0x490] sm:$0xff]
    %v606 = vld [vmem:[#allocation6 + $0x498] sm:$0xff]
    %v607 = vld [vmem:[#allocation6 + $0x4a0] sm:$0xff]
    %v608 = vld [vmem:[#allocation6 + $0x4a8] sm:$0xff]
    %v609 = vld [vmem:[#allocation6 + $0x4b0] sm:$0xff]
    %v610 = vld [vmem:[#allocation6 + $0x4b8] sm:$0xff]
    %v611 = vld [vmem:[#allocation6 + $0x4c0] sm:$0xff]
    %v612 = vld [vmem:[#allocation6 + $0x4c8] sm:$0xff]
    %v613 = vld [vmem:[#allocation6 + $0x4d0] sm:$0xff]
    %v614 = vld [vmem:[#allocation6 + $0x4d8] sm:$0xff]
    %v615 = vld [vmem:[#allocation6 + $0x4e0] sm:$0xff]
    %v616 = vld [vmem:[#allocation6 + $0x4e8] sm:$0xff]
    %v617 = vld [vmem:[#allocation6 + $0x4f0] sm:$0xff]
    %v618 = vld [vmem:[#allocation6 + $0x4f8] sm:$0xff]
    %v619 = vld [vmem:[#allocation6 + $0x500] sm:$0xff]
    %v620 = vld [vmem:[#allocation6 + $0x508] sm:$0xff]
    %v621 = vld [vmem:[#allocation6 + $0x510] sm:$0xff]
    %v622 = vld [vmem:[#allocation6 + $0x518] sm:$0xff]
    %v623 = vld [vmem:[#allocation6 + $0x520] sm:$0xff]
    %v624 = vld [vmem:[#allocation6 + $0x528] sm:$0xff]
    %v625 = vld [vmem:[#allocation6 + $0x530] sm:$0xff]
    %v626 = vld [vmem:[#allocation6 + $0x538] sm:$0xff]
    %v627 = vld [vmem:[#allocation6 + $0x540] sm:$0xff]
    %v628 = vld [vmem:[#allocation6 + $0x548] sm:$0xff]
    %v629 = vld [vmem:[#allocation6 + $0x550] sm:$0xff]
    %v630 = vld [vmem:[#allocation6 + $0x558] sm:$0xff]
    %v631 = vld [vmem:[#allocation6 + $0x560] sm:$0xff]
    %v632 = vld [vmem:[#allocation6 + $0x568] sm:$0xff]
    %v633 = vld [vmem:[#allocation6 + $0x570] sm:$0xff]
    %v634 = vld [vmem:[#allocation6 + $0x578] sm:$0xff]
    %v635 = vld [vmem:[#allocation6 + $0x580] sm:$0xff]
    %v636 = vld [vmem:[#allocation6 + $0x588] sm:$0xff]
    %v637 = vld [vmem:[#allocation6 + $0x590] sm:$0xff]
    %v638 = vld [vmem:[#allocation6 + $0x598] sm:$0xff]
    %v639 = vld [vmem:[#allocation6 + $0x5a0] sm:$0xff]
    %v640 = vld [vmem:[#allocation6 + $0x5a8] sm:$0xff]
    %v641 = vld [vmem:[#allocation6 + $0x5b0] sm:$0xff]
    %v642 = vld [vmem:[#allocation6 + $0x5b8] sm:$0xff]
    %v643 = vld [vmem:[#allocation6 + $0x5c0] sm:$0xff]
    %v644 = vld [vmem:[#allocation6 + $0x5c8] sm:$0xff]
    %v645 = vld [vmem:[#allocation6 + $0x5d0] sm:$0xff]
    %v646 = vld [vmem:[#allocation6 + $0x5d8] sm:$0xff]
    %v647 = vld [vmem:[#allocation6 + $0x5e0] sm:$0xff]
    %v648 = vld [vmem:[#allocation6 + $0x5e8] sm:$0xff]
    %v649 = vld [vmem:[#allocation6 + $0x5f0] sm:$0xff]
    %v650 = vld [vmem:[#allocation6 + $0x5f8] sm:$0xff]
    %v651 = vld [vmem:[#allocation6 + $0x600] sm:$0xff]
    %v652 = vld [vmem:[#allocation6 + $0x608] sm:$0xff]
    %v653 = vld [vmem:[#allocation6 + $0x610] sm:$0xff]
    %v654 = vld [vmem:[#allocation6 + $0x618] sm:$0xff]
    %v655 = vld [vmem:[#allocation6 + $0x620] sm:$0xff]
    %v656 = vld [vmem:[#allocation6 + $0x628] sm:$0xff]
    %v657 = vld [vmem:[#allocation6 + $0x630] sm:$0xff]
    %v658 = vld [vmem:[#allocation6 + $0x638] sm:$0xff]
    %v659 = vld [vmem:[#allocation6 + $0x640] sm:$0xff]
    %v660 = vld [vmem:[#allocation6 + $0x648] sm:$0xff]
    %v661 = vld [vmem:[#allocation6 + $0x650] sm:$0xff]
    %v662 = vld [vmem:[#allocation6 + $0x658] sm:$0xff]
    %v663 = vld [vmem:[#allocation6 + $0x660] sm:$0xff]
    %v664 = vld [vmem:[#allocation6 + $0x668] sm:$0xff]
    %v665 = vld [vmem:[#allocation6 + $0x670] sm:$0xff]
    %v666 = vld [vmem:[#allocation6 + $0x678] sm:$0xff]
    %v667 = vld [vmem:[#allocation6 + $0x680] sm:$0xff]
    %v668 = vld [vmem:[#allocation6 + $0x688] sm:$0xff]
    %v669 = vld [vmem:[#allocation6 + $0x690] sm:$0xff]
    %v670 = vld [vmem:[#allocation6 + $0x698] sm:$0xff]
    %v671 = vld [vmem:[#allocation6 + $0x6a0] sm:$0xff]
    %v672 = vld [vmem:[#allocation6 + $0x6a8] sm:$0xff]
    %v673 = vld [vmem:[#allocation6 + $0x6b0] sm:$0xff]
    %v674 = vld [vmem:[#allocation6 + $0x6b8] sm:$0xff]
    %v675 = vld [vmem:[#allocation6 + $0x6c0] sm:$0xff]
    %v676 = vld [vmem:[#allocation6 + $0x6c8] sm:$0xff]
    %v677 = vld [vmem:[#allocation6 + $0x6d0] sm:$0xff]
    %v678 = vld [vmem:[#allocation6 + $0x6d8] sm:$0xff]
    %v679 = vld [vmem:[#allocation6 + $0x6e0] sm:$0xff]
    %v680 = vld [vmem:[#allocation6 + $0x6e8] sm:$0xff]
    %v681 = vld [vmem:[#allocation6 + $0x6f0] sm:$0xff]
    %v682 = vld [vmem:[#allocation6 + $0x6f8] sm:$0xff]
    %v683 = vld [vmem:[#allocation6 + $0x700] sm:$0xff]
    %v684 = vld [vmem:[#allocation6 + $0x708] sm:$0xff]
    %v685 = vld [vmem:[#allocation6 + $0x710] sm:$0xff]
    %v686 = vld [vmem:[#allocation6 + $0x718] sm:$0xff]
    %v687 = vld [vmem:[#allocation6 + $0x720] sm:$0xff]
    %v688 = vld [vmem:[#allocation6 + $0x728] sm:$0xff]
    %v689 = vld [vmem:[#allocation6 + $0x730] sm:$0xff]
    %v690 = vld [vmem:[#allocation6 + $0x738] sm:$0xff]
    %v691 = vld [vmem:[#allocation6 + $0x740] sm:$0xff]
    %v692 = vld [vmem:[#allocation6 + $0x748] sm:$0xff]
    %v693 = vld [vmem:[#allocation6 + $0x750] sm:$0xff]
    %v694 = vld [vmem:[#allocation6 + $0x758] sm:$0xff]
    %v695 = vld [vmem:[#allocation6 + $0x760] sm:$0xff]
    %v696 = vld [vmem:[#allocation6 + $0x768] sm:$0xff]
    %v697 = vld [vmem:[#allocation6 + $0x770] sm:$0xff]
    %v698 = vld [vmem:[#allocation6 + $0x778] sm:$0xff]
    %v699 = vld [vmem:[#allocation6 + $0x780] sm:$0xff]
    %v700 = vld [vmem:[#allocation6 + $0x788] sm:$0xff]
    %v701 = vld [vmem:[#allocation6 + $0x790] sm:$0xff]
    %v702 = vld [vmem:[#allocation6 + $0x798] sm:$0xff]
    %v703 = vld [vmem:[#allocation6 + $0x7a0] sm:$0xff]
    %v704 = vld [vmem:[#allocation6 + $0x7a8] sm:$0xff]
    %v705 = vld [vmem:[#allocation6 + $0x7b0] sm:$0xff]
    %v706 = vld [vmem:[#allocation6 + $0x7b8] sm:$0xff]
    %v707 = vld [vmem:[#allocation6 + $0x7c0] sm:$0xff]
    %v708 = vld [vmem:[#allocation6 + $0x7c8] sm:$0xff]
    %v709 = vld [vmem:[#allocation6 + $0x7d0] sm:$0xff]
    %v710 = vld [vmem:[#allocation6 + $0x7d8] sm:$0xff]
    %v711 = vld [vmem:[#allocation6 + $0x7e0] sm:$0xff]
    %v712 = vld [vmem:[#allocation6 + $0x7e8] sm:$0xff]
    %v713 = vld [vmem:[#allocation6 + $0x7f0] sm:$0xff]
    %v714 = vld [vmem:[#allocation6 + $0x7f8] sm:$0xff]
    %v715 = vld [vmem:[#allocation6 + $0x800] sm:$0xff]
    %v716 = vld [vmem:[#allocation6 + $0x808] sm:$0xff]
    %v717 = vld [vmem:[#allocation6 + $0x810] sm:$0xff]
    %v718 = vld [vmem:[#allocation6 + $0x818] sm:$0xff]
    %v719 = vld [vmem:[#allocation6 + $0x820] sm:$0xff]
    %v720 = vld [vmem:[#allocation6 + $0x828] sm:$0xff]
    %v721 = vld [vmem:[#allocation6 + $0x830] sm:$0xff]
    %v722 = vld [vmem:[#allocation6 + $0x838] sm:$0xff]
    %v723 = vld [vmem:[#allocation6 + $0x840] sm:$0xff]
    %v724 = vld [vmem:[#allocation6 + $0x848] sm:$0xff]
    %v725 = vld [vmem:[#allocation6 + $0x850] sm:$0xff]
    %v726 = vld [vmem:[#allocation6 + $0x858] sm:$0xff]
    %v727 = vld [vmem:[#allocation6 + $0x860] sm:$0xff]
    %v728 = vld [vmem:[#allocation6 + $0x868] sm:$0xff]
    %v729 = vld [vmem:[#allocation6 + $0x870] sm:$0xff]
    %v730 = vld [vmem:[#allocation6 + $0x878] sm:$0xff]
    %v731 = vld [vmem:[#allocation6 + $0x880] sm:$0xff]
    %v732 = vld [vmem:[#allocation6 + $0x888] sm:$0xff]
    %v733 = vld [vmem:[#allocation6 + $0x890] sm:$0xff]
    %v734 = vld [vmem:[#allocation6 + $0x898] sm:$0xff]
    %v735 = vld [vmem:[#allocation6 + $0x8a0] sm:$0xff]
    %v736 = vld [vmem:[#allocation6 + $0x8a8] sm:$0xff]
    %v737 = vld [vmem:[#allocation6 + $0x8b0] sm:$0xff]
    %v738 = vld [vmem:[#allocation6 + $0x8b8] sm:$0xff]
    %v739 = vld [vmem:[#allocation6 + $0x8c0] sm:$0xff]
    %v740 = vld [vmem:[#allocation6 + $0x8c8] sm:$0xff]
    %v741 = vld [vmem:[#allocation6 + $0x8d0] sm:$0xff]
    %v742 = vld [vmem:[#allocation6 + $0x8d8] sm:$0xff]
    %v743 = vld [vmem:[#allocation6 + $0x8e0] sm:$0xff]
    %v744 = vld [vmem:[#allocation6 + $0x8e8] sm:$0xff]
    %v745 = vld [vmem:[#allocation6 + $0x8f0] sm:$0xff]
    %v746 = vld [vmem:[#allocation6 + $0x8f8] sm:$0xff]
    %v747 = vld [vmem:[#allocation6 + $0x900] sm:$0xff]
    %v748 = vld [vmem:[#allocation6 + $0x908] sm:$0xff]
    %v749 = vld [vmem:[#allocation6 + $0x910] sm:$0xff]
    %v750 = vld [vmem:[#allocation6 + $0x918] sm:$0xff]
    %v751 = vld [vmem:[#allocation6 + $0x920] sm:$0xff]
    %v752 = vld [vmem:[#allocation6 + $0x928] sm:$0xff]
    %v753 = vld [vmem:[#allocation6 + $0x930] sm:$0xff]
    %v754 = vld [vmem:[#allocation6 + $0x938] sm:$0xff]
    %v755 = vld [vmem:[#allocation6 + $0x940] sm:$0xff]
    %v756 = vld [vmem:[#allocation6 + $0x948] sm:$0xff]
    %v757 = vld [vmem:[#allocation6 + $0x950] sm:$0xff]
    %v758 = vld [vmem:[#allocation6 + $0x958] sm:$0xff]
    %v759 = vld [vmem:[#allocation6 + $0x960] sm:$0xff]
    %v760 = vld [vmem:[#allocation6 + $0x968] sm:$0xff]
    %v761 = vld [vmem:[#allocation6 + $0x970] sm:$0xff]
    %v762 = vld [vmem:[#allocation6 + $0x978] sm:$0xff]
    %v763 = vld [vmem:[#allocation6 + $0x980] sm:$0xff]
    %v764 = vld [vmem:[#allocation6 + $0x988] sm:$0xff]
    %v765 = vld [vmem:[#allocation6 + $0x990] sm:$0xff]
    %v766 = vld [vmem:[#allocation6 + $0x998] sm:$0xff]
    %v767 = vld [vmem:[#allocation6 + $0x9a0] sm:$0xff]
    %v768 = vld [vmem:[#allocation6 + $0x9a8] sm:$0xff]
    %v769 = vld [vmem:[#allocation6 + $0x9b0] sm:$0xff]
    %v770 = vld [vmem:[#allocation6 + $0x9b8] sm:$0xff]
    %v771 = vld [vmem:[#allocation6 + $0x9c0] sm:$0xff]
    %v772 = vld [vmem:[#allocation6 + $0x9c8] sm:$0xff]
    %v773 = vld [vmem:[#allocation6 + $0x9d0] sm:$0xff]
    %v774 = vld [vmem:[#allocation6 + $0x9d8] sm:$0xff]
    %v775 = vld [vmem:[#allocation6 + $0x9e0] sm:$0xff]
    %v776 = vld [vmem:[#allocation6 + $0x9e8] sm:$0xff]
    %v777 = vld [vmem:[#allocation6 + $0x9f0] sm:$0xff]
    %v778 = vld [vmem:[#allocation6 + $0x9f8] sm:$0xff]
    %v779 = vld [vmem:[#allocation6 + $0xa00] sm:$0xff]
    %v780 = vld [vmem:[#allocation6 + $0xa08] sm:$0xff]
    %v781 = vld [vmem:[#allocation6 + $0xa10] sm:$0xff]
    %v782 = vld [vmem:[#allocation6 + $0xa18] sm:$0xff]
    %v783 = vld [vmem:[#allocation6 + $0xa20] sm:$0xff]
    %v784 = vld [vmem:[#allocation6 + $0xa28] sm:$0xff]
    %v785 = vld [vmem:[#allocation6 + $0xa30] sm:$0xff]
    %v786 = vld [vmem:[#allocation6 + $0xa38] sm:$0xff]
    %v787 = vld [vmem:[#allocation6 + $0xa40] sm:$0xff]
    %v788 = vld [vmem:[#allocation6 + $0xa48] sm:$0xff]
    %v789 = vld [vmem:[#allocation6 + $0xa50] sm:$0xff]
    %v790 = vld [vmem:[#allocation6 + $0xa58] sm:$0xff]
    %v791 = vld [vmem:[#allocation6 + $0xa60] sm:$0xff]
    %v792 = vld [vmem:[#allocation6 + $0xa68] sm:$0xff]
    %v793 = vld [vmem:[#allocation6 + $0xa70] sm:$0xff]
    %v794 = vld [vmem:[#allocation6 + $0xa78] sm:$0xff]
    %v795 = vld [vmem:[#allocation6 + $0xa80] sm:$0xff]
    %v796 = vld [vmem:[#allocation6 + $0xa88] sm:$0xff]
    %v797 = vld [vmem:[#allocation6 + $0xa90] sm:$0xff]
    %v798 = vld [vmem:[#allocation6 + $0xa98] sm:$0xff]
    %v799 = vld [vmem:[#allocation6 + $0xaa0] sm:$0xff]
    %v800 = vld [vmem:[#allocation6 + $0xaa8] sm:$0xff]
    %v801 = vld [vmem:[#allocation6 + $0xab0] sm:$0xff]
    %v802 = vld [vmem:[#allocation6 + $0xab8] sm:$0xff]
    %v803 = vld [vmem:[#allocation6 + $0xac0] sm:$0xff]
    %v804 = vld [vmem:[#allocation6 + $0xac8] sm:$0xff]
    %v805 = vld [vmem:[#allocation6 + $0xad0] sm:$0xff]
    %v806 = vld [vmem:[#allocation6 + $0xad8] sm:$0xff]
    %v807 = vld [vmem:[#allocation6 + $0xae0] sm:$0xff]
    %v808 = vld [vmem:[#allocation6 + $0xae8] sm:$0xff]
    %v809 = vld [vmem:[#allocation6 + $0xaf0] sm:$0xff]
    %v810 = vld [vmem:[#allocation6 + $0xaf8] sm:$0xff]
    %v811 = vld [vmem:[#allocation6 + $0xb00] sm:$0xff]
    %v812 = vld [vmem:[#allocation6 + $0xb08] sm:$0xff]
    %v813 = vld [vmem:[#allocation6 + $0xb10] sm:$0xff]
    %v814 = vld [vmem:[#allocation6 + $0xb18] sm:$0xff]
    %v815 = vld [vmem:[#allocation6 + $0xb20] sm:$0xff]
    %v816 = vld [vmem:[#allocation6 + $0xb28] sm:$0xff]
    %v817 = vld [vmem:[#allocation6 + $0xb30] sm:$0xff]
    %v818 = vld [vmem:[#allocation6 + $0xb38] sm:$0xff]
    %v819 = vld [vmem:[#allocation6 + $0xb40] sm:$0xff]
    %v820 = vld [vmem:[#allocation6 + $0xb48] sm:$0xff]
    %v821 = vld [vmem:[#allocation6 + $0xb50] sm:$0xff]
    %v822 = vld [vmem:[#allocation6 + $0xb58] sm:$0xff]
    %v823 = vld [vmem:[#allocation6 + $0xb60] sm:$0xff]
    %v824 = vld [vmem:[#allocation6 + $0xb68] sm:$0xff]
    %v825 = vld [vmem:[#allocation6 + $0xb70] sm:$0xff]
    %v826 = vld [vmem:[#allocation6 + $0xb78] sm:$0xff]
    %v827 = vld [vmem:[#allocation6 + $0xb80] sm:$0xff]
    %v828 = vld [vmem:[#allocation6 + $0xb88] sm:$0xff]
    %v829 = vld [vmem:[#allocation6 + $0xb90] sm:$0xff]
    %v830 = vld [vmem:[#allocation6 + $0xb98] sm:$0xff]
    %v831 = vld [vmem:[#allocation6 + $0xba0] sm:$0xff]
    %v832 = vld [vmem:[#allocation6 + $0xba8] sm:$0xff]
    %v833 = vld [vmem:[#allocation6 + $0xbb0] sm:$0xff]
    %v834 = vld [vmem:[#allocation6 + $0xbb8] sm:$0xff]
    %v835 = vld [vmem:[#allocation6 + $0xbc0] sm:$0xff]
    %v836 = vld [vmem:[#allocation6 + $0xbc8] sm:$0xff]
    %v837 = vld [vmem:[#allocation6 + $0xbd0] sm:$0xff]
    %v838 = vld [vmem:[#allocation6 + $0xbd8] sm:$0xff]
    %v839 = vld [vmem:[#allocation6 + $0xbe0] sm:$0xff]
    %v840 = vld [vmem:[#allocation6 + $0xbe8] sm:$0xff]
    %v841 = vld [vmem:[#allocation6 + $0xbf0] sm:$0xff]
    %v842 = vld [vmem:[#allocation6 + $0xbf8] sm:$0xff]
    %v843 = vld [vmem:[#allocation6 + $0xc00] sm:$0xff]
    %v844 = vld [vmem:[#allocation6 + $0xc08] sm:$0xff]
    %v845 = vld [vmem:[#allocation6 + $0xc10] sm:$0xff]
    %v846 = vld [vmem:[#allocation6 + $0xc18] sm:$0xff]
    %v847 = vld [vmem:[#allocation6 + $0xc20] sm:$0xff]
    %v848 = vld [vmem:[#allocation6 + $0xc28] sm:$0xff]
    %v849 = vld [vmem:[#allocation6 + $0xc30] sm:$0xff]
    %v850 = vld [vmem:[#allocation6 + $0xc38] sm:$0xff]
    %v851 = vld [vmem:[#allocation6 + $0xc40] sm:$0xff]
    %v852 = vld [vmem:[#allocation6 + $0xc48] sm:$0xff]
    %v853 = vld [vmem:[#allocation6 + $0xc50] sm:$0xff]
    %v854 = vld [vmem:[#allocation6 + $0xc58] sm:$0xff]
    %v855 = vld [vmem:[#allocation6 + $0xc60] sm:$0xff]
    %v856 = vld [vmem:[#allocation6 + $0xc68] sm:$0xff]
    %v857 = vld [vmem:[#allocation6 + $0xc70] sm:$0xff]
    %v858 = vld [vmem:[#allocation6 + $0xc78] sm:$0xff]
    %v859 = vld [vmem:[#allocation6 + $0xc80] sm:$0xff]
    %v860 = vld [vmem:[#allocation6 + $0xc88] sm:$0xff]
    %v861 = vld [vmem:[#allocation6 + $0xc90] sm:$0xff]
    %v862 = vld [vmem:[#allocation6 + $0xc98] sm:$0xff]
    %v863 = vld [vmem:[#allocation6 + $0xca0] sm:$0xff]
    %v864 = vld [vmem:[#allocation6 + $0xca8] sm:$0xff]
    %v865 = vld [vmem:[#allocation6 + $0xcb0] sm:$0xff]
    %v866 = vld [vmem:[#allocation6 + $0xcb8] sm:$0xff]
    %v867 = vld [vmem:[#allocation6 + $0xcc0] sm:$0xff]
    %v868 = vld [vmem:[#allocation6 + $0xcc8] sm:$0xff]
    %v869 = vld [vmem:[#allocation6 + $0xcd0] sm:$0xff]
    %v870 = vld [vmem:[#allocation6 + $0xcd8] sm:$0xff]
    %v871 = vld [vmem:[#allocation6 + $0xce0] sm:$0xff]
    %v872 = vld [vmem:[#allocation6 + $0xce8] sm:$0xff]
    %v873 = vld [vmem:[#allocation6 + $0xcf0] sm:$0xff]
    %v874 = vld [vmem:[#allocation6 + $0xcf8] sm:$0xff]
    %v875 = vld [vmem:[#allocation6 + $0xd00] sm:$0xff]
    %v876 = vld [vmem:[#allocation6 + $0xd08] sm:$0xff]
    %v877 = vld [vmem:[#allocation6 + $0xd10] sm:$0xff]
    %v878 = vld [vmem:[#allocation6 + $0xd18] sm:$0xff]
    %v879 = vld [vmem:[#allocation6 + $0xd20] sm:$0xff]
    %v880 = vld [vmem:[#allocation6 + $0xd28] sm:$0xff]
    %v881 = vld [vmem:[#allocation6 + $0xd30] sm:$0xff]
    %v882 = vld [vmem:[#allocation6 + $0xd38] sm:$0xff]
    %v883 = vld [vmem:[#allocation6 + $0xd40] sm:$0xff]
    %v884 = vld [vmem:[#allocation6 + $0xd48] sm:$0xff]
    %v885 = vld [vmem:[#allocation6 + $0xd50] sm:$0xff]
    %v886 = vld [vmem:[#allocation6 + $0xd58] sm:$0xff]
    %v887 = vld [vmem:[#allocation6 + $0xd60] sm:$0xff]
    %v888 = vld [vmem:[#allocation6 + $0xd68] sm:$0xff]
    %v889 = vld [vmem:[#allocation6 + $0xd70] sm:$0xff]
    %v890 = vld [vmem:[#allocation6 + $0xd78] sm:$0xff]
    %v891 = vld [vmem:[#allocation6 + $0xd80] sm:$0xff]
    %v892 = vld [vmem:[#allocation6 + $0xd88] sm:$0xff]
    %v893 = vld [vmem:[#allocation6 + $0xd90] sm:$0xff]
    %v894 = vld [vmem:[#allocation6 + $0xd98] sm:$0xff]
    %v895 = vld [vmem:[#allocation6 + $0xda0] sm:$0xff]
    %v896 = vld [vmem:[#allocation6 + $0xda8] sm:$0xff]
    %v897 = vld [vmem:[#allocation6 + $0xdb0] sm:$0xff]
    %v898 = vld [vmem:[#allocation6 + $0xdb8] sm:$0xff]
    %v899 = vld [vmem:[#allocation6 + $0xdc0] sm:$0xff]
    %v900 = vld [vmem:[#allocation6 + $0xdc8] sm:$0xff]
    %v901 = vld [vmem:[#allocation6 + $0xdd0] sm:$0xff]
    %v902 = vld [vmem:[#allocation6 + $0xdd8] sm:$0xff]
    %v903 = vld [vmem:[#allocation6 + $0xde0] sm:$0xff]
    %v904 = vld [vmem:[#allocation6 + $0xde8] sm:$0xff]
    %v905 = vld [vmem:[#allocation6 + $0xdf0] sm:$0xff]
    %v906 = vld [vmem:[#allocation6 + $0xdf8] sm:$0xff]
    %v907 = vld [vmem:[#allocation6 + $0xe00] sm:$0xff]
    %v908 = vld [vmem:[#allocation6 + $0xe08] sm:$0xff]
    %v909 = vld [vmem:[#allocation6 + $0xe10] sm:$0xff]
    %v910 = vld [vmem:[#allocation6 + $0xe18] sm:$0xff]
    %v911 = vld [vmem:[#allocation6 + $0xe20] sm:$0xff]
    %v912 = vld [vmem:[#allocation6 + $0xe28] sm:$0xff]
    %v913 = vld [vmem:[#allocation6 + $0xe30] sm:$0xff]
    %v914 = vld [vmem:[#allocation6 + $0xe38] sm:$0xff]
    %v915 = vld [vmem:[#allocation6 + $0xe40] sm:$0xff]
    %v916 = vld [vmem:[#allocation6 + $0xe48] sm:$0xff]
    %v917 = vld [vmem:[#allocation6 + $0xe50] sm:$0xff]
    %v918 = vld [vmem:[#allocation6 + $0xe58] sm:$0xff]
    %v919 = vld [vmem:[#allocation6 + $0xe60] sm:$0xff]
    %v920 = vld [vmem:[#allocation6 + $0xe68] sm:$0xff]
    %v921 = vld [vmem:[#allocation6 + $0xe70] sm:$0xff]
    %v922 = vld [vmem:[#allocation6 + $0xe78] sm:$0xff]
    %v923 = vld [vmem:[#allocation6 + $0xe80] sm:$0xff]
    %v924 = vld [vmem:[#allocation6 + $0xe88] sm:$0xff]
    %v925 = vld [vmem:[#allocation6 + $0xe90] sm:$0xff]
    %v926 = vld [vmem:[#allocation6 + $0xe98] sm:$0xff]
    %v927 = vld [vmem:[#allocation6 + $0xea0] sm:$0xff]
    %v928 = vld [vmem:[#allocation6 + $0xea8] sm:$0xff]
    %v929 = vld [vmem:[#allocation6 + $0xeb0] sm:$0xff]
    %v930 = vld [vmem:[#allocation6 + $0xeb8] sm:$0xff]
    %v931 = vld [vmem:[#allocation6 + $0xec0] sm:$0xff]
    %v932 = vld [vmem:[#allocation6 + $0xec8] sm:$0xff]
    %v933 = vld [vmem:[#allocation6 + $0xed0] sm:$0xff]
    %v934 = vld [vmem:[#allocation6 + $0xed8] sm:$0xff]
    %v935 = vld [vmem:[#allocation6 + $0xee0] sm:$0xff]
    %v936 = vld [vmem:[#allocation6 + $0xee8] sm:$0xff]
    %v937 = vld [vmem:[#allocation6 + $0xef0] sm:$0xff]
    %v938 = vld [vmem:[#allocation6 + $0xef8] sm:$0xff]
    %v939 = vld [vmem:[#allocation6 + $0xf00] sm:$0xff]
    %v940 = vld [vmem:[#allocation6 + $0xf08] sm:$0xff]
    %v941 = vld [vmem:[#allocation6 + $0xf10] sm:$0xff]
    %v942 = vld [vmem:[#allocation6 + $0xf18] sm:$0xff]
    %v943 = vld [vmem:[#allocation6 + $0xf20] sm:$0xff]
    %v944 = vld [vmem:[#allocation6 + $0xf28] sm:$0xff]
    %v945 = vld [vmem:[#allocation6 + $0xf30] sm:$0xff]
    %v946 = vld [vmem:[#allocation6 + $0xf38] sm:$0xff]
    %v947 = vld [vmem:[#allocation6 + $0xf40] sm:$0xff]
    %v948 = vld [vmem:[#allocation6 + $0xf48] sm:$0xff]
    %v949 = vld [vmem:[#allocation6 + $0xf50] sm:$0xff]
    %v950 = vld [vmem:[#allocation6 + $0xf58] sm:$0xff]
    %v951 = vld [vmem:[#allocation6 + $0xf60] sm:$0xff]
    %v952 = vld [vmem:[#allocation6 + $0xf68] sm:$0xff]
    %v953 = vld [vmem:[#allocation6 + $0xf70] sm:$0xff]
    %v954 = vld [vmem:[#allocation6 + $0xf78] sm:$0xff]
    %v955 = vld [vmem:[#allocation6 + $0xf80] sm:$0xff]
    %v956 = vld [vmem:[#allocation6 + $0xf88] sm:$0xff]
    %v957 = vld [vmem:[#allocation6 + $0xf90] sm:$0xff]
    %v958 = vld [vmem:[#allocation6 + $0xf98] sm:$0xff]
    %v959 = vld [vmem:[#allocation6 + $0xfa0] sm:$0xff]
    %v960 = vld [vmem:[#allocation6 + $0xfa8] sm:$0xff]
    %v961 = vld [vmem:[#allocation6 + $0xfb0] sm:$0xff]
    %v962 = vld [vmem:[#allocation6 + $0xfb8] sm:$0xff]
    %v963 = vld [vmem:[#allocation6 + $0xfc0] sm:$0xff]
    %v964 = vld [vmem:[#allocation6 + $0xfc8] sm:$0xff]
    %v965 = vld [vmem:[#allocation6 + $0xfd0] sm:$0xff]
    %v966 = vld [vmem:[#allocation6 + $0xfd8] sm:$0xff]
    %v967 = vld [vmem:[#allocation6 + $0xfe0] sm:$0xff]
    %v968 = vld [vmem:[#allocation6 + $0xfe8] sm:$0xff]
    %v969 = vld [vmem:[#allocation6 + $0xff0] sm:$0xff]
    %v970 = vld [vmem:[#allocation6 + $0xff8] sm:$0xff]
    %v971 = vld [vmem:[#allocation7] sm:$0xff]
    %v973 = vlaneseq
    %v974 = vshrl.u32 %v973, 7
    %v975 = vsub.s32 0, %v974
    %v976 = vrot.slane %v971, %v975
    %v977 = vlaneseq
    %v978 = vshrl.u32 %v977, 7
    %v979 = vsub.s32 1, %v978
    %v980 = vrot.slane %v971, %v979
    %v981 = vlaneseq
    %v982 = vshrl.u32 %v981, 7
    %v983 = vsub.s32 2, %v982
    %v984 = vrot.slane %v971, %v983
    %v985 = vlaneseq
    %v986 = vshrl.u32 %v985, 7
    %v987 = vsub.s32 3, %v986
    %v988 = vrot.slane %v971, %v987
    %v989 = vlaneseq
    %v990 = vshrl.u32 %v989, 7
    %v991 = vsub.s32 4, %v990
    %v992 = vrot.slane %v971, %v991
    %v993 = vlaneseq
    %v994 = vshrl.u32 %v993, 7
    %v995 = vsub.s32 5, %v994
    %v996 = vrot.slane %v971, %v995
    %v997 = vlaneseq
    %v998 = vshrl.u32 %v997, 7
    %v999 = vsub.s32 6, %v998
    %v1000 = vrot.slane %v971, %v999
    %v1001 = vlaneseq
    %v1002 = vshrl.u32 %v1001, 7
    %v1003 = vsub.s32 7, %v1002
    %v1004 = vrot.slane %v971, %v1003
    %v1525 = vunpack.c.l.b16 %v459
    %v1526 = vunpack.c.h.b16 %v459
    %v1527 = vunpack.c.l.b16 %v460
    %v1528 = vunpack.c.h.b16 %v460
    %v1529 = vunpack.c.l.b16 %v461
    %v1530 = vunpack.c.h.b16 %v461
    %v1531 = vunpack.c.l.b16 %v462
    %v1532 = vunpack.c.h.b16 %v462
    %v1533 = vunpack.c.l.b16 %v463
    %v1534 = vunpack.c.h.b16 %v463
    %v1535 = vunpack.c.l.b16 %v464
    %v1536 = vunpack.c.h.b16 %v464
    %v1537 = vunpack.c.l.b16 %v465
    %v1538 = vunpack.c.h.b16 %v465
    %v1539 = vunpack.c.l.b16 %v466
    %v1540 = vunpack.c.h.b16 %v466
    %v1541 = vunpack.c.l.b16 %v467
    %v1542 = vunpack.c.h.b16 %v467
    %v1543 = vunpack.c.l.b16 %v468
    %v1544 = vunpack.c.h.b16 %v468
    %v1545 = vunpack.c.l.b16 %v469
    %v1546 = vunpack.c.h.b16 %v469
    %v1547 = vunpack.c.l.b16 %v470
    %v1548 = vunpack.c.h.b16 %v470
    %v1549 = vunpack.c.l.b16 %v471
    %v1550 = vunpack.c.h.b16 %v471
    %v1551 = vunpack.c.l.b16 %v472
    %v1552 = vunpack.c.h.b16 %v472
    %v1553 = vunpack.c.l.b16 %v473
    %v1554 = vunpack.c.h.b16 %v473
    %v1555 = vunpack.c.l.b16 %v474
    %v1556 = vunpack.c.h.b16 %v474
    %v1557 = vunpack.c.l.b16 %v475
    %v1558 = vunpack.c.h.b16 %v475
    %v1559 = vunpack.c.l.b16 %v476
    %v1560 = vunpack.c.h.b16 %v476
    %v1561 = vunpack.c.l.b16 %v477
    %v1562 = vunpack.c.h.b16 %v477
    %v1563 = vunpack.c.l.b16 %v478
    %v1564 = vunpack.c.h.b16 %v478
    %v1565 = vunpack.c.l.b16 %v479
    %v1566 = vunpack.c.h.b16 %v479
    %v1567 = vunpack.c.l.b16 %v480
    %v1568 = vunpack.c.h.b16 %v480
    %v1569 = vunpack.c.l.b16 %v481
    %v1570 = vunpack.c.h.b16 %v481
    %v1571 = vunpack.c.l.b16 %v482
    %v1572 = vunpack.c.h.b16 %v482
    %v1573 = vunpack.c.l.b16 %v483
    %v1574 = vunpack.c.h.b16 %v483
    %v1575 = vunpack.c.l.b16 %v484
    %v1576 = vunpack.c.h.b16 %v484
    %v1577 = vunpack.c.l.b16 %v485
    %v1578 = vunpack.c.h.b16 %v485
    %v1579 = vunpack.c.l.b16 %v486
    %v1580 = vunpack.c.h.b16 %v486
    %v1581 = vunpack.c.l.b16 %v487
    %v1582 = vunpack.c.h.b16 %v487
    %v1583 = vunpack.c.l.b16 %v488
    %v1584 = vunpack.c.h.b16 %v488
    %v1585 = vunpack.c.l.b16 %v489
    %v1586 = vunpack.c.h.b16 %v489
    %v1587 = vunpack.c.l.b16 %v490
    %v1588 = vunpack.c.h.b16 %v490
    %v1589 = vunpack.c.l.b16 %v491
    %v1590 = vunpack.c.h.b16 %v491
    %v1591 = vunpack.c.l.b16 %v492
    %v1592 = vunpack.c.h.b16 %v492
    %v1593 = vunpack.c.l.b16 %v493
    %v1594 = vunpack.c.h.b16 %v493
    %v1595 = vunpack.c.l.b16 %v494
    %v1596 = vunpack.c.h.b16 %v494
    %v1597 = vunpack.c.l.b16 %v495
    %v1598 = vunpack.c.h.b16 %v495
    %v1599 = vunpack.c.l.b16 %v496
    %v1600 = vunpack.c.h.b16 %v496
    %v1601 = vunpack.c.l.b16 %v497
    %v1602 = vunpack.c.h.b16 %v497
    %v1603 = vunpack.c.l.b16 %v498
    %v1604 = vunpack.c.h.b16 %v498
    %v1605 = vunpack.c.l.b16 %v499
    %v1606 = vunpack.c.h.b16 %v499
    %v1607 = vunpack.c.l.b16 %v500
    %v1608 = vunpack.c.h.b16 %v500
    %v1609 = vunpack.c.l.b16 %v501
    %v1610 = vunpack.c.h.b16 %v501
    %v1611 = vunpack.c.l.b16 %v502
    %v1612 = vunpack.c.h.b16 %v502
    %v1613 = vunpack.c.l.b16 %v503
    %v1614 = vunpack.c.h.b16 %v503
    %v1615 = vunpack.c.l.b16 %v504
    %v1616 = vunpack.c.h.b16 %v504
    %v1617 = vunpack.c.l.b16 %v505
    %v1618 = vunpack.c.h.b16 %v505
    %v1619 = vunpack.c.l.b16 %v506
    %v1620 = vunpack.c.h.b16 %v506
    %v1621 = vunpack.c.l.b16 %v507
    %v1622 = vunpack.c.h.b16 %v507
    %v1623 = vunpack.c.l.b16 %v508
    %v1624 = vunpack.c.h.b16 %v508
    %v1625 = vunpack.c.l.b16 %v509
    %v1626 = vunpack.c.h.b16 %v509
    %v1627 = vunpack.c.l.b16 %v510
    %v1628 = vunpack.c.h.b16 %v510
    %v1629 = vunpack.c.l.b16 %v511
    %v1630 = vunpack.c.h.b16 %v511
    %v1631 = vunpack.c.l.b16 %v512
    %v1632 = vunpack.c.h.b16 %v512
    %v1633 = vunpack.c.l.b16 %v513
    %v1634 = vunpack.c.h.b16 %v513
    %v1635 = vunpack.c.l.b16 %v514
    %v1636 = vunpack.c.h.b16 %v514
    %v1637 = vunpack.c.l.b16 %v515
    %v1638 = vunpack.c.h.b16 %v515
    %v1639 = vunpack.c.l.b16 %v516
    %v1640 = vunpack.c.h.b16 %v516
    %v1641 = vunpack.c.l.b16 %v517
    %v1642 = vunpack.c.h.b16 %v517
    %v1643 = vunpack.c.l.b16 %v518
    %v1644 = vunpack.c.h.b16 %v518
    %v1645 = vunpack.c.l.b16 %v519
    %v1646 = vunpack.c.h.b16 %v519
    %v1647 = vunpack.c.l.b16 %v520
    %v1648 = vunpack.c.h.b16 %v520
    %v1649 = vunpack.c.l.b16 %v521
    %v1650 = vunpack.c.h.b16 %v521
    %v1651 = vunpack.c.l.b16 %v522
    %v1652 = vunpack.c.h.b16 %v522
    %v1653 = vunpack.c.l.b16 %v523
    %v1654 = vunpack.c.h.b16 %v523
    %v1655 = vunpack.c.l.b16 %v524
    %v1656 = vunpack.c.h.b16 %v524
    %v1657 = vunpack.c.l.b16 %v525
    %v1658 = vunpack.c.h.b16 %v525
    %v1659 = vunpack.c.l.b16 %v526
    %v1660 = vunpack.c.h.b16 %v526
    %v1661 = vunpack.c.l.b16 %v527
    %v1662 = vunpack.c.h.b16 %v527
    %v1663 = vunpack.c.l.b16 %v528
    %v1664 = vunpack.c.h.b16 %v528
    %v1665 = vunpack.c.l.b16 %v529
    %v1666 = vunpack.c.h.b16 %v529
    %v1667 = vunpack.c.l.b16 %v530
    %v1668 = vunpack.c.h.b16 %v530
    %v1669 = vunpack.c.l.b16 %v531
    %v1670 = vunpack.c.h.b16 %v531
    %v1671 = vunpack.c.l.b16 %v532
    %v1672 = vunpack.c.h.b16 %v532
    %v1673 = vunpack.c.l.b16 %v533
    %v1674 = vunpack.c.h.b16 %v533
    %v1675 = vunpack.c.l.b16 %v534
    %v1676 = vunpack.c.h.b16 %v534
    %v1677 = vunpack.c.l.b16 %v535
    %v1678 = vunpack.c.h.b16 %v535
    %v1679 = vunpack.c.l.b16 %v536
    %v1680 = vunpack.c.h.b16 %v536
    %v1681 = vunpack.c.l.b16 %v537
    %v1682 = vunpack.c.h.b16 %v537
    %v1683 = vunpack.c.l.b16 %v538
    %v1684 = vunpack.c.h.b16 %v538
    %v1685 = vunpack.c.l.b16 %v539
    %v1686 = vunpack.c.h.b16 %v539
    %v1687 = vunpack.c.l.b16 %v540
    %v1688 = vunpack.c.h.b16 %v540
    %v1689 = vunpack.c.l.b16 %v541
    %v1690 = vunpack.c.h.b16 %v541
    %v1691 = vunpack.c.l.b16 %v542
    %v1692 = vunpack.c.h.b16 %v542
    %v1693 = vunpack.c.l.b16 %v543
    %v1694 = vunpack.c.h.b16 %v543
    %v1695 = vunpack.c.l.b16 %v544
    %v1696 = vunpack.c.h.b16 %v544
    %v1697 = vunpack.c.l.b16 %v545
    %v1698 = vunpack.c.h.b16 %v545
    %v1699 = vunpack.c.l.b16 %v546
    %v1700 = vunpack.c.h.b16 %v546
    %v1701 = vunpack.c.l.b16 %v547
    %v1702 = vunpack.c.h.b16 %v547
    %v1703 = vunpack.c.l.b16 %v548
    %v1704 = vunpack.c.h.b16 %v548
    %v1705 = vunpack.c.l.b16 %v549
    %v1706 = vunpack.c.h.b16 %v549
    %v1707 = vunpack.c.l.b16 %v550
    %v1708 = vunpack.c.h.b16 %v550
    %v1709 = vunpack.c.l.b16 %v551
    %v1710 = vunpack.c.h.b16 %v551
    %v1711 = vunpack.c.l.b16 %v552
    %v1712 = vunpack.c.h.b16 %v552
    %v1713 = vunpack.c.l.b16 %v553
    %v1714 = vunpack.c.h.b16 %v553
    %v1715 = vunpack.c.l.b16 %v554
    %v1716 = vunpack.c.h.b16 %v554
    %v1717 = vunpack.c.l.b16 %v555
    %v1718 = vunpack.c.h.b16 %v555
    %v1719 = vunpack.c.l.b16 %v556
    %v1720 = vunpack.c.h.b16 %v556
    %v1721 = vunpack.c.l.b16 %v557
    %v1722 = vunpack.c.h.b16 %v557
    %v1723 = vunpack.c.l.b16 %v558
    %v1724 = vunpack.c.h.b16 %v558
    %v1725 = vunpack.c.l.b16 %v559
    %v1726 = vunpack.c.h.b16 %v559
    %v1727 = vunpack.c.l.b16 %v560
    %v1728 = vunpack.c.h.b16 %v560
    %v1729 = vunpack.c.l.b16 %v561
    %v1730 = vunpack.c.h.b16 %v561
    %v1731 = vunpack.c.l.b16 %v562
    %v1732 = vunpack.c.h.b16 %v562
    %v1733 = vunpack.c.l.b16 %v563
    %v1734 = vunpack.c.h.b16 %v563
    %v1735 = vunpack.c.l.b16 %v564
    %v1736 = vunpack.c.h.b16 %v564
    %v1737 = vunpack.c.l.b16 %v565
    %v1738 = vunpack.c.h.b16 %v565
    %v1739 = vunpack.c.l.b16 %v566
    %v1740 = vunpack.c.h.b16 %v566
    %v1741 = vunpack.c.l.b16 %v567
    %v1742 = vunpack.c.h.b16 %v567
    %v1743 = vunpack.c.l.b16 %v568
    %v1744 = vunpack.c.h.b16 %v568
    %v1745 = vunpack.c.l.b16 %v569
    %v1746 = vunpack.c.h.b16 %v569
    %v1747 = vunpack.c.l.b16 %v570
    %v1748 = vunpack.c.h.b16 %v570
    %v1749 = vunpack.c.l.b16 %v571
    %v1750 = vunpack.c.h.b16 %v571
    %v1751 = vunpack.c.l.b16 %v572
    %v1752 = vunpack.c.h.b16 %v572
    %v1753 = vunpack.c.l.b16 %v573
    %v1754 = vunpack.c.h.b16 %v573
    %v1755 = vunpack.c.l.b16 %v574
    %v1756 = vunpack.c.h.b16 %v574
    %v1757 = vunpack.c.l.b16 %v575
    %v1758 = vunpack.c.h.b16 %v575
    %v1759 = vunpack.c.l.b16 %v576
    %v1760 = vunpack.c.h.b16 %v576
    %v1761 = vunpack.c.l.b16 %v577
    %v1762 = vunpack.c.h.b16 %v577
    %v1763 = vunpack.c.l.b16 %v578
    %v1764 = vunpack.c.h.b16 %v578
    %v1765 = vunpack.c.l.b16 %v579
    %v1766 = vunpack.c.h.b16 %v579
    %v1767 = vunpack.c.l.b16 %v580
    %v1768 = vunpack.c.h.b16 %v580
    %v1769 = vunpack.c.l.b16 %v581
    %v1770 = vunpack.c.h.b16 %v581
    %v1771 = vunpack.c.l.b16 %v582
    %v1772 = vunpack.c.h.b16 %v582
    %v1773 = vunpack.c.l.b16 %v583
    %v1774 = vunpack.c.h.b16 %v583
    %v1775 = vunpack.c.l.b16 %v584
    %v1776 = vunpack.c.h.b16 %v584
    %v1777 = vunpack.c.l.b16 %v585
    %v1778 = vunpack.c.h.b16 %v585
    %v1779 = vunpack.c.l.b16 %v586
    %v1780 = vunpack.c.h.b16 %v586
    %v1781 = vunpack.c.l.b16 %v587
    %v1782 = vunpack.c.h.b16 %v587
    %v1783 = vunpack.c.l.b16 %v588
    %v1784 = vunpack.c.h.b16 %v588
    %v1785 = vunpack.c.l.b16 %v589
    %v1786 = vunpack.c.h.b16 %v589
    %v1787 = vunpack.c.l.b16 %v590
    %v1788 = vunpack.c.h.b16 %v590
    %v1789 = vunpack.c.l.b16 %v591
    %v1790 = vunpack.c.h.b16 %v591
    %v1791 = vunpack.c.l.b16 %v592
    %v1792 = vunpack.c.h.b16 %v592
    %v1793 = vunpack.c.l.b16 %v593
    %v1794 = vunpack.c.h.b16 %v593
    %v1795 = vunpack.c.l.b16 %v594
    %v1796 = vunpack.c.h.b16 %v594
    %v1797 = vunpack.c.l.b16 %v595
    %v1798 = vunpack.c.h.b16 %v595
    %v1799 = vunpack.c.l.b16 %v596
    %v1800 = vunpack.c.h.b16 %v596
    %v1801 = vunpack.c.l.b16 %v597
    %v1802 = vunpack.c.h.b16 %v597
    %v1803 = vunpack.c.l.b16 %v598
    %v1804 = vunpack.c.h.b16 %v598
    %v1805 = vunpack.c.l.b16 %v599
    %v1806 = vunpack.c.h.b16 %v599
    %v1807 = vunpack.c.l.b16 %v600
    %v1808 = vunpack.c.h.b16 %v600
    %v1809 = vunpack.c.l.b16 %v601
    %v1810 = vunpack.c.h.b16 %v601
    %v1811 = vunpack.c.l.b16 %v602
    %v1812 = vunpack.c.h.b16 %v602
    %v1813 = vunpack.c.l.b16 %v603
    %v1814 = vunpack.c.h.b16 %v603
    %v1815 = vunpack.c.l.b16 %v604
    %v1816 = vunpack.c.h.b16 %v604
    %v1817 = vunpack.c.l.b16 %v605
    %v1818 = vunpack.c.h.b16 %v605
    %v1819 = vunpack.c.l.b16 %v606
    %v1820 = vunpack.c.h.b16 %v606
    %v1821 = vunpack.c.l.b16 %v607
    %v1822 = vunpack.c.h.b16 %v607
    %v1823 = vunpack.c.l.b16 %v608
    %v1824 = vunpack.c.h.b16 %v608
    %v1825 = vunpack.c.l.b16 %v609
    %v1826 = vunpack.c.h.b16 %v609
    %v1827 = vunpack.c.l.b16 %v610
    %v1828 = vunpack.c.h.b16 %v610
    %v1829 = vunpack.c.l.b16 %v611
    %v1830 = vunpack.c.h.b16 %v611
    %v1831 = vunpack.c.l.b16 %v612
    %v1832 = vunpack.c.h.b16 %v612
    %v1833 = vunpack.c.l.b16 %v613
    %v1834 = vunpack.c.h.b16 %v613
    %v1835 = vunpack.c.l.b16 %v614
    %v1836 = vunpack.c.h.b16 %v614
    %v1837 = vunpack.c.l.b16 %v615
    %v1838 = vunpack.c.h.b16 %v615
    %v1839 = vunpack.c.l.b16 %v616
    %v1840 = vunpack.c.h.b16 %v616
    %v1841 = vunpack.c.l.b16 %v617
    %v1842 = vunpack.c.h.b16 %v617
    %v1843 = vunpack.c.l.b16 %v618
    %v1844 = vunpack.c.h.b16 %v618
    %v1845 = vunpack.c.l.b16 %v619
    %v1846 = vunpack.c.h.b16 %v619
    %v1847 = vunpack.c.l.b16 %v620
    %v1848 = vunpack.c.h.b16 %v620
    %v1849 = vunpack.c.l.b16 %v621
    %v1850 = vunpack.c.h.b16 %v621
    %v1851 = vunpack.c.l.b16 %v622
    %v1852 = vunpack.c.h.b16 %v622
    %v1853 = vunpack.c.l.b16 %v623
    %v1854 = vunpack.c.h.b16 %v623
    %v1855 = vunpack.c.l.b16 %v624
    %v1856 = vunpack.c.h.b16 %v624
    %v1857 = vunpack.c.l.b16 %v625
    %v1858 = vunpack.c.h.b16 %v625
    %v1859 = vunpack.c.l.b16 %v626
    %v1860 = vunpack.c.h.b16 %v626
    %v1861 = vunpack.c.l.b16 %v627
    %v1862 = vunpack.c.h.b16 %v627
    %v1863 = vunpack.c.l.b16 %v628
    %v1864 = vunpack.c.h.b16 %v628
    %v1865 = vunpack.c.l.b16 %v629
    %v1866 = vunpack.c.h.b16 %v629
    %v1867 = vunpack.c.l.b16 %v630
    %v1868 = vunpack.c.h.b16 %v630
    %v1869 = vunpack.c.l.b16 %v631
    %v1870 = vunpack.c.h.b16 %v631
    %v1871 = vunpack.c.l.b16 %v632
    %v1872 = vunpack.c.h.b16 %v632
    %v1873 = vunpack.c.l.b16 %v633
    %v1874 = vunpack.c.h.b16 %v633
    %v1875 = vunpack.c.l.b16 %v634
    %v1876 = vunpack.c.h.b16 %v634
    %v1877 = vunpack.c.l.b16 %v635
    %v1878 = vunpack.c.h.b16 %v635
    %v1879 = vunpack.c.l.b16 %v636
    %v1880 = vunpack.c.h.b16 %v636
    %v1881 = vunpack.c.l.b16 %v637
    %v1882 = vunpack.c.h.b16 %v637
    %v1883 = vunpack.c.l.b16 %v638
    %v1884 = vunpack.c.h.b16 %v638
    %v1885 = vunpack.c.l.b16 %v639
    %v1886 = vunpack.c.h.b16 %v639
    %v1887 = vunpack.c.l.b16 %v640
    %v1888 = vunpack.c.h.b16 %v640
    %v1889 = vunpack.c.l.b16 %v641
    %v1890 = vunpack.c.h.b16 %v641
    %v1891 = vunpack.c.l.b16 %v642
    %v1892 = vunpack.c.h.b16 %v642
    %v1893 = vunpack.c.l.b16 %v643
    %v1894 = vunpack.c.h.b16 %v643
    %v1895 = vunpack.c.l.b16 %v644
    %v1896 = vunpack.c.h.b16 %v644
    %v1897 = vunpack.c.l.b16 %v645
    %v1898 = vunpack.c.h.b16 %v645
    %v1899 = vunpack.c.l.b16 %v646
    %v1900 = vunpack.c.h.b16 %v646
    %v1901 = vunpack.c.l.b16 %v647
    %v1902 = vunpack.c.h.b16 %v647
    %v1903 = vunpack.c.l.b16 %v648
    %v1904 = vunpack.c.h.b16 %v648
    %v1905 = vunpack.c.l.b16 %v649
    %v1906 = vunpack.c.h.b16 %v649
    %v1907 = vunpack.c.l.b16 %v650
    %v1908 = vunpack.c.h.b16 %v650
    %v1909 = vunpack.c.l.b16 %v651
    %v1910 = vunpack.c.h.b16 %v651
    %v1911 = vunpack.c.l.b16 %v652
    %v1912 = vunpack.c.h.b16 %v652
    %v1913 = vunpack.c.l.b16 %v653
    %v1914 = vunpack.c.h.b16 %v653
    %v1915 = vunpack.c.l.b16 %v654
    %v1916 = vunpack.c.h.b16 %v654
    %v1917 = vunpack.c.l.b16 %v655
    %v1918 = vunpack.c.h.b16 %v655
    %v1919 = vunpack.c.l.b16 %v656
    %v1920 = vunpack.c.h.b16 %v656
    %v1921 = vunpack.c.l.b16 %v657
    %v1922 = vunpack.c.h.b16 %v657
    %v1923 = vunpack.c.l.b16 %v658
    %v1924 = vunpack.c.h.b16 %v658
    %v1925 = vunpack.c.l.b16 %v659
    %v1926 = vunpack.c.h.b16 %v659
    %v1927 = vunpack.c.l.b16 %v660
    %v1928 = vunpack.c.h.b16 %v660
    %v1929 = vunpack.c.l.b16 %v661
    %v1930 = vunpack.c.h.b16 %v661
    %v1931 = vunpack.c.l.b16 %v662
    %v1932 = vunpack.c.h.b16 %v662
    %v1933 = vunpack.c.l.b16 %v663
    %v1934 = vunpack.c.h.b16 %v663
    %v1935 = vunpack.c.l.b16 %v664
    %v1936 = vunpack.c.h.b16 %v664
    %v1937 = vunpack.c.l.b16 %v665
    %v1938 = vunpack.c.h.b16 %v665
    %v1939 = vunpack.c.l.b16 %v666
    %v1940 = vunpack.c.h.b16 %v666
    %v1941 = vunpack.c.l.b16 %v667
    %v1942 = vunpack.c.h.b16 %v667
    %v1943 = vunpack.c.l.b16 %v668
    %v1944 = vunpack.c.h.b16 %v668
    %v1945 = vunpack.c.l.b16 %v669
    %v1946 = vunpack.c.h.b16 %v669
    %v1947 = vunpack.c.l.b16 %v670
    %v1948 = vunpack.c.h.b16 %v670
    %v1949 = vunpack.c.l.b16 %v671
    %v1950 = vunpack.c.h.b16 %v671
    %v1951 = vunpack.c.l.b16 %v672
    %v1952 = vunpack.c.h.b16 %v672
    %v1953 = vunpack.c.l.b16 %v673
    %v1954 = vunpack.c.h.b16 %v673
    %v1955 = vunpack.c.l.b16 %v674
    %v1956 = vunpack.c.h.b16 %v674
    %v1957 = vunpack.c.l.b16 %v675
    %v1958 = vunpack.c.h.b16 %v675
    %v1959 = vunpack.c.l.b16 %v676
    %v1960 = vunpack.c.h.b16 %v676
    %v1961 = vunpack.c.l.b16 %v677
    %v1962 = vunpack.c.h.b16 %v677
    %v1963 = vunpack.c.l.b16 %v678
    %v1964 = vunpack.c.h.b16 %v678
    %v1965 = vunpack.c.l.b16 %v679
    %v1966 = vunpack.c.h.b16 %v679
    %v1967 = vunpack.c.l.b16 %v680
    %v1968 = vunpack.c.h.b16 %v680
    %v1969 = vunpack.c.l.b16 %v681
    %v1970 = vunpack.c.h.b16 %v681
    %v1971 = vunpack.c.l.b16 %v682
    %v1972 = vunpack.c.h.b16 %v682
    %v1973 = vunpack.c.l.b16 %v683
    %v1974 = vunpack.c.h.b16 %v683
    %v1975 = vunpack.c.l.b16 %v684
    %v1976 = vunpack.c.h.b16 %v684
    %v1977 = vunpack.c.l.b16 %v685
    %v1978 = vunpack.c.h.b16 %v685
    %v1979 = vunpack.c.l.b16 %v686
    %v1980 = vunpack.c.h.b16 %v686
    %v1981 = vunpack.c.l.b16 %v687
    %v1982 = vunpack.c.h.b16 %v687
    %v1983 = vunpack.c.l.b16 %v688
    %v1984 = vunpack.c.h.b16 %v688
    %v1985 = vunpack.c.l.b16 %v689
    %v1986 = vunpack.c.h.b16 %v689
    %v1987 = vunpack.c.l.b16 %v690
    %v1988 = vunpack.c.h.b16 %v690
    %v1989 = vunpack.c.l.b16 %v691
    %v1990 = vunpack.c.h.b16 %v691
    %v1991 = vunpack.c.l.b16 %v692
    %v1992 = vunpack.c.h.b16 %v692
    %v1993 = vunpack.c.l.b16 %v693
    %v1994 = vunpack.c.h.b16 %v693
    %v1995 = vunpack.c.l.b16 %v694
    %v1996 = vunpack.c.h.b16 %v694
    %v1997 = vunpack.c.l.b16 %v695
    %v1998 = vunpack.c.h.b16 %v695
    %v1999 = vunpack.c.l.b16 %v696
    %v2000 = vunpack.c.h.b16 %v696
    %v2001 = vunpack.c.l.b16 %v697
    %v2002 = vunpack.c.h.b16 %v697
    %v2003 = vunpack.c.l.b16 %v698
    %v2004 = vunpack.c.h.b16 %v698
    %v2005 = vunpack.c.l.b16 %v699
    %v2006 = vunpack.c.h.b16 %v699
    %v2007 = vunpack.c.l.b16 %v700
    %v2008 = vunpack.c.h.b16 %v700
    %v2009 = vunpack.c.l.b16 %v701
    %v2010 = vunpack.c.h.b16 %v701
    %v2011 = vunpack.c.l.b16 %v702
    %v2012 = vunpack.c.h.b16 %v702
    %v2013 = vunpack.c.l.b16 %v703
    %v2014 = vunpack.c.h.b16 %v703
    %v2015 = vunpack.c.l.b16 %v704
    %v2016 = vunpack.c.h.b16 %v704
    %v2017 = vunpack.c.l.b16 %v705
    %v2018 = vunpack.c.h.b16 %v705
    %v2019 = vunpack.c.l.b16 %v706
    %v2020 = vunpack.c.h.b16 %v706
    %v2021 = vunpack.c.l.b16 %v707
    %v2022 = vunpack.c.h.b16 %v707
    %v2023 = vunpack.c.l.b16 %v708
    %v2024 = vunpack.c.h.b16 %v708
    %v2025 = vunpack.c.l.b16 %v709
    %v2026 = vunpack.c.h.b16 %v709
    %v2027 = vunpack.c.l.b16 %v710
    %v2028 = vunpack.c.h.b16 %v710
    %v2029 = vunpack.c.l.b16 %v711
    %v2030 = vunpack.c.h.b16 %v711
    %v2031 = vunpack.c.l.b16 %v712
    %v2032 = vunpack.c.h.b16 %v712
    %v2033 = vunpack.c.l.b16 %v713
    %v2034 = vunpack.c.h.b16 %v713
    %v2035 = vunpack.c.l.b16 %v714
    %v2036 = vunpack.c.h.b16 %v714
    %v2037 = vunpack.c.l.b16 %v715
    %v2038 = vunpack.c.h.b16 %v715
    %v2039 = vunpack.c.l.b16 %v716
    %v2040 = vunpack.c.h.b16 %v716
    %v2041 = vunpack.c.l.b16 %v717
    %v2042 = vunpack.c.h.b16 %v717
    %v2043 = vunpack.c.l.b16 %v718
    %v2044 = vunpack.c.h.b16 %v718
    %v2045 = vunpack.c.l.b16 %v719
    %v2046 = vunpack.c.h.b16 %v719
    %v2047 = vunpack.c.l.b16 %v720
    %v2048 = vunpack.c.h.b16 %v720
    %v2049 = vunpack.c.l.b16 %v721
    %v2050 = vunpack.c.h.b16 %v721
    %v2051 = vunpack.c.l.b16 %v722
    %v2052 = vunpack.c.h.b16 %v722
    %v2053 = vunpack.c.l.b16 %v723
    %v2054 = vunpack.c.h.b16 %v723
    %v2055 = vunpack.c.l.b16 %v724
    %v2056 = vunpack.c.h.b16 %v724
    %v2057 = vunpack.c.l.b16 %v725
    %v2058 = vunpack.c.h.b16 %v725
    %v2059 = vunpack.c.l.b16 %v726
    %v2060 = vunpack.c.h.b16 %v726
    %v2061 = vunpack.c.l.b16 %v727
    %v2062 = vunpack.c.h.b16 %v727
    %v2063 = vunpack.c.l.b16 %v728
    %v2064 = vunpack.c.h.b16 %v728
    %v2065 = vunpack.c.l.b16 %v729
    %v2066 = vunpack.c.h.b16 %v729
    %v2067 = vunpack.c.l.b16 %v730
    %v2068 = vunpack.c.h.b16 %v730
    %v2069 = vunpack.c.l.b16 %v731
    %v2070 = vunpack.c.h.b16 %v731
    %v2071 = vunpack.c.l.b16 %v732
    %v2072 = vunpack.c.h.b16 %v732
    %v2073 = vunpack.c.l.b16 %v733
    %v2074 = vunpack.c.h.b16 %v733
    %v2075 = vunpack.c.l.b16 %v734
    %v2076 = vunpack.c.h.b16 %v734
    %v2077 = vunpack.c.l.b16 %v735
    %v2078 = vunpack.c.h.b16 %v735
    %v2079 = vunpack.c.l.b16 %v736
    %v2080 = vunpack.c.h.b16 %v736
    %v2081 = vunpack.c.l.b16 %v737
    %v2082 = vunpack.c.h.b16 %v737
    %v2083 = vunpack.c.l.b16 %v738
    %v2084 = vunpack.c.h.b16 %v738
    %v2085 = vunpack.c.l.b16 %v739
    %v2086 = vunpack.c.h.b16 %v739
    %v2087 = vunpack.c.l.b16 %v740
    %v2088 = vunpack.c.h.b16 %v740
    %v2089 = vunpack.c.l.b16 %v741
    %v2090 = vunpack.c.h.b16 %v741
    %v2091 = vunpack.c.l.b16 %v742
    %v2092 = vunpack.c.h.b16 %v742
    %v2093 = vunpack.c.l.b16 %v743
    %v2094 = vunpack.c.h.b16 %v743
    %v2095 = vunpack.c.l.b16 %v744
    %v2096 = vunpack.c.h.b16 %v744
    %v2097 = vunpack.c.l.b16 %v745
    %v2098 = vunpack.c.h.b16 %v745
    %v2099 = vunpack.c.l.b16 %v746
    %v2100 = vunpack.c.h.b16 %v746
    %v2101 = vunpack.c.l.b16 %v747
    %v2102 = vunpack.c.h.b16 %v747
    %v2103 = vunpack.c.l.b16 %v748
    %v2104 = vunpack.c.h.b16 %v748
    %v2105 = vunpack.c.l.b16 %v749
    %v2106 = vunpack.c.h.b16 %v749
    %v2107 = vunpack.c.l.b16 %v750
    %v2108 = vunpack.c.h.b16 %v750
    %v2109 = vunpack.c.l.b16 %v751
    %v2110 = vunpack.c.h.b16 %v751
    %v2111 = vunpack.c.l.b16 %v752
    %v2112 = vunpack.c.h.b16 %v752
    %v2113 = vunpack.c.l.b16 %v753
    %v2114 = vunpack.c.h.b16 %v753
    %v2115 = vunpack.c.l.b16 %v754
    %v2116 = vunpack.c.h.b16 %v754
    %v2117 = vunpack.c.l.b16 %v755
    %v2118 = vunpack.c.h.b16 %v755
    %v2119 = vunpack.c.l.b16 %v756
    %v2120 = vunpack.c.h.b16 %v756
    %v2121 = vunpack.c.l.b16 %v757
    %v2122 = vunpack.c.h.b16 %v757
    %v2123 = vunpack.c.l.b16 %v758
    %v2124 = vunpack.c.h.b16 %v758
    %v2125 = vunpack.c.l.b16 %v759
    %v2126 = vunpack.c.h.b16 %v759
    %v2127 = vunpack.c.l.b16 %v760
    %v2128 = vunpack.c.h.b16 %v760
    %v2129 = vunpack.c.l.b16 %v761
    %v2130 = vunpack.c.h.b16 %v761
    %v2131 = vunpack.c.l.b16 %v762
    %v2132 = vunpack.c.h.b16 %v762
    %v2133 = vunpack.c.l.b16 %v763
    %v2134 = vunpack.c.h.b16 %v763
    %v2135 = vunpack.c.l.b16 %v764
    %v2136 = vunpack.c.h.b16 %v764
    %v2137 = vunpack.c.l.b16 %v765
    %v2138 = vunpack.c.h.b16 %v765
    %v2139 = vunpack.c.l.b16 %v766
    %v2140 = vunpack.c.h.b16 %v766
    %v2141 = vunpack.c.l.b16 %v767
    %v2142 = vunpack.c.h.b16 %v767
    %v2143 = vunpack.c.l.b16 %v768
    %v2144 = vunpack.c.h.b16 %v768
    %v2145 = vunpack.c.l.b16 %v769
    %v2146 = vunpack.c.h.b16 %v769
    %v2147 = vunpack.c.l.b16 %v770
    %v2148 = vunpack.c.h.b16 %v770
    %v2149 = vunpack.c.l.b16 %v771
    %v2150 = vunpack.c.h.b16 %v771
    %v2151 = vunpack.c.l.b16 %v772
    %v2152 = vunpack.c.h.b16 %v772
    %v2153 = vunpack.c.l.b16 %v773
    %v2154 = vunpack.c.h.b16 %v773
    %v2155 = vunpack.c.l.b16 %v774
    %v2156 = vunpack.c.h.b16 %v774
    %v2157 = vunpack.c.l.b16 %v775
    %v2158 = vunpack.c.h.b16 %v775
    %v2159 = vunpack.c.l.b16 %v776
    %v2160 = vunpack.c.h.b16 %v776
    %v2161 = vunpack.c.l.b16 %v777
    %v2162 = vunpack.c.h.b16 %v777
    %v2163 = vunpack.c.l.b16 %v778
    %v2164 = vunpack.c.h.b16 %v778
    %v2165 = vunpack.c.l.b16 %v779
    %v2166 = vunpack.c.h.b16 %v779
    %v2167 = vunpack.c.l.b16 %v780
    %v2168 = vunpack.c.h.b16 %v780
    %v2169 = vunpack.c.l.b16 %v781
    %v2170 = vunpack.c.h.b16 %v781
    %v2171 = vunpack.c.l.b16 %v782
    %v2172 = vunpack.c.h.b16 %v782
    %v2173 = vunpack.c.l.b16 %v783
    %v2174 = vunpack.c.h.b16 %v783
    %v2175 = vunpack.c.l.b16 %v784
    %v2176 = vunpack.c.h.b16 %v784
    %v2177 = vunpack.c.l.b16 %v785
    %v2178 = vunpack.c.h.b16 %v785
    %v2179 = vunpack.c.l.b16 %v786
    %v2180 = vunpack.c.h.b16 %v786
    %v2181 = vunpack.c.l.b16 %v787
    %v2182 = vunpack.c.h.b16 %v787
    %v2183 = vunpack.c.l.b16 %v788
    %v2184 = vunpack.c.h.b16 %v788
    %v2185 = vunpack.c.l.b16 %v789
    %v2186 = vunpack.c.h.b16 %v789
    %v2187 = vunpack.c.l.b16 %v790
    %v2188 = vunpack.c.h.b16 %v790
    %v2189 = vunpack.c.l.b16 %v791
    %v2190 = vunpack.c.h.b16 %v791
    %v2191 = vunpack.c.l.b16 %v792
    %v2192 = vunpack.c.h.b16 %v792
    %v2193 = vunpack.c.l.b16 %v793
    %v2194 = vunpack.c.h.b16 %v793
    %v2195 = vunpack.c.l.b16 %v794
    %v2196 = vunpack.c.h.b16 %v794
    %v2197 = vunpack.c.l.b16 %v795
    %v2198 = vunpack.c.h.b16 %v795
    %v2199 = vunpack.c.l.b16 %v796
    %v2200 = vunpack.c.h.b16 %v796
    %v2201 = vunpack.c.l.b16 %v797
    %v2202 = vunpack.c.h.b16 %v797
    %v2203 = vunpack.c.l.b16 %v798
    %v2204 = vunpack.c.h.b16 %v798
    %v2205 = vunpack.c.l.b16 %v799
    %v2206 = vunpack.c.h.b16 %v799
    %v2207 = vunpack.c.l.b16 %v800
    %v2208 = vunpack.c.h.b16 %v800
    %v2209 = vunpack.c.l.b16 %v801
    %v2210 = vunpack.c.h.b16 %v801
    %v2211 = vunpack.c.l.b16 %v802
    %v2212 = vunpack.c.h.b16 %v802
    %v2213 = vunpack.c.l.b16 %v803
    %v2214 = vunpack.c.h.b16 %v803
    %v2215 = vunpack.c.l.b16 %v804
    %v2216 = vunpack.c.h.b16 %v804
    %v2217 = vunpack.c.l.b16 %v805
    %v2218 = vunpack.c.h.b16 %v805
    %v2219 = vunpack.c.l.b16 %v806
    %v2220 = vunpack.c.h.b16 %v806
    %v2221 = vunpack.c.l.b16 %v807
    %v2222 = vunpack.c.h.b16 %v807
    %v2223 = vunpack.c.l.b16 %v808
    %v2224 = vunpack.c.h.b16 %v808
    %v2225 = vunpack.c.l.b16 %v809
    %v2226 = vunpack.c.h.b16 %v809
    %v2227 = vunpack.c.l.b16 %v810
    %v2228 = vunpack.c.h.b16 %v810
    %v2229 = vunpack.c.l.b16 %v811
    %v2230 = vunpack.c.h.b16 %v811
    %v2231 = vunpack.c.l.b16 %v812
    %v2232 = vunpack.c.h.b16 %v812
    %v2233 = vunpack.c.l.b16 %v813
    %v2234 = vunpack.c.h.b16 %v813
    %v2235 = vunpack.c.l.b16 %v814
    %v2236 = vunpack.c.h.b16 %v814
    %v2237 = vunpack.c.l.b16 %v815
    %v2238 = vunpack.c.h.b16 %v815
    %v2239 = vunpack.c.l.b16 %v816
    %v2240 = vunpack.c.h.b16 %v816
    %v2241 = vunpack.c.l.b16 %v817
    %v2242 = vunpack.c.h.b16 %v817
    %v2243 = vunpack.c.l.b16 %v818
    %v2244 = vunpack.c.h.b16 %v818
    %v2245 = vunpack.c.l.b16 %v819
    %v2246 = vunpack.c.h.b16 %v819
    %v2247 = vunpack.c.l.b16 %v820
    %v2248 = vunpack.c.h.b16 %v820
    %v2249 = vunpack.c.l.b16 %v821
    %v2250 = vunpack.c.h.b16 %v821
    %v2251 = vunpack.c.l.b16 %v822
    %v2252 = vunpack.c.h.b16 %v822
    %v2253 = vunpack.c.l.b16 %v823
    %v2254 = vunpack.c.h.b16 %v823
    %v2255 = vunpack.c.l.b16 %v824
    %v2256 = vunpack.c.h.b16 %v824
    %v2257 = vunpack.c.l.b16 %v825
    %v2258 = vunpack.c.h.b16 %v825
    %v2259 = vunpack.c.l.b16 %v826
    %v2260 = vunpack.c.h.b16 %v826
    %v2261 = vunpack.c.l.b16 %v827
    %v2262 = vunpack.c.h.b16 %v827
    %v2263 = vunpack.c.l.b16 %v828
    %v2264 = vunpack.c.h.b16 %v828
    %v2265 = vunpack.c.l.b16 %v829
    %v2266 = vunpack.c.h.b16 %v829
    %v2267 = vunpack.c.l.b16 %v830
    %v2268 = vunpack.c.h.b16 %v830
    %v2269 = vunpack.c.l.b16 %v831
    %v2270 = vunpack.c.h.b16 %v831
    %v2271 = vunpack.c.l.b16 %v832
    %v2272 = vunpack.c.h.b16 %v832
    %v2273 = vunpack.c.l.b16 %v833
    %v2274 = vunpack.c.h.b16 %v833
    %v2275 = vunpack.c.l.b16 %v834
    %v2276 = vunpack.c.h.b16 %v834
    %v2277 = vunpack.c.l.b16 %v835
    %v2278 = vunpack.c.h.b16 %v835
    %v2279 = vunpack.c.l.b16 %v836
    %v2280 = vunpack.c.h.b16 %v836
    %v2281 = vunpack.c.l.b16 %v837
    %v2282 = vunpack.c.h.b16 %v837
    %v2283 = vunpack.c.l.b16 %v838
    %v2284 = vunpack.c.h.b16 %v838
    %v2285 = vunpack.c.l.b16 %v839
    %v2286 = vunpack.c.h.b16 %v839
    %v2287 = vunpack.c.l.b16 %v840
    %v2288 = vunpack.c.h.b16 %v840
    %v2289 = vunpack.c.l.b16 %v841
    %v2290 = vunpack.c.h.b16 %v841
    %v2291 = vunpack.c.l.b16 %v842
    %v2292 = vunpack.c.h.b16 %v842
    %v2293 = vunpack.c.l.b16 %v843
    %v2294 = vunpack.c.h.b16 %v843
    %v2295 = vunpack.c.l.b16 %v844
    %v2296 = vunpack.c.h.b16 %v844
    %v2297 = vunpack.c.l.b16 %v845
    %v2298 = vunpack.c.h.b16 %v845
    %v2299 = vunpack.c.l.b16 %v846
    %v2300 = vunpack.c.h.b16 %v846
    %v2301 = vunpack.c.l.b16 %v847
    %v2302 = vunpack.c.h.b16 %v847
    %v2303 = vunpack.c.l.b16 %v848
    %v2304 = vunpack.c.h.b16 %v848
    %v2305 = vunpack.c.l.b16 %v849
    %v2306 = vunpack.c.h.b16 %v849
    %v2307 = vunpack.c.l.b16 %v850
    %v2308 = vunpack.c.h.b16 %v850
    %v2309 = vunpack.c.l.b16 %v851
    %v2310 = vunpack.c.h.b16 %v851
    %v2311 = vunpack.c.l.b16 %v852
    %v2312 = vunpack.c.h.b16 %v852
    %v2313 = vunpack.c.l.b16 %v853
    %v2314 = vunpack.c.h.b16 %v853
    %v2315 = vunpack.c.l.b16 %v854
    %v2316 = vunpack.c.h.b16 %v854
    %v2317 = vunpack.c.l.b16 %v855
    %v2318 = vunpack.c.h.b16 %v855
    %v2319 = vunpack.c.l.b16 %v856
    %v2320 = vunpack.c.h.b16 %v856
    %v2321 = vunpack.c.l.b16 %v857
    %v2322 = vunpack.c.h.b16 %v857
    %v2323 = vunpack.c.l.b16 %v858
    %v2324 = vunpack.c.h.b16 %v858
    %v2325 = vunpack.c.l.b16 %v859
    %v2326 = vunpack.c.h.b16 %v859
    %v2327 = vunpack.c.l.b16 %v860
    %v2328 = vunpack.c.h.b16 %v860
    %v2329 = vunpack.c.l.b16 %v861
    %v2330 = vunpack.c.h.b16 %v861
    %v2331 = vunpack.c.l.b16 %v862
    %v2332 = vunpack.c.h.b16 %v862
    %v2333 = vunpack.c.l.b16 %v863
    %v2334 = vunpack.c.h.b16 %v863
    %v2335 = vunpack.c.l.b16 %v864
    %v2336 = vunpack.c.h.b16 %v864
    %v2337 = vunpack.c.l.b16 %v865
    %v2338 = vunpack.c.h.b16 %v865
    %v2339 = vunpack.c.l.b16 %v866
    %v2340 = vunpack.c.h.b16 %v866
    %v2341 = vunpack.c.l.b16 %v867
    %v2342 = vunpack.c.h.b16 %v867
    %v2343 = vunpack.c.l.b16 %v868
    %v2344 = vunpack.c.h.b16 %v868
    %v2345 = vunpack.c.l.b16 %v869
    %v2346 = vunpack.c.h.b16 %v869
    %v2347 = vunpack.c.l.b16 %v870
    %v2348 = vunpack.c.h.b16 %v870
    %v2349 = vunpack.c.l.b16 %v871
    %v2350 = vunpack.c.h.b16 %v871
    %v2351 = vunpack.c.l.b16 %v872
    %v2352 = vunpack.c.h.b16 %v872
    %v2353 = vunpack.c.l.b16 %v873
    %v2354 = vunpack.c.h.b16 %v873
    %v2355 = vunpack.c.l.b16 %v874
    %v2356 = vunpack.c.h.b16 %v874
    %v2357 = vunpack.c.l.b16 %v875
    %v2358 = vunpack.c.h.b16 %v875
    %v2359 = vunpack.c.l.b16 %v876
    %v2360 = vunpack.c.h.b16 %v876
    %v2361 = vunpack.c.l.b16 %v877
    %v2362 = vunpack.c.h.b16 %v877
    %v2363 = vunpack.c.l.b16 %v878
    %v2364 = vunpack.c.h.b16 %v878
    %v2365 = vunpack.c.l.b16 %v879
    %v2366 = vunpack.c.h.b16 %v879
    %v2367 = vunpack.c.l.b16 %v880
    %v2368 = vunpack.c.h.b16 %v880
    %v2369 = vunpack.c.l.b16 %v881
    %v2370 = vunpack.c.h.b16 %v881
    %v2371 = vunpack.c.l.b16 %v882
    %v2372 = vunpack.c.h.b16 %v882
    %v2373 = vunpack.c.l.b16 %v883
    %v2374 = vunpack.c.h.b16 %v883
    %v2375 = vunpack.c.l.b16 %v884
    %v2376 = vunpack.c.h.b16 %v884
    %v2377 = vunpack.c.l.b16 %v885
    %v2378 = vunpack.c.h.b16 %v885
    %v2379 = vunpack.c.l.b16 %v886
    %v2380 = vunpack.c.h.b16 %v886
    %v2381 = vunpack.c.l.b16 %v887
    %v2382 = vunpack.c.h.b16 %v887
    %v2383 = vunpack.c.l.b16 %v888
    %v2384 = vunpack.c.h.b16 %v888
    %v2385 = vunpack.c.l.b16 %v889
    %v2386 = vunpack.c.h.b16 %v889
    %v2387 = vunpack.c.l.b16 %v890
    %v2388 = vunpack.c.h.b16 %v890
    %v2389 = vunpack.c.l.b16 %v891
    %v2390 = vunpack.c.h.b16 %v891
    %v2391 = vunpack.c.l.b16 %v892
    %v2392 = vunpack.c.h.b16 %v892
    %v2393 = vunpack.c.l.b16 %v893
    %v2394 = vunpack.c.h.b16 %v893
    %v2395 = vunpack.c.l.b16 %v894
    %v2396 = vunpack.c.h.b16 %v894
    %v2397 = vunpack.c.l.b16 %v895
    %v2398 = vunpack.c.h.b16 %v895
    %v2399 = vunpack.c.l.b16 %v896
    %v2400 = vunpack.c.h.b16 %v896
    %v2401 = vunpack.c.l.b16 %v897
    %v2402 = vunpack.c.h.b16 %v897
    %v2403 = vunpack.c.l.b16 %v898
    %v2404 = vunpack.c.h.b16 %v898
    %v2405 = vunpack.c.l.b16 %v899
    %v2406 = vunpack.c.h.b16 %v899
    %v2407 = vunpack.c.l.b16 %v900
    %v2408 = vunpack.c.h.b16 %v900
    %v2409 = vunpack.c.l.b16 %v901
    %v2410 = vunpack.c.h.b16 %v901
    %v2411 = vunpack.c.l.b16 %v902
    %v2412 = vunpack.c.h.b16 %v902
    %v2413 = vunpack.c.l.b16 %v903
    %v2414 = vunpack.c.h.b16 %v903
    %v2415 = vunpack.c.l.b16 %v904
    %v2416 = vunpack.c.h.b16 %v904
    %v2417 = vunpack.c.l.b16 %v905
    %v2418 = vunpack.c.h.b16 %v905
    %v2419 = vunpack.c.l.b16 %v906
    %v2420 = vunpack.c.h.b16 %v906
    %v2421 = vunpack.c.l.b16 %v907
    %v2422 = vunpack.c.h.b16 %v907
    %v2423 = vunpack.c.l.b16 %v908
    %v2424 = vunpack.c.h.b16 %v908
    %v2425 = vunpack.c.l.b16 %v909
    %v2426 = vunpack.c.h.b16 %v909
    %v2427 = vunpack.c.l.b16 %v910
    %v2428 = vunpack.c.h.b16 %v910
    %v2429 = vunpack.c.l.b16 %v911
    %v2430 = vunpack.c.h.b16 %v911
    %v2431 = vunpack.c.l.b16 %v912
    %v2432 = vunpack.c.h.b16 %v912
    %v2433 = vunpack.c.l.b16 %v913
    %v2434 = vunpack.c.h.b16 %v913
    %v2435 = vunpack.c.l.b16 %v914
    %v2436 = vunpack.c.h.b16 %v914
    %v2437 = vunpack.c.l.b16 %v915
    %v2438 = vunpack.c.h.b16 %v915
    %v2439 = vunpack.c.l.b16 %v916
    %v2440 = vunpack.c.h.b16 %v916
    %v2441 = vunpack.c.l.b16 %v917
    %v2442 = vunpack.c.h.b16 %v917
    %v2443 = vunpack.c.l.b16 %v918
    %v2444 = vunpack.c.h.b16 %v918
    %v2445 = vunpack.c.l.b16 %v919
    %v2446 = vunpack.c.h.b16 %v919
    %v2447 = vunpack.c.l.b16 %v920
    %v2448 = vunpack.c.h.b16 %v920
    %v2449 = vunpack.c.l.b16 %v921
    %v2450 = vunpack.c.h.b16 %v921
    %v2451 = vunpack.c.l.b16 %v922
    %v2452 = vunpack.c.h.b16 %v922
    %v2453 = vunpack.c.l.b16 %v923
    %v2454 = vunpack.c.h.b16 %v923
    %v2455 = vunpack.c.l.b16 %v924
    %v2456 = vunpack.c.h.b16 %v924
    %v2457 = vunpack.c.l.b16 %v925
    %v2458 = vunpack.c.h.b16 %v925
    %v2459 = vunpack.c.l.b16 %v926
    %v2460 = vunpack.c.h.b16 %v926
    %v2461 = vunpack.c.l.b16 %v927
    %v2462 = vunpack.c.h.b16 %v927
    %v2463 = vunpack.c.l.b16 %v928
    %v2464 = vunpack.c.h.b16 %v928
    %v2465 = vunpack.c.l.b16 %v929
    %v2466 = vunpack.c.h.b16 %v929
    %v2467 = vunpack.c.l.b16 %v930
    %v2468 = vunpack.c.h.b16 %v930
    %v2469 = vunpack.c.l.b16 %v931
    %v2470 = vunpack.c.h.b16 %v931
    %v2471 = vunpack.c.l.b16 %v932
    %v2472 = vunpack.c.h.b16 %v932
    %v2473 = vunpack.c.l.b16 %v933
    %v2474 = vunpack.c.h.b16 %v933
    %v2475 = vunpack.c.l.b16 %v934
    %v2476 = vunpack.c.h.b16 %v934
    %v2477 = vunpack.c.l.b16 %v935
    %v2478 = vunpack.c.h.b16 %v935
    %v2479 = vunpack.c.l.b16 %v936
    %v2480 = vunpack.c.h.b16 %v936
    %v2481 = vunpack.c.l.b16 %v937
    %v2482 = vunpack.c.h.b16 %v937
    %v2483 = vunpack.c.l.b16 %v938
    %v2484 = vunpack.c.h.b16 %v938
    %v2485 = vunpack.c.l.b16 %v939
    %v2486 = vunpack.c.h.b16 %v939
    %v2487 = vunpack.c.l.b16 %v940
    %v2488 = vunpack.c.h.b16 %v940
    %v2489 = vunpack.c.l.b16 %v941
    %v2490 = vunpack.c.h.b16 %v941
    %v2491 = vunpack.c.l.b16 %v942
    %v2492 = vunpack.c.h.b16 %v942
    %v2493 = vunpack.c.l.b16 %v943
    %v2494 = vunpack.c.h.b16 %v943
    %v2495 = vunpack.c.l.b16 %v944
    %v2496 = vunpack.c.h.b16 %v944
    %v2497 = vunpack.c.l.b16 %v945
    %v2498 = vunpack.c.h.b16 %v945
    %v2499 = vunpack.c.l.b16 %v946
    %v2500 = vunpack.c.h.b16 %v946
    %v2501 = vunpack.c.l.b16 %v947
    %v2502 = vunpack.c.h.b16 %v947
    %v2503 = vunpack.c.l.b16 %v948
    %v2504 = vunpack.c.h.b16 %v948
    %v2505 = vunpack.c.l.b16 %v949
    %v2506 = vunpack.c.h.b16 %v949
    %v2507 = vunpack.c.l.b16 %v950
    %v2508 = vunpack.c.h.b16 %v950
    %v2509 = vunpack.c.l.b16 %v951
    %v2510 = vunpack.c.h.b16 %v951
    %v2511 = vunpack.c.l.b16 %v952
    %v2512 = vunpack.c.h.b16 %v952
    %v2513 = vunpack.c.l.b16 %v953
    %v2514 = vunpack.c.h.b16 %v953
    %v2515 = vunpack.c.l.b16 %v954
    %v2516 = vunpack.c.h.b16 %v954
    %v2517 = vunpack.c.l.b16 %v955
    %v2518 = vunpack.c.h.b16 %v955
    %v2519 = vunpack.c.l.b16 %v956
    %v2520 = vunpack.c.h.b16 %v956
    %v2521 = vunpack.c.l.b16 %v957
    %v2522 = vunpack.c.h.b16 %v957
    %v2523 = vunpack.c.l.b16 %v958
    %v2524 = vunpack.c.h.b16 %v958
    %v2525 = vunpack.c.l.b16 %v959
    %v2526 = vunpack.c.h.b16 %v959
    %v2527 = vunpack.c.l.b16 %v960
    %v2528 = vunpack.c.h.b16 %v960
    %v2529 = vunpack.c.l.b16 %v961
    %v2530 = vunpack.c.h.b16 %v961
    %v2531 = vunpack.c.l.b16 %v962
    %v2532 = vunpack.c.h.b16 %v962
    %v2533 = vunpack.c.l.b16 %v963
    %v2534 = vunpack.c.h.b16 %v963
    %v2535 = vunpack.c.l.b16 %v964
    %v2536 = vunpack.c.h.b16 %v964
    %v2537 = vunpack.c.l.b16 %v965
    %v2538 = vunpack.c.h.b16 %v965
    %v2539 = vunpack.c.l.b16 %v966
    %v2540 = vunpack.c.h.b16 %v966
    %v2541 = vunpack.c.l.b16 %v967
    %v2542 = vunpack.c.h.b16 %v967
    %v2543 = vunpack.c.l.b16 %v968
    %v2544 = vunpack.c.h.b16 %v968
    %v2545 = vunpack.c.l.b16 %v969
    %v2546 = vunpack.c.h.b16 %v969
    %v2547 = vunpack.c.l.b16 %v970
    %v2548 = vunpack.c.h.b16 %v970
    %v2549 = vpack.c.b16 %v1533, %v1525
    %v2550 = vpack.c.b16 %v1534, %v1526
    %v2551 = vpack.c.b16 %v1535, %v1527
    %v2552 = vpack.c.b16 %v1536, %v1528
    %v2553 = vpack.c.b16 %v1537, %v1529
    %v2554 = vpack.c.b16 %v1538, %v1530
    %v2555 = vpack.c.b16 %v1539, %v1531
    %v2556 = vpack.c.b16 %v1540, %v1532
    %v2557 = vpack.c.b16 %v1549, %v1541
    %v2558 = vpack.c.b16 %v1550, %v1542
    %v2559 = vpack.c.b16 %v1551, %v1543
    %v2560 = vpack.c.b16 %v1552, %v1544
    %v2561 = vpack.c.b16 %v1553, %v1545
    %v2562 = vpack.c.b16 %v1554, %v1546
    %v2563 = vpack.c.b16 %v1555, %v1547
    %v2564 = vpack.c.b16 %v1556, %v1548
    %v2565 = vpack.c.b16 %v1565, %v1557
    %v2566 = vpack.c.b16 %v1566, %v1558
    %v2567 = vpack.c.b16 %v1567, %v1559
    %v2568 = vpack.c.b16 %v1568, %v1560
    %v2569 = vpack.c.b16 %v1569, %v1561
    %v2570 = vpack.c.b16 %v1570, %v1562
    %v2571 = vpack.c.b16 %v1571, %v1563
    %v2572 = vpack.c.b16 %v1572, %v1564
    %v2573 = vpack.c.b16 %v1581, %v1573
    %v2574 = vpack.c.b16 %v1582, %v1574
    %v2575 = vpack.c.b16 %v1583, %v1575
    %v2576 = vpack.c.b16 %v1584, %v1576
    %v2577 = vpack.c.b16 %v1585, %v1577
    %v2578 = vpack.c.b16 %v1586, %v1578
    %v2579 = vpack.c.b16 %v1587, %v1579
    %v2580 = vpack.c.b16 %v1588, %v1580
    %v2581 = vpack.c.b16 %v1597, %v1589
    %v2582 = vpack.c.b16 %v1598, %v1590
    %v2583 = vpack.c.b16 %v1599, %v1591
    %v2584 = vpack.c.b16 %v1600, %v1592
    %v2585 = vpack.c.b16 %v1601, %v1593
    %v2586 = vpack.c.b16 %v1602, %v1594
    %v2587 = vpack.c.b16 %v1603, %v1595
    %v2588 = vpack.c.b16 %v1604, %v1596
    %v2589 = vpack.c.b16 %v1613, %v1605
    %v2590 = vpack.c.b16 %v1614, %v1606
    %v2591 = vpack.c.b16 %v1615, %v1607
    %v2592 = vpack.c.b16 %v1616, %v1608
    %v2593 = vpack.c.b16 %v1617, %v1609
    %v2594 = vpack.c.b16 %v1618, %v1610
    %v2595 = vpack.c.b16 %v1619, %v1611
    %v2596 = vpack.c.b16 %v1620, %v1612
    %v2597 = vpack.c.b16 %v1629, %v1621
    %v2598 = vpack.c.b16 %v1630, %v1622
    %v2599 = vpack.c.b16 %v1631, %v1623
    %v2600 = vpack.c.b16 %v1632, %v1624
    %v2601 = vpack.c.b16 %v1633, %v1625
    %v2602 = vpack.c.b16 %v1634, %v1626
    %v2603 = vpack.c.b16 %v1635, %v1627
    %v2604 = vpack.c.b16 %v1636, %v1628
    %v2605 = vpack.c.b16 %v1645, %v1637
    %v2606 = vpack.c.b16 %v1646, %v1638
    %v2607 = vpack.c.b16 %v1647, %v1639
    %v2608 = vpack.c.b16 %v1648, %v1640
    %v2609 = vpack.c.b16 %v1649, %v1641
    %v2610 = vpack.c.b16 %v1650, %v1642
    %v2611 = vpack.c.b16 %v1651, %v1643
    %v2612 = vpack.c.b16 %v1652, %v1644
    %v2613 = vpack.c.b16 %v1661, %v1653
    %v2614 = vpack.c.b16 %v1662, %v1654
    %v2615 = vpack.c.b16 %v1663, %v1655
    %v2616 = vpack.c.b16 %v1664, %v1656
    %v2617 = vpack.c.b16 %v1665, %v1657
    %v2618 = vpack.c.b16 %v1666, %v1658
    %v2619 = vpack.c.b16 %v1667, %v1659
    %v2620 = vpack.c.b16 %v1668, %v1660
    %v2621 = vpack.c.b16 %v1677, %v1669
    %v2622 = vpack.c.b16 %v1678, %v1670
    %v2623 = vpack.c.b16 %v1679, %v1671
    %v2624 = vpack.c.b16 %v1680, %v1672
    %v2625 = vpack.c.b16 %v1681, %v1673
    %v2626 = vpack.c.b16 %v1682, %v1674
    %v2627 = vpack.c.b16 %v1683, %v1675
    %v2628 = vpack.c.b16 %v1684, %v1676
    %v2629 = vpack.c.b16 %v1693, %v1685
    %v2630 = vpack.c.b16 %v1694, %v1686
    %v2631 = vpack.c.b16 %v1695, %v1687
    %v2632 = vpack.c.b16 %v1696, %v1688
    %v2633 = vpack.c.b16 %v1697, %v1689
    %v2634 = vpack.c.b16 %v1698, %v1690
    %v2635 = vpack.c.b16 %v1699, %v1691
    %v2636 = vpack.c.b16 %v1700, %v1692
    %v2637 = vpack.c.b16 %v1709, %v1701
    %v2638 = vpack.c.b16 %v1710, %v1702
    %v2639 = vpack.c.b16 %v1711, %v1703
    %v2640 = vpack.c.b16 %v1712, %v1704
    %v2641 = vpack.c.b16 %v1713, %v1705
    %v2642 = vpack.c.b16 %v1714, %v1706
    %v2643 = vpack.c.b16 %v1715, %v1707
    %v2644 = vpack.c.b16 %v1716, %v1708
    %v2645 = vpack.c.b16 %v1725, %v1717
    %v2646 = vpack.c.b16 %v1726, %v1718
    %v2647 = vpack.c.b16 %v1727, %v1719
    %v2648 = vpack.c.b16 %v1728, %v1720
    %v2649 = vpack.c.b16 %v1729, %v1721
    %v2650 = vpack.c.b16 %v1730, %v1722
    %v2651 = vpack.c.b16 %v1731, %v1723
    %v2652 = vpack.c.b16 %v1732, %v1724
    %v2653 = vpack.c.b16 %v1741, %v1733
    %v2654 = vpack.c.b16 %v1742, %v1734
    %v2655 = vpack.c.b16 %v1743, %v1735
    %v2656 = vpack.c.b16 %v1744, %v1736
    %v2657 = vpack.c.b16 %v1745, %v1737
    %v2658 = vpack.c.b16 %v1746, %v1738
    %v2659 = vpack.c.b16 %v1747, %v1739
    %v2660 = vpack.c.b16 %v1748, %v1740
    %v2661 = vpack.c.b16 %v1757, %v1749
    %v2662 = vpack.c.b16 %v1758, %v1750
    %v2663 = vpack.c.b16 %v1759, %v1751
    %v2664 = vpack.c.b16 %v1760, %v1752
    %v2665 = vpack.c.b16 %v1761, %v1753
    %v2666 = vpack.c.b16 %v1762, %v1754
    %v2667 = vpack.c.b16 %v1763, %v1755
    %v2668 = vpack.c.b16 %v1764, %v1756
    %v2669 = vpack.c.b16 %v1773, %v1765
    %v2670 = vpack.c.b16 %v1774, %v1766
    %v2671 = vpack.c.b16 %v1775, %v1767
    %v2672 = vpack.c.b16 %v1776, %v1768
    %v2673 = vpack.c.b16 %v1777, %v1769
    %v2674 = vpack.c.b16 %v1778, %v1770
    %v2675 = vpack.c.b16 %v1779, %v1771
    %v2676 = vpack.c.b16 %v1780, %v1772
    %v2677 = vpack.c.b16 %v1789, %v1781
    %v2678 = vpack.c.b16 %v1790, %v1782
    %v2679 = vpack.c.b16 %v1791, %v1783
    %v2680 = vpack.c.b16 %v1792, %v1784
    %v2681 = vpack.c.b16 %v1793, %v1785
    %v2682 = vpack.c.b16 %v1794, %v1786
    %v2683 = vpack.c.b16 %v1795, %v1787
    %v2684 = vpack.c.b16 %v1796, %v1788
    %v2685 = vpack.c.b16 %v1805, %v1797
    %v2686 = vpack.c.b16 %v1806, %v1798
    %v2687 = vpack.c.b16 %v1807, %v1799
    %v2688 = vpack.c.b16 %v1808, %v1800
    %v2689 = vpack.c.b16 %v1809, %v1801
    %v2690 = vpack.c.b16 %v1810, %v1802
    %v2691 = vpack.c.b16 %v1811, %v1803
    %v2692 = vpack.c.b16 %v1812, %v1804
    %v2693 = vpack.c.b16 %v1821, %v1813
    %v2694 = vpack.c.b16 %v1822, %v1814
    %v2695 = vpack.c.b16 %v1823, %v1815
    %v2696 = vpack.c.b16 %v1824, %v1816
    %v2697 = vpack.c.b16 %v1825, %v1817
    %v2698 = vpack.c.b16 %v1826, %v1818
    %v2699 = vpack.c.b16 %v1827, %v1819
    %v2700 = vpack.c.b16 %v1828, %v1820
    %v2701 = vpack.c.b16 %v1837, %v1829
    %v2702 = vpack.c.b16 %v1838, %v1830
    %v2703 = vpack.c.b16 %v1839, %v1831
    %v2704 = vpack.c.b16 %v1840, %v1832
    %v2705 = vpack.c.b16 %v1841, %v1833
    %v2706 = vpack.c.b16 %v1842, %v1834
    %v2707 = vpack.c.b16 %v1843, %v1835
    %v2708 = vpack.c.b16 %v1844, %v1836
    %v2709 = vpack.c.b16 %v1853, %v1845
    %v2710 = vpack.c.b16 %v1854, %v1846
    %v2711 = vpack.c.b16 %v1855, %v1847
    %v2712 = vpack.c.b16 %v1856, %v1848
    %v2713 = vpack.c.b16 %v1857, %v1849
    %v2714 = vpack.c.b16 %v1858, %v1850
    %v2715 = vpack.c.b16 %v1859, %v1851
    %v2716 = vpack.c.b16 %v1860, %v1852
    %v2717 = vpack.c.b16 %v1869, %v1861
    %v2718 = vpack.c.b16 %v1870, %v1862
    %v2719 = vpack.c.b16 %v1871, %v1863
    %v2720 = vpack.c.b16 %v1872, %v1864
    %v2721 = vpack.c.b16 %v1873, %v1865
    %v2722 = vpack.c.b16 %v1874, %v1866
    %v2723 = vpack.c.b16 %v1875, %v1867
    %v2724 = vpack.c.b16 %v1876, %v1868
    %v2725 = vpack.c.b16 %v1885, %v1877
    %v2726 = vpack.c.b16 %v1886, %v1878
    %v2727 = vpack.c.b16 %v1887, %v1879
    %v2728 = vpack.c.b16 %v1888, %v1880
    %v2729 = vpack.c.b16 %v1889, %v1881
    %v2730 = vpack.c.b16 %v1890, %v1882
    %v2731 = vpack.c.b16 %v1891, %v1883
    %v2732 = vpack.c.b16 %v1892, %v1884
    %v2733 = vpack.c.b16 %v1901, %v1893
    %v2734 = vpack.c.b16 %v1902, %v1894
    %v2735 = vpack.c.b16 %v1903, %v1895
    %v2736 = vpack.c.b16 %v1904, %v1896
    %v2737 = vpack.c.b16 %v1905, %v1897
    %v2738 = vpack.c.b16 %v1906, %v1898
    %v2739 = vpack.c.b16 %v1907, %v1899
    %v2740 = vpack.c.b16 %v1908, %v1900
    %v2741 = vpack.c.b16 %v1917, %v1909
    %v2742 = vpack.c.b16 %v1918, %v1910
    %v2743 = vpack.c.b16 %v1919, %v1911
    %v2744 = vpack.c.b16 %v1920, %v1912
    %v2745 = vpack.c.b16 %v1921, %v1913
    %v2746 = vpack.c.b16 %v1922, %v1914
    %v2747 = vpack.c.b16 %v1923, %v1915
    %v2748 = vpack.c.b16 %v1924, %v1916
    %v2749 = vpack.c.b16 %v1933, %v1925
    %v2750 = vpack.c.b16 %v1934, %v1926
    %v2751 = vpack.c.b16 %v1935, %v1927
    %v2752 = vpack.c.b16 %v1936, %v1928
    %v2753 = vpack.c.b16 %v1937, %v1929
    %v2754 = vpack.c.b16 %v1938, %v1930
    %v2755 = vpack.c.b16 %v1939, %v1931
    %v2756 = vpack.c.b16 %v1940, %v1932
    %v2757 = vpack.c.b16 %v1949, %v1941
    %v2758 = vpack.c.b16 %v1950, %v1942
    %v2759 = vpack.c.b16 %v1951, %v1943
    %v2760 = vpack.c.b16 %v1952, %v1944
    %v2761 = vpack.c.b16 %v1953, %v1945
    %v2762 = vpack.c.b16 %v1954, %v1946
    %v2763 = vpack.c.b16 %v1955, %v1947
    %v2764 = vpack.c.b16 %v1956, %v1948
    %v2765 = vpack.c.b16 %v1965, %v1957
    %v2766 = vpack.c.b16 %v1966, %v1958
    %v2767 = vpack.c.b16 %v1967, %v1959
    %v2768 = vpack.c.b16 %v1968, %v1960
    %v2769 = vpack.c.b16 %v1969, %v1961
    %v2770 = vpack.c.b16 %v1970, %v1962
    %v2771 = vpack.c.b16 %v1971, %v1963
    %v2772 = vpack.c.b16 %v1972, %v1964
    %v2773 = vpack.c.b16 %v1981, %v1973
    %v2774 = vpack.c.b16 %v1982, %v1974
    %v2775 = vpack.c.b16 %v1983, %v1975
    %v2776 = vpack.c.b16 %v1984, %v1976
    %v2777 = vpack.c.b16 %v1985, %v1977
    %v2778 = vpack.c.b16 %v1986, %v1978
    %v2779 = vpack.c.b16 %v1987, %v1979
    %v2780 = vpack.c.b16 %v1988, %v1980
    %v2781 = vpack.c.b16 %v1997, %v1989
    %v2782 = vpack.c.b16 %v1998, %v1990
    %v2783 = vpack.c.b16 %v1999, %v1991
    %v2784 = vpack.c.b16 %v2000, %v1992
    %v2785 = vpack.c.b16 %v2001, %v1993
    %v2786 = vpack.c.b16 %v2002, %v1994
    %v2787 = vpack.c.b16 %v2003, %v1995
    %v2788 = vpack.c.b16 %v2004, %v1996
    %v2789 = vpack.c.b16 %v2013, %v2005
    %v2790 = vpack.c.b16 %v2014, %v2006
    %v2791 = vpack.c.b16 %v2015, %v2007
    %v2792 = vpack.c.b16 %v2016, %v2008
    %v2793 = vpack.c.b16 %v2017, %v2009
    %v2794 = vpack.c.b16 %v2018, %v2010
    %v2795 = vpack.c.b16 %v2019, %v2011
    %v2796 = vpack.c.b16 %v2020, %v2012
    %v2797 = vpack.c.b16 %v2029, %v2021
    %v2798 = vpack.c.b16 %v2030, %v2022
    %v2799 = vpack.c.b16 %v2031, %v2023
    %v2800 = vpack.c.b16 %v2032, %v2024
    %v2801 = vpack.c.b16 %v2033, %v2025
    %v2802 = vpack.c.b16 %v2034, %v2026
    %v2803 = vpack.c.b16 %v2035, %v2027
    %v2804 = vpack.c.b16 %v2036, %v2028
    %v2805 = vpack.c.b16 %v2045, %v2037
    %v2806 = vpack.c.b16 %v2046, %v2038
    %v2807 = vpack.c.b16 %v2047, %v2039
    %v2808 = vpack.c.b16 %v2048, %v2040
    %v2809 = vpack.c.b16 %v2049, %v2041
    %v2810 = vpack.c.b16 %v2050, %v2042
    %v2811 = vpack.c.b16 %v2051, %v2043
    %v2812 = vpack.c.b16 %v2052, %v2044
    %v2813 = vpack.c.b16 %v2061, %v2053
    %v2814 = vpack.c.b16 %v2062, %v2054
    %v2815 = vpack.c.b16 %v2063, %v2055
    %v2816 = vpack.c.b16 %v2064, %v2056
    %v2817 = vpack.c.b16 %v2065, %v2057
    %v2818 = vpack.c.b16 %v2066, %v2058
    %v2819 = vpack.c.b16 %v2067, %v2059
    %v2820 = vpack.c.b16 %v2068, %v2060
    %v2821 = vpack.c.b16 %v2077, %v2069
    %v2822 = vpack.c.b16 %v2078, %v2070
    %v2823 = vpack.c.b16 %v2079, %v2071
    %v2824 = vpack.c.b16 %v2080, %v2072
    %v2825 = vpack.c.b16 %v2081, %v2073
    %v2826 = vpack.c.b16 %v2082, %v2074
    %v2827 = vpack.c.b16 %v2083, %v2075
    %v2828 = vpack.c.b16 %v2084, %v2076
    %v2829 = vpack.c.b16 %v2093, %v2085
    %v2830 = vpack.c.b16 %v2094, %v2086
    %v2831 = vpack.c.b16 %v2095, %v2087
    %v2832 = vpack.c.b16 %v2096, %v2088
    %v2833 = vpack.c.b16 %v2097, %v2089
    %v2834 = vpack.c.b16 %v2098, %v2090
    %v2835 = vpack.c.b16 %v2099, %v2091
    %v2836 = vpack.c.b16 %v2100, %v2092
    %v2837 = vpack.c.b16 %v2109, %v2101
    %v2838 = vpack.c.b16 %v2110, %v2102
    %v2839 = vpack.c.b16 %v2111, %v2103
    %v2840 = vpack.c.b16 %v2112, %v2104
    %v2841 = vpack.c.b16 %v2113, %v2105
    %v2842 = vpack.c.b16 %v2114, %v2106
    %v2843 = vpack.c.b16 %v2115, %v2107
    %v2844 = vpack.c.b16 %v2116, %v2108
    %v2845 = vpack.c.b16 %v2125, %v2117
    %v2846 = vpack.c.b16 %v2126, %v2118
    %v2847 = vpack.c.b16 %v2127, %v2119
    %v2848 = vpack.c.b16 %v2128, %v2120
    %v2849 = vpack.c.b16 %v2129, %v2121
    %v2850 = vpack.c.b16 %v2130, %v2122
    %v2851 = vpack.c.b16 %v2131, %v2123
    %v2852 = vpack.c.b16 %v2132, %v2124
    %v2853 = vpack.c.b16 %v2141, %v2133
    %v2854 = vpack.c.b16 %v2142, %v2134
    %v2855 = vpack.c.b16 %v2143, %v2135
    %v2856 = vpack.c.b16 %v2144, %v2136
    %v2857 = vpack.c.b16 %v2145, %v2137
    %v2858 = vpack.c.b16 %v2146, %v2138
    %v2859 = vpack.c.b16 %v2147, %v2139
    %v2860 = vpack.c.b16 %v2148, %v2140
    %v2861 = vpack.c.b16 %v2157, %v2149
    %v2862 = vpack.c.b16 %v2158, %v2150
    %v2863 = vpack.c.b16 %v2159, %v2151
    %v2864 = vpack.c.b16 %v2160, %v2152
    %v2865 = vpack.c.b16 %v2161, %v2153
    %v2866 = vpack.c.b16 %v2162, %v2154
    %v2867 = vpack.c.b16 %v2163, %v2155
    %v2868 = vpack.c.b16 %v2164, %v2156
    %v2869 = vpack.c.b16 %v2173, %v2165
    %v2870 = vpack.c.b16 %v2174, %v2166
    %v2871 = vpack.c.b16 %v2175, %v2167
    %v2872 = vpack.c.b16 %v2176, %v2168
    %v2873 = vpack.c.b16 %v2177, %v2169
    %v2874 = vpack.c.b16 %v2178, %v2170
    %v2875 = vpack.c.b16 %v2179, %v2171
    %v2876 = vpack.c.b16 %v2180, %v2172
    %v2877 = vpack.c.b16 %v2189, %v2181
    %v2878 = vpack.c.b16 %v2190, %v2182
    %v2879 = vpack.c.b16 %v2191, %v2183
    %v2880 = vpack.c.b16 %v2192, %v2184
    %v2881 = vpack.c.b16 %v2193, %v2185
    %v2882 = vpack.c.b16 %v2194, %v2186
    %v2883 = vpack.c.b16 %v2195, %v2187
    %v2884 = vpack.c.b16 %v2196, %v2188
    %v2885 = vpack.c.b16 %v2205, %v2197
    %v2886 = vpack.c.b16 %v2206, %v2198
    %v2887 = vpack.c.b16 %v2207, %v2199
    %v2888 = vpack.c.b16 %v2208, %v2200
    %v2889 = vpack.c.b16 %v2209, %v2201
    %v2890 = vpack.c.b16 %v2210, %v2202
    %v2891 = vpack.c.b16 %v2211, %v2203
    %v2892 = vpack.c.b16 %v2212, %v2204
    %v2893 = vpack.c.b16 %v2221, %v2213
    %v2894 = vpack.c.b16 %v2222, %v2214
    %v2895 = vpack.c.b16 %v2223, %v2215
    %v2896 = vpack.c.b16 %v2224, %v2216
    %v2897 = vpack.c.b16 %v2225, %v2217
    %v2898 = vpack.c.b16 %v2226, %v2218
    %v2899 = vpack.c.b16 %v2227, %v2219
    %v2900 = vpack.c.b16 %v2228, %v2220
    %v2901 = vpack.c.b16 %v2237, %v2229
    %v2902 = vpack.c.b16 %v2238, %v2230
    %v2903 = vpack.c.b16 %v2239, %v2231
    %v2904 = vpack.c.b16 %v2240, %v2232
    %v2905 = vpack.c.b16 %v2241, %v2233
    %v2906 = vpack.c.b16 %v2242, %v2234
    %v2907 = vpack.c.b16 %v2243, %v2235
    %v2908 = vpack.c.b16 %v2244, %v2236
    %v2909 = vpack.c.b16 %v2253, %v2245
    %v2910 = vpack.c.b16 %v2254, %v2246
    %v2911 = vpack.c.b16 %v2255, %v2247
    %v2912 = vpack.c.b16 %v2256, %v2248
    %v2913 = vpack.c.b16 %v2257, %v2249
    %v2914 = vpack.c.b16 %v2258, %v2250
    %v2915 = vpack.c.b16 %v2259, %v2251
    %v2916 = vpack.c.b16 %v2260, %v2252
    %v2917 = vpack.c.b16 %v2269, %v2261
    %v2918 = vpack.c.b16 %v2270, %v2262
    %v2919 = vpack.c.b16 %v2271, %v2263
    %v2920 = vpack.c.b16 %v2272, %v2264
    %v2921 = vpack.c.b16 %v2273, %v2265
    %v2922 = vpack.c.b16 %v2274, %v2266
    %v2923 = vpack.c.b16 %v2275, %v2267
    %v2924 = vpack.c.b16 %v2276, %v2268
    %v2925 = vpack.c.b16 %v2285, %v2277
    %v2926 = vpack.c.b16 %v2286, %v2278
    %v2927 = vpack.c.b16 %v2287, %v2279
    %v2928 = vpack.c.b16 %v2288, %v2280
    %v2929 = vpack.c.b16 %v2289, %v2281
    %v2930 = vpack.c.b16 %v2290, %v2282
    %v2931 = vpack.c.b16 %v2291, %v2283
    %v2932 = vpack.c.b16 %v2292, %v2284
    %v2933 = vpack.c.b16 %v2301, %v2293
    %v2934 = vpack.c.b16 %v2302, %v2294
    %v2935 = vpack.c.b16 %v2303, %v2295
    %v2936 = vpack.c.b16 %v2304, %v2296
    %v2937 = vpack.c.b16 %v2305, %v2297
    %v2938 = vpack.c.b16 %v2306, %v2298
    %v2939 = vpack.c.b16 %v2307, %v2299
    %v2940 = vpack.c.b16 %v2308, %v2300
    %v2941 = vpack.c.b16 %v2317, %v2309
    %v2942 = vpack.c.b16 %v2318, %v2310
    %v2943 = vpack.c.b16 %v2319, %v2311
    %v2944 = vpack.c.b16 %v2320, %v2312
    %v2945 = vpack.c.b16 %v2321, %v2313
    %v2946 = vpack.c.b16 %v2322, %v2314
    %v2947 = vpack.c.b16 %v2323, %v2315
    %v2948 = vpack.c.b16 %v2324, %v2316
    %v2949 = vpack.c.b16 %v2333, %v2325
    %v2950 = vpack.c.b16 %v2334, %v2326
    %v2951 = vpack.c.b16 %v2335, %v2327
    %v2952 = vpack.c.b16 %v2336, %v2328
    %v2953 = vpack.c.b16 %v2337, %v2329
    %v2954 = vpack.c.b16 %v2338, %v2330
    %v2955 = vpack.c.b16 %v2339, %v2331
    %v2956 = vpack.c.b16 %v2340, %v2332
    %v2957 = vpack.c.b16 %v2349, %v2341
    %v2958 = vpack.c.b16 %v2350, %v2342
    %v2959 = vpack.c.b16 %v2351, %v2343
    %v2960 = vpack.c.b16 %v2352, %v2344
    %v2961 = vpack.c.b16 %v2353, %v2345
    %v2962 = vpack.c.b16 %v2354, %v2346
    %v2963 = vpack.c.b16 %v2355, %v2347
    %v2964 = vpack.c.b16 %v2356, %v2348
    %v2965 = vpack.c.b16 %v2365, %v2357
    %v2966 = vpack.c.b16 %v2366, %v2358
    %v2967 = vpack.c.b16 %v2367, %v2359
    %v2968 = vpack.c.b16 %v2368, %v2360
    %v2969 = vpack.c.b16 %v2369, %v2361
    %v2970 = vpack.c.b16 %v2370, %v2362
    %v2971 = vpack.c.b16 %v2371, %v2363
    %v2972 = vpack.c.b16 %v2372, %v2364
    %v2973 = vpack.c.b16 %v2381, %v2373
    %v2974 = vpack.c.b16 %v2382, %v2374
    %v2975 = vpack.c.b16 %v2383, %v2375
    %v2976 = vpack.c.b16 %v2384, %v2376
    %v2977 = vpack.c.b16 %v2385, %v2377
    %v2978 = vpack.c.b16 %v2386, %v2378
    %v2979 = vpack.c.b16 %v2387, %v2379
    %v2980 = vpack.c.b16 %v2388, %v2380
    %v2981 = vpack.c.b16 %v2397, %v2389
    %v2982 = vpack.c.b16 %v2398, %v2390
    %v2983 = vpack.c.b16 %v2399, %v2391
    %v2984 = vpack.c.b16 %v2400, %v2392
    %v2985 = vpack.c.b16 %v2401, %v2393
    %v2986 = vpack.c.b16 %v2402, %v2394
    %v2987 = vpack.c.b16 %v2403, %v2395
    %v2988 = vpack.c.b16 %v2404, %v2396
    %v2989 = vpack.c.b16 %v2413, %v2405
    %v2990 = vpack.c.b16 %v2414, %v2406
    %v2991 = vpack.c.b16 %v2415, %v2407
    %v2992 = vpack.c.b16 %v2416, %v2408
    %v2993 = vpack.c.b16 %v2417, %v2409
    %v2994 = vpack.c.b16 %v2418, %v2410
    %v2995 = vpack.c.b16 %v2419, %v2411
    %v2996 = vpack.c.b16 %v2420, %v2412
    %v2997 = vpack.c.b16 %v2429, %v2421
    %v2998 = vpack.c.b16 %v2430, %v2422
    %v2999 = vpack.c.b16 %v2431, %v2423
    %v3000 = vpack.c.b16 %v2432, %v2424
    %v3001 = vpack.c.b16 %v2433, %v2425
    %v3002 = vpack.c.b16 %v2434, %v2426
    %v3003 = vpack.c.b16 %v2435, %v2427
    %v3004 = vpack.c.b16 %v2436, %v2428
    %v3005 = vpack.c.b16 %v2445, %v2437
    %v3006 = vpack.c.b16 %v2446, %v2438
    %v3007 = vpack.c.b16 %v2447, %v2439
    %v3008 = vpack.c.b16 %v2448, %v2440
    %v3009 = vpack.c.b16 %v2449, %v2441
    %v3010 = vpack.c.b16 %v2450, %v2442
    %v3011 = vpack.c.b16 %v2451, %v2443
    %v3012 = vpack.c.b16 %v2452, %v2444
    %v3013 = vpack.c.b16 %v2461, %v2453
    %v3014 = vpack.c.b16 %v2462, %v2454
    %v3015 = vpack.c.b16 %v2463, %v2455
    %v3016 = vpack.c.b16 %v2464, %v2456
    %v3017 = vpack.c.b16 %v2465, %v2457
    %v3018 = vpack.c.b16 %v2466, %v2458
    %v3019 = vpack.c.b16 %v2467, %v2459
    %v3020 = vpack.c.b16 %v2468, %v2460
    %v3021 = vpack.c.b16 %v2477, %v2469
    %v3022 = vpack.c.b16 %v2478, %v2470
    %v3023 = vpack.c.b16 %v2479, %v2471
    %v3024 = vpack.c.b16 %v2480, %v2472
    %v3025 = vpack.c.b16 %v2481, %v2473
    %v3026 = vpack.c.b16 %v2482, %v2474
    %v3027 = vpack.c.b16 %v2483, %v2475
    %v3028 = vpack.c.b16 %v2484, %v2476
    %v3029 = vpack.c.b16 %v2493, %v2485
    %v3030 = vpack.c.b16 %v2494, %v2486
    %v3031 = vpack.c.b16 %v2495, %v2487
    %v3032 = vpack.c.b16 %v2496, %v2488
    %v3033 = vpack.c.b16 %v2497, %v2489
    %v3034 = vpack.c.b16 %v2498, %v2490
    %v3035 = vpack.c.b16 %v2499, %v2491
    %v3036 = vpack.c.b16 %v2500, %v2492
    %v3037 = vpack.c.b16 %v2509, %v2501
    %v3038 = vpack.c.b16 %v2510, %v2502
    %v3039 = vpack.c.b16 %v2511, %v2503
    %v3040 = vpack.c.b16 %v2512, %v2504
    %v3041 = vpack.c.b16 %v2513, %v2505
    %v3042 = vpack.c.b16 %v2514, %v2506
    %v3043 = vpack.c.b16 %v2515, %v2507
    %v3044 = vpack.c.b16 %v2516, %v2508
    %v3045 = vpack.c.b16 %v2525, %v2517
    %v3046 = vpack.c.b16 %v2526, %v2518
    %v3047 = vpack.c.b16 %v2527, %v2519
    %v3048 = vpack.c.b16 %v2528, %v2520
    %v3049 = vpack.c.b16 %v2529, %v2521
    %v3050 = vpack.c.b16 %v2530, %v2522
    %v3051 = vpack.c.b16 %v2531, %v2523
    %v3052 = vpack.c.b16 %v2532, %v2524
    %v3053 = vpack.c.b16 %v2541, %v2533
    %v3054 = vpack.c.b16 %v2542, %v2534
    %v3055 = vpack.c.b16 %v2543, %v2535
    %v3056 = vpack.c.b16 %v2544, %v2536
    %v3057 = vpack.c.b16 %v2545, %v2537
    %v3058 = vpack.c.b16 %v2546, %v2538
    %v3059 = vpack.c.b16 %v2547, %v2539
    %v3060 = vpack.c.b16 %v2548, %v2540
    %3573 = vmatprep.subr.bf16.mxu0 %v2550
    %3574 = vmatpush1.bf16.msra.mxu0 %v2549
    %3575 = vmatprep.subr.bf16.mxu0 %v2558
    %3576 = vmatpush1.bf16.msra.mxu0 %v2557
    %3577 = vmatprep.subr.bf16.mxu0 %v2566
    %3578 = vmatpush1.bf16.msra.mxu0 %v2565
    %3579 = vmatprep.subr.bf16.mxu0 %v2574
    %3580 = vmatpush1.bf16.msra.mxu0 %v2573
    %3581 = vmatprep.subr.bf16.mxu0 %v2582
    %3582 = vmatpush1.bf16.msra.mxu0 %v2581
    %3583 = vmatprep.subr.bf16.mxu0 %v2590
    %3584 = vmatpush1.bf16.msra.mxu0 %v2589
    %3585 = vmatprep.subr.bf16.mxu0 %v2598
    %3586 = vmatpush1.bf16.msra.mxu0 %v2597
    %3587 = vmatprep.subr.bf16.mxu0 %v2606
    %3588 = vmatpush1.bf16.msra.mxu0 %v2605
    %3589 = vmatprep.subr.bf16.mxu0 %v2614
    %3590 = vmatpush1.bf16.msra.mxu0 %v2613
    %3591 = vmatprep.subr.bf16.mxu0 %v2622
    %3592 = vmatpush1.bf16.msra.mxu0 %v2621
    %3593 = vmatprep.subr.bf16.mxu0 %v2630
    %3594 = vmatpush1.bf16.msra.mxu0 %v2629
    %3595 = vmatprep.subr.bf16.mxu0 %v2638
    %3596 = vmatpush1.bf16.msra.mxu0 %v2637
    %3597 = vmatprep.subr.bf16.mxu0 %v2646
    %3598 = vmatpush1.bf16.msra.mxu0 %v2645
    %3599 = vmatprep.subr.bf16.mxu0 %v2654
    %3600 = vmatpush1.bf16.msra.mxu0 %v2653
    %3601 = vmatprep.subr.bf16.mxu0 %v2662
    %3602 = vmatpush1.bf16.msra.mxu0 %v2661
    %3603 = vmatprep.subr.bf16.mxu0 %v2670
    %3604 = vmatpush1.bf16.msra.mxu0 %v2669
    %3605 = vmatprep.mubr.bf16.mxu0 %v452
    %3606 = vmatmul.mubr.bf16.gmra.mrb[0].mxu0 %v451
    %v3607 = vpop.f32.mrb[0].mxu0
    %v3608 = vadd.f32 %v976, %v3607
    %v3609 = vpop.f32.mrb[0].mxu0
    %v3610 = vadd.f32 %v980, %v3609
    %v3611 = vpop.f32.mrb[0].mxu0
    %v3612 = vpop.f32.mrb[0].mxu0
    %3613 = vdwg.mxu0
    %3614 = vmatprep.subr.bf16.mxu0 %v2678
    %3615 = vmatpush1.bf16.msra.mxu0 %v2677
    %3616 = vmatprep.subr.bf16.mxu0 %v2686
    %3617 = vmatpush1.bf16.msra.mxu0 %v2685
    %3618 = vmatprep.subr.bf16.mxu0 %v2694
    %3619 = vmatpush1.bf16.msra.mxu0 %v2693
    %3620 = vmatprep.subr.bf16.mxu0 %v2702
    %3621 = vmatpush1.bf16.msra.mxu0 %v2701
    %3622 = vmatprep.subr.bf16.mxu0 %v2710
    %3623 = vmatpush1.bf16.msra.mxu0 %v2709
    %3624 = vmatprep.subr.bf16.mxu0 %v2718
    %3625 = vmatpush1.bf16.msra.mxu0 %v2717
    %3626 = vmatprep.subr.bf16.mxu0 %v2726
    %3627 = vmatpush1.bf16.msra.mxu0 %v2725
    %3628 = vmatprep.subr.bf16.mxu0 %v2734
    %3629 = vmatpush1.bf16.msra.mxu0 %v2733
    %3630 = vmatprep.subr.bf16.mxu0 %v2742
    %3631 = vmatpush1.bf16.msra.mxu0 %v2741
    %3632 = vmatprep.subr.bf16.mxu0 %v2750
    %3633 = vmatpush1.bf16.msra.mxu0 %v2749
    %3634 = vmatprep.subr.bf16.mxu0 %v2758
    %3635 = vmatpush1.bf16.msra.mxu0 %v2757
    %3636 = vmatprep.subr.bf16.mxu0 %v2766
    %3637 = vmatpush1.bf16.msra.mxu0 %v2765
    %3638 = vmatprep.subr.bf16.mxu0 %v2774
    %3639 = vmatpush1.bf16.msra.mxu0 %v2773
    %3640 = vmatprep.subr.bf16.mxu0 %v2782
    %3641 = vmatpush1.bf16.msra.mxu0 %v2781
    %3642 = vmatprep.subr.bf16.mxu0 %v2790
    %3643 = vmatpush1.bf16.msra.mxu0 %v2789
    %3644 = vmatprep.subr.bf16.mxu0 %v2798
    %3645 = vmatpush1.bf16.msra.mxu0 %v2797
    %3646 = vmatprep.mubr.bf16.mxu0 %v454
    %3647 = vmatmul.mubr.bf16.gmra.mrb[0].mxu0 %v453
    %v3648 = vpop.f32.mrb[0].mxu0
    %v3649 = vadd.f32 %v3608, %v3648
    %v3650 = vpop.f32.mrb[0].mxu0
    %v3651 = vadd.f32 %v3610, %v3650
    %v3652 = vpop.f32.mrb[0].mxu0
    %v3653 = vpop.f32.mrb[0].mxu0
    %3654 = vdwg.mxu0
    %3655 = vmatprep.subr.bf16.mxu0 %v2806
    %3656 = vmatpush1.bf16.msra.mxu0 %v2805
    %3657 = vmatprep.subr.bf16.mxu0 %v2814
    %3658 = vmatpush1.bf16.msra.mxu0 %v2813
    %3659 = vmatprep.subr.bf16.mxu0 %v2822
    %3660 = vmatpush1.bf16.msra.mxu0 %v2821
    %3661 = vmatprep.subr.bf16.mxu0 %v2830
    %3662 = vmatpush1.bf16.msra.mxu0 %v2829
    %3663 = vmatprep.subr.bf16.mxu0 %v2838
    %3664 = vmatpush1.bf16.msra.mxu0 %v2837
    %3665 = vmatprep.subr.bf16.mxu0 %v2846
    %3666 = vmatpush1.bf16.msra.mxu0 %v2845
    %3667 = vmatprep.subr.bf16.mxu0 %v2854
    %3668 = vmatpush1.bf16.msra.mxu0 %v2853
    %3669 = vmatprep.subr.bf16.mxu0 %v2862
    %3670 = vmatpush1.bf16.msra.mxu0 %v2861
    %3671 = vmatprep.subr.bf16.mxu0 %v2870
    %3672 = vmatpush1.bf16.msra.mxu0 %v2869
    %3673 = vmatprep.subr.bf16.mxu0 %v2878
    %3674 = vmatpush1.bf16.msra.mxu0 %v2877
    %3675 = vmatprep.subr.bf16.mxu0 %v2886
    %3676 = vmatpush1.bf16.msra.mxu0 %v2885
    %3677 = vmatprep.subr.bf16.mxu0 %v2894
    %3678 = vmatpush1.bf16.msra.mxu0 %v2893
    %3679 = vmatprep.subr.bf16.mxu0 %v2902
    %3680 = vmatpush1.bf16.msra.mxu0 %v2901
    %3681 = vmatprep.subr.bf16.mxu0 %v2910
    %3682 = vmatpush1.bf16.msra.mxu0 %v2909
    %3683 = vmatprep.subr.bf16.mxu0 %v2918
    %3684 = vmatpush1.bf16.msra.mxu0 %v2917
    %3685 = vmatprep.subr.bf16.mxu0 %v2926
    %3686 = vmatpush1.bf16.msra.mxu0 %v2925
    %3687 = vmatprep.mubr.bf16.mxu0 %v456
    %3688 = vmatmul.mubr.bf16.gmra.mrb[0].mxu0 %v455
    %v3689 = vpop.f32.mrb[0].mxu0
    %v3690 = vadd.f32 %v3649, %v3689
    %v3691 = vpop.f32.mrb[0].mxu0
    %v3692 = vadd.f32 %v3651, %v3691
    %v3693 = vpop.f32.mrb[0].mxu0
    %v3694 = vpop.f32.mrb[0].mxu0
    %3695 = vdwg.mxu0
    %3696 = vmatprep.subr.bf16.mxu0 %v2934
    %3697 = vmatpush1.bf16.msra.mxu0 %v2933
    %3698 = vmatprep.subr.bf16.mxu0 %v2942
    %3699 = vmatpush1.bf16.msra.mxu0 %v2941
    %3700 = vmatprep.subr.bf16.mxu0 %v2950
    %3701 = vmatpush1.bf16.msra.mxu0 %v2949
    %3702 = vmatprep.subr.bf16.mxu0 %v2958
    %3703 = vmatpush1.bf16.msra.mxu0 %v2957
    %3704 = vmatprep.subr.bf16.mxu0 %v2966
    %3705 = vmatpush1.bf16.msra.mxu0 %v2965
    %3706 = vmatprep.subr.bf16.mxu0 %v2974
    %3707 = vmatpush1.bf16.msra.mxu0 %v2973
    %3708 = vmatprep.subr.bf16.mxu0 %v2982
    %3709 = vmatpush1.bf16.msra.mxu0 %v2981
    %3710 = vmatprep.subr.bf16.mxu0 %v2990
    %3711 = vmatpush1.bf16.msra.mxu0 %v2989
    %3712 = vmatprep.subr.bf16.mxu0 %v2998
    %3713 = vmatpush1.bf16.msra.mxu0 %v2997
    %3714 = vmatprep.subr.bf16.mxu0 %v3006
    %3715 = vmatpush1.bf16.msra.mxu0 %v3005
    %3716 = vmatprep.subr.bf16.mxu0 %v3014
    %3717 = vmatpush1.bf16.msra.mxu0 %v3013
    %3718 = vmatprep.subr.bf16.mxu0 %v3022
    %3719 = vmatpush1.bf16.msra.mxu0 %v3021
    %3720 = vmatprep.subr.bf16.mxu0 %v3030
    %3721 = vmatpush1.bf16.msra.mxu0 %v3029
    %3722 = vmatprep.subr.bf16.mxu0 %v3038
    %3723 = vmatpush1.bf16.msra.mxu0 %v3037
    %3724 = vmatprep.subr.bf16.mxu0 %v3046
    %3725 = vmatpush1.bf16.msra.mxu0 %v3045
    %3726 = vmatprep.subr.bf16.mxu0 %v3054
    %3727 = vmatpush1.bf16.msra.mxu0 %v3053
    %3728 = vmatprep.mubr.bf16.mxu0 %v458
    %3729 = vmatmul.mubr.bf16.gmra.mrb[0].mxu0 %v457
    %v3730 = vpop.f32.mrb[0].mxu0
    %v3731 = vadd.f32 %v3690, %v3730
    %v3732 = vpop.f32.mrb[0].mxu0
    %v3733 = vadd.f32 %v3692, %v3732
    %v3734 = vpop.f32.mrb[0].mxu0
    %v3735 = vpop.f32.mrb[0].mxu0
    %3736 = vdwg.mxu0
    %3737 = vmatprep.subr.bf16.mxu0 %v2552
    %3738 = vmatpush1.bf16.msra.mxu0 %v2551
    %3739 = vmatprep.subr.bf16.mxu0 %v2560
    %3740 = vmatpush1.bf16.msra.mxu0 %v2559
    %3741 = vmatprep.subr.bf16.mxu0 %v2568
    %3742 = vmatpush1.bf16.msra.mxu0 %v2567
    %3743 = vmatprep.subr.bf16.mxu0 %v2576
    %3744 = vmatpush1.bf16.msra.mxu0 %v2575
    %3745 = vmatprep.subr.bf16.mxu0 %v2584
    %3746 = vmatpush1.bf16.msra.mxu0 %v2583
    %3747 = vmatprep.subr.bf16.mxu0 %v2592
    %3748 = vmatpush1.bf16.msra.mxu0 %v2591
    %3749 = vmatprep.subr.bf16.mxu0 %v2600
    %3750 = vmatpush1.bf16.msra.mxu0 %v2599
    %3751 = vmatprep.subr.bf16.mxu0 %v2608
    %3752 = vmatpush1.bf16.msra.mxu0 %v2607
    %3753 = vmatprep.subr.bf16.mxu0 %v2616
    %3754 = vmatpush1.bf16.msra.mxu0 %v2615
    %3755 = vmatprep.subr.bf16.mxu0 %v2624
    %3756 = vmatpush1.bf16.msra.mxu0 %v2623
    %3757 = vmatprep.subr.bf16.mxu0 %v2632
    %3758 = vmatpush1.bf16.msra.mxu0 %v2631
    %3759 = vmatprep.subr.bf16.mxu0 %v2640
    %3760 = vmatpush1.bf16.msra.mxu0 %v2639
    %3761 = vmatprep.subr.bf16.mxu0 %v2648
    %3762 = vmatpush1.bf16.msra.mxu0 %v2647
    %3763 = vmatprep.subr.bf16.mxu0 %v2656
    %3764 = vmatpush1.bf16.msra.mxu0 %v2655
    %3765 = vmatprep.subr.bf16.mxu0 %v2664
    %3766 = vmatpush1.bf16.msra.mxu0 %v2663
    %3767 = vmatprep.subr.bf16.mxu0 %v2672
    %3768 = vmatpush1.bf16.msra.mxu0 %v2671
    %3769 = vmatprep.mubr.bf16.mxu0 %v452
    %3770 = vmatmul.mubr.bf16.gmra.mrb[0].mxu0 %v451
    %v3771 = vpop.f32.mrb[0].mxu0
    %v3772 = vadd.f32 %v984, %v3771
    %v3773 = vpop.f32.mrb[0].mxu0
    %v3774 = vadd.f32 %v988, %v3773
    %v3775 = vpop.f32.mrb[0].mxu0
    %v3776 = vpop.f32.mrb[0].mxu0
    %3777 = vdwg.mxu0
    %3778 = vmatprep.subr.bf16.mxu0 %v2680
    %3779 = vmatpush1.bf16.msra.mxu0 %v2679
    %3780 = vmatprep.subr.bf16.mxu0 %v2688
    %3781 = vmatpush1.bf16.msra.mxu0 %v2687
    %3782 = vmatprep.subr.bf16.mxu0 %v2696
    %3783 = vmatpush1.bf16.msra.mxu0 %v2695
    %3784 = vmatprep.subr.bf16.mxu0 %v2704
    %3785 = vmatpush1.bf16.msra.mxu0 %v2703
    %3786 = vmatprep.subr.bf16.mxu0 %v2712
    %3787 = vmatpush1.bf16.msra.mxu0 %v2711
    %3788 = vmatprep.subr.bf16.mxu0 %v2720
    %3789 = vmatpush1.bf16.msra.mxu0 %v2719
    %3790 = vmatprep.subr.bf16.mxu0 %v2728
    %3791 = vmatpush1.bf16.msra.mxu0 %v2727
    %3792 = vmatprep.subr.bf16.mxu0 %v2736
    %3793 = vmatpush1.bf16.msra.mxu0 %v2735
    %3794 = vmatprep.subr.bf16.mxu0 %v2744
    %3795 = vmatpush1.bf16.msra.mxu0 %v2743
    %3796 = vmatprep.subr.bf16.mxu0 %v2752
    %3797 = vmatpush1.bf16.msra.mxu0 %v2751
    %3798 = vmatprep.subr.bf16.mxu0 %v2760
    %3799 = vmatpush1.bf16.msra.mxu0 %v2759
    %3800 = vmatprep.subr.bf16.mxu0 %v2768
    %3801 = vmatpush1.bf16.msra.mxu0 %v2767
    %3802 = vmatprep.subr.bf16.mxu0 %v2776
    %3803 = vmatpush1.bf16.msra.mxu0 %v2775
    %3804 = vmatprep.subr.bf16.mxu0 %v2784
    %3805 = vmatpush1.bf16.msra.mxu0 %v2783
    %3806 = vmatprep.subr.bf16.mxu0 %v2792
    %3807 = vmatpush1.bf16.msra.mxu0 %v2791
    %3808 = vmatprep.subr.bf16.mxu0 %v2800
    %3809 = vmatpush1.bf16.msra.mxu0 %v2799
    %3810 = vmatprep.mubr.bf16.mxu0 %v454
    %3811 = vmatmul.mubr.bf16.gmra.mrb[0].mxu0 %v453
    %v3812 = vpop.f32.mrb[0].mxu0
    %v3813 = vadd.f32 %v3772, %v3812
    %v3814 = vpop.f32.mrb[0].mxu0
    %v3815 = vadd.f32 %v3774, %v3814
    %v3816 = vpop.f32.mrb[0].mxu0
    %v3817 = vpop.f32.mrb[0].mxu0
    %3818 = vdwg.mxu0
    %3819 = vmatprep.subr.bf16.mxu0 %v2808
    %3820 = vmatpush1.bf16.msra.mxu0 %v2807
    %3821 = vmatprep.subr.bf16.mxu0 %v2816
    %3822 = vmatpush1.bf16.msra.mxu0 %v2815
    %3823 = vmatprep.subr.bf16.mxu0 %v2824
    %3824 = vmatpush1.bf16.msra.mxu0 %v2823
    %3825 = vmatprep.subr.bf16.mxu0 %v2832
    %3826 = vmatpush1.bf16.msra.mxu0 %v2831
    %3827 = vmatprep.subr.bf16.mxu0 %v2840
    %3828 = vmatpush1.bf16.msra.mxu0 %v2839
    %3829 = vmatprep.subr.bf16.mxu0 %v2848
    %3830 = vmatpush1.bf16.msra.mxu0 %v2847
    %3831 = vmatprep.subr.bf16.mxu0 %v2856
    %3832 = vmatpush1.bf16.msra.mxu0 %v2855
    %3833 = vmatprep.subr.bf16.mxu0 %v2864
    %3834 = vmatpush1.bf16.msra.mxu0 %v2863
    %3835 = vmatprep.subr.bf16.mxu0 %v2872
    %3836 = vmatpush1.bf16.msra.mxu0 %v2871
    %3837 = vmatprep.subr.bf16.mxu0 %v2880
    %3838 = vmatpush1.bf16.msra.mxu0 %v2879
    %3839 = vmatprep.subr.bf16.mxu0 %v2888
    %3840 = vmatpush1.bf16.msra.mxu0 %v2887
    %3841 = vmatprep.subr.bf16.mxu0 %v2896
    %3842 = vmatpush1.bf16.msra.mxu0 %v2895
    %3843 = vmatprep.subr.bf16.mxu0 %v2904
    %3844 = vmatpush1.bf16.msra.mxu0 %v2903
    %3845 = vmatprep.subr.bf16.mxu0 %v2912
    %3846 = vmatpush1.bf16.msra.mxu0 %v2911
    %3847 = vmatprep.subr.bf16.mxu0 %v2920
    %3848 = vmatpush1.bf16.msra.mxu0 %v2919
    %3849 = vmatprep.subr.bf16.mxu0 %v2928
    %3850 = vmatpush1.bf16.msra.mxu0 %v2927
    %3851 = vmatprep.mubr.bf16.mxu0 %v456
    %3852 = vmatmul.mubr.bf16.gmra.mrb[0].mxu0 %v455
    %v3853 = vpop.f32.mrb[0].mxu0
    %v3854 = vadd.f32 %v3813, %v3853
    %v3855 = vpop.f32.mrb[0].mxu0
    %v3856 = vadd.f32 %v3815, %v3855
    %v3857 = vpop.f32.mrb[0].mxu0
    %v3858 = vpop.f32.mrb[0].mxu0
    %3859 = vdwg.mxu0
    %3860 = vmatprep.subr.bf16.mxu0 %v2936
    %3861 = vmatpush1.bf16.msra.mxu0 %v2935
    %3862 = vmatprep.subr.bf16.mxu0 %v2944
    %3863 = vmatpush1.bf16.msra.mxu0 %v2943
    %3864 = vmatprep.subr.bf16.mxu0 %v2952
    %3865 = vmatpush1.bf16.msra.mxu0 %v2951
    %3866 = vmatprep.subr.bf16.mxu0 %v2960
    %3867 = vmatpush1.bf16.msra.mxu0 %v2959
    %3868 = vmatprep.subr.bf16.mxu0 %v2968
    %3869 = vmatpush1.bf16.msra.mxu0 %v2967
    %3870 = vmatprep.subr.bf16.mxu0 %v2976
    %3871 = vmatpush1.bf16.msra.mxu0 %v2975
    %3872 = vmatprep.subr.bf16.mxu0 %v2984
    %3873 = vmatpush1.bf16.msra.mxu0 %v2983
    %3874 = vmatprep.subr.bf16.mxu0 %v2992
    %3875 = vmatpush1.bf16.msra.mxu0 %v2991
    %3876 = vmatprep.subr.bf16.mxu0 %v3000
    %3877 = vmatpush1.bf16.msra.mxu0 %v2999
    %3878 = vmatprep.subr.bf16.mxu0 %v3008
    %3879 = vmatpush1.bf16.msra.mxu0 %v3007
    %3880 = vmatprep.subr.bf16.mxu0 %v3016
    %3881 = vmatpush1.bf16.msra.mxu0 %v3015
    %3882 = vmatprep.subr.bf16.mxu0 %v3024
    %3883 = vmatpush1.bf16.msra.mxu0 %v3023
    %3884 = vmatprep.subr.bf16.mxu0 %v3032
    %3885 = vmatpush1.bf16.msra.mxu0 %v3031
    %3886 = vmatprep.subr.bf16.mxu0 %v3040
    %3887 = vmatpush1.bf16.msra.mxu0 %v3039
    %3888 = vmatprep.subr.bf16.mxu0 %v3048
    %3889 = vmatpush1.bf16.msra.mxu0 %v3047
    %3890 = vmatprep.subr.bf16.mxu0 %v3056
    %3891 = vmatpush1.bf16.msra.mxu0 %v3055
    %3892 = vmatprep.mubr.bf16.mxu0 %v458
    %3893 = vmatmul.mubr.bf16.gmra.mrb[0].mxu0 %v457
    %v3894 = vpop.f32.mrb[0].mxu0
    %v3895 = vadd.f32 %v3854, %v3894
    %v3896 = vpop.f32.mrb[0].mxu0
    %v3897 = vadd.f32 %v3856, %v3896
    %v3898 = vpop.f32.mrb[0].mxu0
    %v3899 = vpop.f32.mrb[0].mxu0
    %3900 = vdwg.mxu0
    %3901 = vmatprep.subr.bf16.mxu0 %v2554
    %3902 = vmatpush1.bf16.msra.mxu0 %v2553
    %3903 = vmatprep.subr.bf16.mxu0 %v2562
    %3904 = vmatpush1.bf16.msra.mxu0 %v2561
    %3905 = vmatprep.subr.bf16.mxu0 %v2570
    %3906 = vmatpush1.bf16.msra.mxu0 %v2569
    %3907 = vmatprep.subr.bf16.mxu0 %v2578
    %3908 = vmatpush1.bf16.msra.mxu0 %v2577
    %3909 = vmatprep.subr.bf16.mxu0 %v2586
    %3910 = vmatpush1.bf16.msra.mxu0 %v2585
    %3911 = vmatprep.subr.bf16.mxu0 %v2594
    %3912 = vmatpush1.bf16.msra.mxu0 %v2593
    %3913 = vmatprep.subr.bf16.mxu0 %v2602
    %3914 = vmatpush1.bf16.msra.mxu0 %v2601
    %3915 = vmatprep.subr.bf16.mxu0 %v2610
    %3916 = vmatpush1.bf16.msra.mxu0 %v2609
    %3917 = vmatprep.subr.bf16.mxu0 %v2618
    %3918 = vmatpush1.bf16.msra.mxu0 %v2617
    %3919 = vmatprep.subr.bf16.mxu0 %v2626
    %3920 = vmatpush1.bf16.msra.mxu0 %v2625
    %3921 = vmatprep.subr.bf16.mxu0 %v2634
    %3922 = vmatpush1.bf16.msra.mxu0 %v2633
    %3923 = vmatprep.subr.bf16.mxu0 %v2642
    %3924 = vmatpush1.bf16.msra.mxu0 %v2641
    %3925 = vmatprep.subr.bf16.mxu0 %v2650
    %3926 = vmatpush1.bf16.msra.mxu0 %v2649
    %3927 = vmatprep.subr.bf16.mxu0 %v2658
    %3928 = vmatpush1.bf16.msra.mxu0 %v2657
    %3929 = vmatprep.subr.bf16.mxu0 %v2666
    %3930 = vmatpush1.bf16.msra.mxu0 %v2665
    %3931 = vmatprep.subr.bf16.mxu0 %v2674
    %3932 = vmatpush1.bf16.msra.mxu0 %v2673
    %3933 = vmatprep.mubr.bf16.mxu0 %v452
    %3934 = vmatmul.mubr.bf16.gmra.mrb[0].mxu0 %v451
    %v3935 = vpop.f32.mrb[0].mxu0
    %v3936 = vadd.f32 %v992, %v3935
    %v3937 = vpop.f32.mrb[0].mxu0
    %v3938 = vadd.f32 %v996, %v3937
    %v3939 = vpop.f32.mrb[0].mxu0
    %v3940 = vpop.f32.mrb[0].mxu0
    %3941 = vdwg.mxu0
    %3942 = vmatprep.subr.bf16.mxu0 %v2682
    %3943 = vmatpush1.bf16.msra.mxu0 %v2681
    %3944 = vmatprep.subr.bf16.mxu0 %v2690
    %3945 = vmatpush1.bf16.msra.mxu0 %v2689
    %3946 = vmatprep.subr.bf16.mxu0 %v2698
    %3947 = vmatpush1.bf16.msra.mxu0 %v2697
    %3948 = vmatprep.subr.bf16.mxu0 %v2706
    %3949 = vmatpush1.bf16.msra.mxu0 %v2705
    %3950 = vmatprep.subr.bf16.mxu0 %v2714
    %3951 = vmatpush1.bf16.msra.mxu0 %v2713
    %3952 = vmatprep.subr.bf16.mxu0 %v2722
    %3953 = vmatpush1.bf16.msra.mxu0 %v2721
    %3954 = vmatprep.subr.bf16.mxu0 %v2730
    %3955 = vmatpush1.bf16.msra.mxu0 %v2729
    %3956 = vmatprep.subr.bf16.mxu0 %v2738
    %3957 = vmatpush1.bf16.msra.mxu0 %v2737
    %3958 = vmatprep.subr.bf16.mxu0 %v2746
    %3959 = vmatpush1.bf16.msra.mxu0 %v2745
    %3960 = vmatprep.subr.bf16.mxu0 %v2754
    %3961 = vmatpush1.bf16.msra.mxu0 %v2753
    %3962 = vmatprep.subr.bf16.mxu0 %v2762
    %3963 = vmatpush1.bf16.msra.mxu0 %v2761
    %3964 = vmatprep.subr.bf16.mxu0 %v2770
    %3965 = vmatpush1.bf16.msra.mxu0 %v2769
    %3966 = vmatprep.subr.bf16.mxu0 %v2778
    %3967 = vmatpush1.bf16.msra.mxu0 %v2777
    %3968 = vmatprep.subr.bf16.mxu0 %v2786
    %3969 = vmatpush1.bf16.msra.mxu0 %v2785
    %3970 = vmatprep.subr.bf16.mxu0 %v2794
    %3971 = vmatpush1.bf16.msra.mxu0 %v2793
    %3972 = vmatprep.subr.bf16.mxu0 %v2802
    %3973 = vmatpush1.bf16.msra.mxu0 %v2801
    %3974 = vmatprep.mubr.bf16.mxu0 %v454
    %3975 = vmatmul.mubr.bf16.gmra.mrb[0].mxu0 %v453
    %v3976 = vpop.f32.mrb[0].mxu0
    %v3977 = vadd.f32 %v3936, %v3976
    %v3978 = vpop.f32.mrb[0].mxu0
    %v3979 = vadd.f32 %v3938, %v3978
    %v3980 = vpop.f32.mrb[0].mxu0
    %v3981 = vpop.f32.mrb[0].mxu0
    %3982 = vdwg.mxu0
    %3983 = vmatprep.subr.bf16.mxu0 %v2810
    %3984 = vmatpush1.bf16.msra.mxu0 %v2809
    %3985 = vmatprep.subr.bf16.mxu0 %v2818
    %3986 = vmatpush1.bf16.msra.mxu0 %v2817
    %3987 = vmatprep.subr.bf16.mxu0 %v2826
    %3988 = vmatpush1.bf16.msra.mxu0 %v2825
    %3989 = vmatprep.subr.bf16.mxu0 %v2834
    %3990 = vmatpush1.bf16.msra.mxu0 %v2833
    %3991 = vmatprep.subr.bf16.mxu0 %v2842
    %3992 = vmatpush1.bf16.msra.mxu0 %v2841
    %3993 = vmatprep.subr.bf16.mxu0 %v2850
    %3994 = vmatpush1.bf16.msra.mxu0 %v2849
    %3995 = vmatprep.subr.bf16.mxu0 %v2858
    %3996 = vmatpush1.bf16.msra.mxu0 %v2857
    %3997 = vmatprep.subr.bf16.mxu0 %v2866
    %3998 = vmatpush1.bf16.msra.mxu0 %v2865
    %3999 = vmatprep.subr.bf16.mxu0 %v2874
    %4000 = vmatpush1.bf16.msra.mxu0 %v2873
    %4001 = vmatprep.subr.bf16.mxu0 %v2882
    %4002 = vmatpush1.bf16.msra.mxu0 %v2881
    %4003 = vmatprep.subr.bf16.mxu0 %v2890
    %4004 = vmatpush1.bf16.msra.mxu0 %v2889
    %4005 = vmatprep.subr.bf16.mxu0 %v2898
    %4006 = vmatpush1.bf16.msra.mxu0 %v2897
    %4007 = vmatprep.subr.bf16.mxu0 %v2906
    %4008 = vmatpush1.bf16.msra.mxu0 %v2905
    %4009 = vmatprep.subr.bf16.mxu0 %v2914
    %4010 = vmatpush1.bf16.msra.mxu0 %v2913
    %4011 = vmatprep.subr.bf16.mxu0 %v2922
    %4012 = vmatpush1.bf16.msra.mxu0 %v2921
    %4013 = vmatprep.subr.bf16.mxu0 %v2930
    %4014 = vmatpush1.bf16.msra.mxu0 %v2929
    %4015 = vmatprep.mubr.bf16.mxu0 %v456
    %4016 = vmatmul.mubr.bf16.gmra.mrb[0].mxu0 %v455
    %v4017 = vpop.f32.mrb[0].mxu0
    %v4018 = vadd.f32 %v3977, %v4017
    %v4019 = vpop.f32.mrb[0].mxu0
    %v4020 = vadd.f32 %v3979, %v4019
    %v4021 = vpop.f32.mrb[0].mxu0
    %v4022 = vpop.f32.mrb[0].mxu0
    %4023 = vdwg.mxu0
    %4024 = vmatprep.subr.bf16.mxu0 %v2938
    %4025 = vmatpush1.bf16.msra.mxu0 %v2937
    %4026 = vmatprep.subr.bf16.mxu0 %v2946
    %4027 = vmatpush1.bf16.msra.mxu0 %v2945
    %4028 = vmatprep.subr.bf16.mxu0 %v2954
    %4029 = vmatpush1.bf16.msra.mxu0 %v2953
    %4030 = vmatprep.subr.bf16.mxu0 %v2962
    %4031 = vmatpush1.bf16.msra.mxu0 %v2961
    %4032 = vmatprep.subr.bf16.mxu0 %v2970
    %4033 = vmatpush1.bf16.msra.mxu0 %v2969
    %4034 = vmatprep.subr.bf16.mxu0 %v2978
    %4035 = vmatpush1.bf16.msra.mxu0 %v2977
    %4036 = vmatprep.subr.bf16.mxu0 %v2986
    %4037 = vmatpush1.bf16.msra.mxu0 %v2985
    %4038 = vmatprep.subr.bf16.mxu0 %v2994
    %4039 = vmatpush1.bf16.msra.mxu0 %v2993
    %4040 = vmatprep.subr.bf16.mxu0 %v3002
    %4041 = vmatpush1.bf16.msra.mxu0 %v3001
    %4042 = vmatprep.subr.bf16.mxu0 %v3010
    %4043 = vmatpush1.bf16.msra.mxu0 %v3009
    %4044 = vmatprep.subr.bf16.mxu0 %v3018
    %4045 = vmatpush1.bf16.msra.mxu0 %v3017
    %4046 = vmatprep.subr.bf16.mxu0 %v3026
    %4047 = vmatpush1.bf16.msra.mxu0 %v3025
    %4048 = vmatprep.subr.bf16.mxu0 %v3034
    %4049 = vmatpush1.bf16.msra.mxu0 %v3033
    %4050 = vmatprep.subr.bf16.mxu0 %v3042
    %4051 = vmatpush1.bf16.msra.mxu0 %v3041
    %4052 = vmatprep.subr.bf16.mxu0 %v3050
    %4053 = vmatpush1.bf16.msra.mxu0 %v3049
    %4054 = vmatprep.subr.bf16.mxu0 %v3058
    %4055 = vmatpush1.bf16.msra.mxu0 %v3057
    %4056 = vmatprep.mubr.bf16.mxu0 %v458
    %4057 = vmatmul.mubr.bf16.gmra.mrb[0].mxu0 %v457
    %v4058 = vpop.f32.mrb[0].mxu0
    %v4059 = vadd.f32 %v4018, %v4058
    %v4060 = vpop.f32.mrb[0].mxu0
    %v4061 = vadd.f32 %v4020, %v4060
    %v4062 = vpop.f32.mrb[0].mxu0
    %v4063 = vpop.f32.mrb[0].mxu0
    %4064 = vdwg.mxu0
    %4065 = vmatprep.subr.bf16.mxu0 %v2556
    %4066 = vmatpush1.bf16.msra.mxu0 %v2555
    %4067 = vmatprep.subr.bf16.mxu0 %v2564
    %4068 = vmatpush1.bf16.msra.mxu0 %v2563
    %4069 = vmatprep.subr.bf16.mxu0 %v2572
    %4070 = vmatpush1.bf16.msra.mxu0 %v2571
    %4071 = vmatprep.subr.bf16.mxu0 %v2580
    %4072 = vmatpush1.bf16.msra.mxu0 %v2579
    %4073 = vmatprep.subr.bf16.mxu0 %v2588
    %4074 = vmatpush1.bf16.msra.mxu0 %v2587
    %4075 = vmatprep.subr.bf16.mxu0 %v2596
    %4076 = vmatpush1.bf16.msra.mxu0 %v2595
    %4077 = vmatprep.subr.bf16.mxu0 %v2604
    %4078 = vmatpush1.bf16.msra.mxu0 %v2603
    %4079 = vmatprep.subr.bf16.mxu0 %v2612
    %4080 = vmatpush1.bf16.msra.mxu0 %v2611
    %4081 = vmatprep.subr.bf16.mxu0 %v2620
    %4082 = vmatpush1.bf16.msra.mxu0 %v2619
    %4083 = vmatprep.subr.bf16.mxu0 %v2628
    %4084 = vmatpush1.bf16.msra.mxu0 %v2627
    %4085 = vmatprep.subr.bf16.mxu0 %v2636
    %4086 = vmatpush1.bf16.msra.mxu0 %v2635
    %4087 = vmatprep.subr.bf16.mxu0 %v2644
    %4088 = vmatpush1.bf16.msra.mxu0 %v2643
    %4089 = vmatprep.subr.bf16.mxu0 %v2652
    %4090 = vmatpush1.bf16.msra.mxu0 %v2651
    %4091 = vmatprep.subr.bf16.mxu0 %v2660
    %4092 = vmatpush1.bf16.msra.mxu0 %v2659
    %4093 = vmatprep.subr.bf16.mxu0 %v2668
    %4094 = vmatpush1.bf16.msra.mxu0 %v2667
    %4095 = vmatprep.subr.bf16.mxu0 %v2676
    %4096 = vmatpush1.bf16.msra.mxu0 %v2675
    %4097 = vmatprep.mubr.bf16.mxu0 %v452
    %4098 = vmatmul.mubr.bf16.gmra.mrb[0].mxu0 %v451
    %v4099 = vpop.f32.mrb[0].mxu0
    %v4100 = vadd.f32 %v1000, %v4099
    %v4101 = vpop.f32.mrb[0].mxu0
    %v4102 = vadd.f32 %v1004, %v4101
    %v4103 = vpop.f32.mrb[0].mxu0
    %v4104 = vpop.f32.mrb[0].mxu0
    %4105 = vdwg.mxu0
    %4106 = vmatprep.subr.bf16.mxu0 %v2684
    %4107 = vmatpush1.bf16.msra.mxu0 %v2683
    %4108 = vmatprep.subr.bf16.mxu0 %v2692
    %4109 = vmatpush1.bf16.msra.mxu0 %v2691
    %4110 = vmatprep.subr.bf16.mxu0 %v2700
    %4111 = vmatpush1.bf16.msra.mxu0 %v2699
    %4112 = vmatprep.subr.bf16.mxu0 %v2708
    %4113 = vmatpush1.bf16.msra.mxu0 %v2707
    %4114 = vmatprep.subr.bf16.mxu0 %v2716
    %4115 = vmatpush1.bf16.msra.mxu0 %v2715
    %4116 = vmatprep.subr.bf16.mxu0 %v2724
    %4117 = vmatpush1.bf16.msra.mxu0 %v2723
    %4118 = vmatprep.subr.bf16.mxu0 %v2732
    %4119 = vmatpush1.bf16.msra.mxu0 %v2731
    %4120 = vmatprep.subr.bf16.mxu0 %v2740
    %4121 = vmatpush1.bf16.msra.mxu0 %v2739
    %4122 = vmatprep.subr.bf16.mxu0 %v2748
    %4123 = vmatpush1.bf16.msra.mxu0 %v2747
    %4124 = vmatprep.subr.bf16.mxu0 %v2756
    %4125 = vmatpush1.bf16.msra.mxu0 %v2755
    %4126 = vmatprep.subr.bf16.mxu0 %v2764
    %4127 = vmatpush1.bf16.msra.mxu0 %v2763
    %4128 = vmatprep.subr.bf16.mxu0 %v2772
    %4129 = vmatpush1.bf16.msra.mxu0 %v2771
    %4130 = vmatprep.subr.bf16.mxu0 %v2780
    %4131 = vmatpush1.bf16.msra.mxu0 %v2779
    %4132 = vmatprep.subr.bf16.mxu0 %v2788
    %4133 = vmatpush1.bf16.msra.mxu0 %v2787
    %4134 = vmatprep.subr.bf16.mxu0 %v2796
    %4135 = vmatpush1.bf16.msra.mxu0 %v2795
    %4136 = vmatprep.subr.bf16.mxu0 %v2804
    %4137 = vmatpush1.bf16.msra.mxu0 %v2803
    %4138 = vmatprep.mubr.bf16.mxu0 %v454
    %4139 = vmatmul.mubr.bf16.gmra.mrb[0].mxu0 %v453
    %v4140 = vpop.f32.mrb[0].mxu0
    %v4141 = vadd.f32 %v4100, %v4140
    %v4142 = vpop.f32.mrb[0].mxu0
    %v4143 = vadd.f32 %v4102, %v4142
    %v4144 = vpop.f32.mrb[0].mxu0
    %v4145 = vpop.f32.mrb[0].mxu0
    %4146 = vdwg.mxu0
    %4147 = vmatprep.subr.bf16.mxu0 %v2812
    %4148 = vmatpush1.bf16.msra.mxu0 %v2811
    %4149 = vmatprep.subr.bf16.mxu0 %v2820
    %4150 = vmatpush1.bf16.msra.mxu0 %v2819
    %4151 = vmatprep.subr.bf16.mxu0 %v2828
    %4152 = vmatpush1.bf16.msra.mxu0 %v2827
    %4153 = vmatprep.subr.bf16.mxu0 %v2836
    %4154 = vmatpush1.bf16.msra.mxu0 %v2835
    %4155 = vmatprep.subr.bf16.mxu0 %v2844
    %4156 = vmatpush1.bf16.msra.mxu0 %v2843
    %4157 = vmatprep.subr.bf16.mxu0 %v2852
    %4158 = vmatpush1.bf16.msra.mxu0 %v2851
    %4159 = vmatprep.subr.bf16.mxu0 %v2860
    %4160 = vmatpush1.bf16.msra.mxu0 %v2859
    %4161 = vmatprep.subr.bf16.mxu0 %v2868
    %4162 = vmatpush1.bf16.msra.mxu0 %v2867
    %4163 = vmatprep.subr.bf16.mxu0 %v2876
    %4164 = vmatpush1.bf16.msra.mxu0 %v2875
    %4165 = vmatprep.subr.bf16.mxu0 %v2884
    %4166 = vmatpush1.bf16.msra.mxu0 %v2883
    %4167 = vmatprep.subr.bf16.mxu0 %v2892
    %4168 = vmatpush1.bf16.msra.mxu0 %v2891
    %4169 = vmatprep.subr.bf16.mxu0 %v2900
    %4170 = vmatpush1.bf16.msra.mxu0 %v2899
    %4171 = vmatprep.subr.bf16.mxu0 %v2908
    %4172 = vmatpush1.bf16.msra.mxu0 %v2907
    %4173 = vmatprep.subr.bf16.mxu0 %v2916
    %4174 = vmatpush1.bf16.msra.mxu0 %v2915
    %4175 = vmatprep.subr.bf16.mxu0 %v2924
    %4176 = vmatpush1.bf16.msra.mxu0 %v2923
    %4177 = vmatprep.subr.bf16.mxu0 %v2932
    %4178 = vmatpush1.bf16.msra.mxu0 %v2931
    %4179 = vmatprep.mubr.bf16.mxu0 %v456
    %4180 = vmatmul.mubr.bf16.gmra.mrb[0].mxu0 %v455
    %v4181 = vpop.f32.mrb[0].mxu0
    %v4182 = vadd.f32 %v4141, %v4181
    %v4183 = vpop.f32.mrb[0].mxu0
    %v4184 = vadd.f32 %v4143, %v4183
    %v4185 = vpop.f32.mrb[0].mxu0
    %v4186 = vpop.f32.mrb[0].mxu0
    %4187 = vdwg.mxu0
    %4188 = vmatprep.subr.bf16.mxu0 %v2940
    %4189 = vmatpush1.bf16.msra.mxu0 %v2939
    %4190 = vmatprep.subr.bf16.mxu0 %v2948
    %4191 = vmatpush1.bf16.msra.mxu0 %v2947
    %4192 = vmatprep.subr.bf16.mxu0 %v2956
    %4193 = vmatpush1.bf16.msra.mxu0 %v2955
    %4194 = vmatprep.subr.bf16.mxu0 %v2964
    %4195 = vmatpush1.bf16.msra.mxu0 %v2963
    %4196 = vmatprep.subr.bf16.mxu0 %v2972
    %4197 = vmatpush1.bf16.msra.mxu0 %v2971
    %4198 = vmatprep.subr.bf16.mxu0 %v2980
    %4199 = vmatpush1.bf16.msra.mxu0 %v2979
    %4200 = vmatprep.subr.bf16.mxu0 %v2988
    %4201 = vmatpush1.bf16.msra.mxu0 %v2987
    %4202 = vmatprep.subr.bf16.mxu0 %v2996
    %4203 = vmatpush1.bf16.msra.mxu0 %v2995
    %4204 = vmatprep.subr.bf16.mxu0 %v3004
    %4205 = vmatpush1.bf16.msra.mxu0 %v3003
    %4206 = vmatprep.subr.bf16.mxu0 %v3012
    %4207 = vmatpush1.bf16.msra.mxu0 %v3011
    %4208 = vmatprep.subr.bf16.mxu0 %v3020
    %4209 = vmatpush1.bf16.msra.mxu0 %v3019
    %4210 = vmatprep.subr.bf16.mxu0 %v3028
    %4211 = vmatpush1.bf16.msra.mxu0 %v3027
    %4212 = vmatprep.subr.bf16.mxu0 %v3036
    %4213 = vmatpush1.bf16.msra.mxu0 %v3035
    %4214 = vmatprep.subr.bf16.mxu0 %v3044
    %4215 = vmatpush1.bf16.msra.mxu0 %v3043
    %4216 = vmatprep.subr.bf16.mxu0 %v3052
    %4217 = vmatpush1.bf16.msra.mxu0 %v3051
    %4218 = vmatprep.subr.bf16.mxu0 %v3060
    %4219 = vmatpush1.bf16.msra.mxu0 %v3059
    %4220 = vmatprep.mubr.bf16.mxu0 %v458
    %4221 = vmatmul.mubr.bf16.gmra.mrb[0].mxu0 %v457
    %v4222 = vpop.f32.mrb[0].mxu0
    %v4223 = vadd.f32 %v4182, %v4222
    %v4224 = vpop.f32.mrb[0].mxu0
    %v4225 = vadd.f32 %v4184, %v4224
    %v4226 = vpop.f32.mrb[0].mxu0
    %v4227 = vpop.f32.mrb[0].mxu0
    %4228 = vdwg.mxu0
    %v4229 = vmax.f32 %v3731, 0.0
    %v4230 = vmax.f32 %v3733, 0.0
    %v4231 = vmax.f32 %v3895, 0.0
    %v4232 = vmax.f32 %v3897, 0.0
    %v4233 = vmax.f32 %v4059, 0.0
    %v4234 = vmax.f32 %v4061, 0.0
    %v4235 = vmax.f32 %v4223, 0.0
    %v4236 = vmax.f32 %v4225, 0.0
    %v4237 = vpack.c.bf16 %v4229, %v4229
    %v4238 = vpack.c.bf16 %v4230, %v4230
    %v4239 = vpack.c.bf16 %v4231, %v4231
    %v4240 = vpack.c.bf16 %v4232, %v4232
    %v4241 = vpack.c.bf16 %v4233, %v4233
    %v4242 = vpack.c.bf16 %v4234, %v4234
    %v4243 = vpack.c.bf16 %v4235, %v4235
    %v4244 = vpack.c.bf16 %v4236, %v4236
    %v4253 = vunpack.c.l.b16 %v4237
    %v4254 = vunpack.c.l.b16 %v4238
    %v4255 = vunpack.c.l.b16 %v4239
    %v4256 = vunpack.c.l.b16 %v4240
    %v4257 = vunpack.c.l.b16 %v4241
    %v4258 = vunpack.c.l.b16 %v4242
    %v4259 = vunpack.c.l.b16 %v4243
    %v4260 = vunpack.c.l.b16 %v4244
    %v4261 = vpack.c.b16 %v4254, %v4253
    %v4262 = vpack.c.b16 %v4256, %v4255
    %v4263 = vpack.c.b16 %v4258, %v4257
    %v4264 = vpack.c.b16 %v4260, %v4259
    %4269 = vst [vmem:[%s5] sm:$0xff] %v4261
    %4270 = vst [vmem:[%s5 + $0x8] sm:$0xff] %v4262
    %4271 = vst [vmem:[%s5 + $0x10] sm:$0xff] %v4263
    %4272 = vst [vmem:[%s5 + $0x18] sm:$0xff] %v4264
    // Predicated region
    $region38: #{mlp_decoder_forward.2} parent=1 // pred_check
      _
    $region39: #{mlp_decoder_forward.2} parent=1 // pred_check_branch
      %4274 = sbr.rel (0) target = $region41
    $region40: #{mlp_decoder_forward.2} parent=1 // pred_region
      _
    $region41: #{mlp_decoder_forward.2} parent=1 // pred_fallthru
      _
    // Predicated region
    $region42: #{mlp_decoder_forward.2} parent=1 // pred_check
      _
    $region43: #{mlp_decoder_forward.2} parent=1 // pred_check_branch
      %4276 = sbr.rel (0) target = $region45
    $region44: #{mlp_decoder_forward.2} parent=1 // pred_region
      _
    $region45: #{mlp_decoder_forward.2} parent=1 // pred_fallthru
      _
    %4277 = vsyncpa [#allocation3], 1
    %4278 = vsyncpa [#allocation5], 1
    %4279 = vsyncpa [#allocation8], 1

</llo_original>
